<compile_context>
chip_gen: v5e
topology: v5e:2x2
jax: 0.10.0
libtpu: 0.0.40
codegen_flags: <defaults>
</compile_context>

<pallas_src>
import functools

import jax
import jax.numpy as jnp
from jax import lax
from jax.experimental import pallas as pl
from jax.experimental.pallas import tpu as pltpu


_TILE_M = 1024                   # lane-dense output tile (multiple of 128)
_MAX_TK = 2048                   # single K tile up to this; beyond -> K-tiled reduction
_VMEM_LIMIT = 32 * 1024 * 1024   # explicit scoped-VMEM cap, safe on v5e/v6e/v7x


def _round_up(x, m):
    return (x + m - 1) // m * m


def _pick_tm(M):
    """Lane-dense M tile: multiple of 128, capped so the parallel axis gets >=2 steps."""
    tm = min(_TILE_M, max(128, _round_up((M + 1) // 2, 128)))
    return tm


# ----------------------------------------------------------------------------
# Pallas kernels
# ----------------------------------------------------------------------------
def _conv_gemm_kernel(w_ref, x_ref, b_ref, o_ref):
    """Single-K-tile conv GEMM: o = relu(W @ Xcol + b), transposed / lane-dense.

    w_ref: (Cout, K) f32   x_ref: (K, tM) bf16   b_ref: (Cout, 1) f32
    o_ref: (Cout, tM) out_dtype.   grid = (num_m_tiles,)
    Dot runs in f32 (operands upcast in-register) -> supported on MXU and interpreter.
    """
    acc = jnp.dot(w_ref[...].astype(jnp.float32), x_ref[...].astype(jnp.float32),
                  preferred_element_type=jnp.float32)
    o_ref[...] = jnp.maximum(acc + b_ref[...], 0.0).astype(o_ref.dtype)


def _conv_gemm_kernel_ktiled(w_ref, x_ref, b_ref, o_ref, acc_ref):
    """K-tiled fallback (only used when K > _MAX_TK, never hit by MCNN shapes)."""
    k = pl.program_id(1)

    @pl.when(k == 0)
    def _init():
        acc_ref[...] = jnp.zeros_like(acc_ref)

    acc_ref[...] += jnp.dot(w_ref[...].astype(jnp.float32),
                            x_ref[...].astype(jnp.float32),
                            preferred_element_type=jnp.float32)

    @pl.when(k == pl.num_programs(1) - 1)
    def _finalize():
        o_ref[...] = jnp.maximum(acc_ref[...] + b_ref[...], 0.0).astype(o_ref.dtype)


def _fuse_1x1_kernel(x_ref, w_ref, b_ref, o_ref):
    """1x1 fuse conv (Cin -> 1) as a lane-dense VPU weighted channel sum + ReLU.

    x_ref: (Cin, tM)   w_ref: (Cin, 1) f32   b_ref: (1, 1) f32   o_ref: (1, tM) f32
    """
    x = x_ref[...].astype(jnp.float32)
    acc = jnp.sum(x * w_ref[...], axis=0, keepdims=True) + b_ref[...]
    o_ref[...] = jnp.maximum(acc, 0.0).astype(o_ref.dtype)


def _mse_kernel(p_ref, g_ref, o_ref, acc_ref, *, inv_count):
    """Tiled mean-squared-error reduction.  p/g: (1, tF) f32, o: (1, 1) f32."""
    i = pl.program_id(0)

    @pl.when(i == 0)
    def _init():
        acc_ref[...] = jnp.zeros_like(acc_ref)

    d = p_ref[...] - g_ref[...]
    acc_ref[...] += jnp.sum(d * d, axis=(0, 1), keepdims=True)

    @pl.when(i == pl.num_programs(0) - 1)
    def _finalize():
        o_ref[...] = acc_ref[...] * inv_count


# ----------------------------------------------------------------------------
# Layer wrappers (glue + pallas_call)
# ----------------------------------------------------------------------------
def conv2d_same_relu(x, w, b, out_dtype=jnp.float32):
    """'same'-padded stride-1 conv + bias + ReLU on a (Cin, N, H, W) activation.

    Lowered to transposed im2col (XLA glue, bf16) + Pallas GEMM (MXU, f32 accumulate).
    Returns (Cout, N, H, W) with dtype out_dtype.
    """
    Cin, N, H, W = x.shape
    KH, KW, _, Cout = w.shape
    ph, pw = KH // 2, KW // 2
    M = N * H * W
    K = KH * KW * Cin

    # im2col glue: cast to bf16 BEFORE slicing/stacking (halves the slab intermediate).
    xp = jnp.pad(x.astype(jnp.bfloat16), ((0, 0), (0, 0), (ph, ph), (pw, pw)))
    cols = [lax.slice(xp, (0, 0, dy, dx), (Cin, N, dy + H, dx + W))
            for dy in range(KH) for dx in range(KW)]
    xcol = jnp.stack(cols, axis=0).reshape(K, M)                    # (K, M) bf16
    wmat = jnp.transpose(w.reshape(K, Cout)).astype(jnp.float32)    # (Cout, K) f32 (tiny)
    bmat = b.reshape(Cout, 1).astype(jnp.float32)

    tm = _pick_tm(M)
    m_pad = _round_up(M, tm)
    if m_pad > M:
        xcol = jnp.pad(xcol, ((0, 0), (0, m_pad - M)))
    nm = m_pad // tm

    if K <= _MAX_TK:
        # Single K tile (covers every MCNN layer: max K = 1568).  Full-dim blocks along
        # Cout/K are legal even when not multiples of 8, so no K padding is needed.
        out = pl.pallas_call(
            _conv_gemm_kernel,
            out_shape=jax.ShapeDtypeStruct((Cout, m_pad), out_dtype),
            grid=(nm,),
            in_specs=[
                pl.BlockSpec((Cout, K), lambda m: (0, 0)),   # weights (stay resident)
                pl.BlockSpec((K, tm), lambda m: (0, m)),     # im2col tile
                pl.BlockSpec((Cout, 1), lambda m: (0, 0)),   # bias
            ],
            out_specs=pl.BlockSpec((Cout, tm), lambda m: (0, m)),
            compiler_params=pltpu.CompilerParams(
                dimension_semantics=("parallel",),
                vmem_limit_bytes=_VMEM_LIMIT),
        )(wmat, xcol, bmat)
    else:
        # Fallback: K-tiled reduction with an f32 VMEM accumulator.
        tk = _MAX_TK
        k_pad = _round_up(K, tk)
        xcol = jnp.pad(xcol, ((0, k_pad - K), (0, 0)))
        wmat = jnp.pad(wmat, ((0, 0), (0, k_pad - K)))
        nk = k_pad // tk
        out = pl.pallas_call(
            _conv_gemm_kernel_ktiled,
            out_shape=jax.ShapeDtypeStruct((Cout, m_pad), out_dtype),
            grid=(nm, nk),
            in_specs=[
                pl.BlockSpec((Cout, tk), lambda m, k: (0, k)),
                pl.BlockSpec((tk, tm), lambda m, k: (k, m)),
                pl.BlockSpec((Cout, 1), lambda m, k: (0, 0)),
            ],
            out_specs=pl.BlockSpec((Cout, tm), lambda m, k: (0, m)),
            scratch_shapes=[pltpu.VMEM((Cout, tm), jnp.float32)],
            compiler_params=pltpu.CompilerParams(
                dimension_semantics=("parallel", "arbitrary"),
                vmem_limit_bytes=_VMEM_LIMIT),
        )(wmat, xcol, bmat)

    return out[:, :M].reshape(Cout, N, H, W)


def fuse_1x1_relu(x, w, b):
    """1x1 conv (Cin -> 1) + bias + ReLU as a lane-dense VPU reduction kernel."""
    Cin, N, H, W = x.shape
    M = N * H * W
    xm = x.reshape(Cin, M)
    wm = w.reshape(Cin, 1).astype(jnp.float32)    # w is (1, 1, Cin, 1)
    bm = b.reshape(1, 1).astype(jnp.float32)

    tm = _pick_tm(M)
    m_pad = _round_up(M, tm)
    if m_pad > M:
        xm = jnp.pad(xm, ((0, 0), (0, m_pad - M)))

    out = pl.pallas_call(
        _fuse_1x1_kernel,
        out_shape=jax.ShapeDtypeStruct((1, m_pad), jnp.float32),
        grid=(m_pad // tm,),
        in_specs=[
            pl.BlockSpec((Cin, tm), lambda m: (0, m)),
            pl.BlockSpec((Cin, 1), lambda m: (0, 0)),
            pl.BlockSpec((1, 1), lambda m: (0, 0)),
        ],
        out_specs=pl.BlockSpec((1, tm), lambda m: (0, m)),
        compiler_params=pltpu.CompilerParams(
            dimension_semantics=("parallel",),
            vmem_limit_bytes=_VMEM_LIMIT),
    )(xm, wm, bm)

    return out[:, :M].reshape(1, N, H, W)


def maxpool2x2(x):
    """nn.MaxPool2d(2) on a (C, N, H, W) activation — memory-bound XLA reshape+max glue."""
    C, N, H, W = x.shape
    assert H % 2 == 0 and W % 2 == 0, "MaxPool2d(2) path requires even H, W"
    return x.reshape(C, N, H // 2, 2, W // 2, 2).max(axis=(3, 5))


def mse_loss(pred, gt):
    """nn.MSELoss() equivalent (mean over all elements), tiled Pallas reduction."""
    p = pred.reshape(1, -1).astype(jnp.float32)
    g = gt.reshape(1, -1).astype(jnp.float32)
    n_elem = p.shape[1]

    tf_ = min(16384, _round_up(n_elem, 128))
    f_pad = _round_up(n_elem, tf_)
    p = jnp.pad(p, ((0, 0), (0, f_pad - n_elem)))   # zero padding contributes 0 to SSE
    g = jnp.pad(g, ((0, 0), (0, f_pad - n_elem)))

    out = pl.pallas_call(
        functools.partial(_mse_kernel, inv_count=1.0 / n_elem),
        out_shape=jax.ShapeDtypeStruct((1, 1), jnp.float32),
        grid=(f_pad // tf_,),
        in_specs=[pl.BlockSpec((1, tf_), lambda i: (0, i)),
                  pl.BlockSpec((1, tf_), lambda i: (0, i))],
        out_specs=pl.BlockSpec((1, 1), lambda i: (0, 0)),
        scratch_shapes=[pltpu.VMEM((1, 1), jnp.float32)],
        compiler_params=pltpu.CompilerParams(
            dimension_semantics=("arbitrary",),
            vmem_limit_bytes=_VMEM_LIMIT),
    )(p, g)
    return out[0, 0]


# ----------------------------------------------------------------------------
# MCNN / CrowdCounter model
# ----------------------------------------------------------------------------
_MCNN_CFG = {
    # (kernel, Cin, Cout) per conv in each column.  All convs (incl. the fuse conv) use
    # ReLU, matching the reference MCNN Conv2d wrapper default relu=True.
    "branch1": [(9, 1, 16), (7, 16, 32), (7, 32, 16), (7, 16, 8)],
    "branch2": [(7, 1, 20), (5, 20, 40), (5, 40, 20), (5, 20, 10)],
    "branch3": [(5, 1, 24), (3, 24, 48), (3, 48, 24), (3, 24, 12)],
    "fuse":    [(1, 30, 1)],
}


def init_mcnn_params(key, dev=0.01):
    """Deterministic synthetic init (mirrors weights_normal_init(dev=0.01))."""
    params = {}
    for bi, (bname, cfg) in enumerate(sorted(_MCNN_CFG.items())):
        layers = []
        for li, (k, cin, cout) in enumerate(cfg):
            wkey = jax.random.fold_in(jax.random.fold_in(key, bi), li)
            w = dev * jax.random.normal(wkey, (k, k, cin, cout), jnp.float32)
            b = jnp.zeros((cout,), jnp.float32)
            layers.append({"w": w, "b": b})
        params[bname] = layers
    return params


def mcnn_forward(params, x_cnhw):
    # --- fused first conv of all three branches -------------------------------------
    # Zero-pad the 7x7 / 5x5 kernels to the 9x9 footprint and stack to Cout=60; with
    # 'same' padding + stride 1 this is mathematically identical to the three separate
    # convs but uses a single full-resolution im2col slab (K = 81 instead of 81+49+25).
    w1 = params["branch1"][0]["w"]                                   # (9,9,1,16)
    w2 = jnp.pad(params["branch2"][0]["w"], ((1, 1), (1, 1), (0, 0), (0, 0)))  # ->9x9
    w3 = jnp.pad(params["branch3"][0]["w"], ((2, 2), (2, 2), (0, 0), (0, 0)))  # ->9x9
    w0 = jnp.concatenate([w1, w2, w3], axis=3)                       # (9,9,1,60)
    b0 = jnp.concatenate([params["branch1"][0]["b"],
                          params["branch2"][0]["b"],
                          params["branch3"][0]["b"]], axis=0)        # (60,)
    y0 = conv2d_same_relu(x_cnhw, w0, b0, out_dtype=jnp.bfloat16)    # (60, N, H, W)
    c1, c2 = 16, 20
    y0_1, y0_2, y0_3 = y0[:c1], y0[c1:c1 + c2], y0[c1 + c2:]

    def run_rest(bp, x):
        x = maxpool2x2(x)
        x = conv2d_same_relu(x, bp[1]["w"], bp[1]["b"], out_dtype=jnp.bfloat16)
        x = maxpool2x2(x)
        x = conv2d_same_relu(x, bp[2]["w"], bp[2]["b"], out_dtype=jnp.bfloat16)
        x = conv2d_same_relu(x, bp[3]["w"], bp[3]["b"], out_dtype=jnp.float32)
        return x

    x1 = run_rest(params["branch1"], y0_1)   # (8,  N, H/4, W/4)
    x2 = run_rest(params["branch2"], y0_2)   # (10, N, H/4, W/4)
    x3 = run_rest(params["branch3"], y0_3)   # (12, N, H/4, W/4)
    xcat = jnp.concatenate([x1, x2, x3], axis=0)                     # (30, N, H/4, W/4)
    dm = fuse_1x1_relu(xcat, params["fuse"][0]["w"], params["fuse"][0]["b"])
    return dm                                                        # (1, N, H/4, W/4)


def crowd_counter_forward(params, im_data_nchw, gt_data_nchw=None):
    """Equivalent of CrowdCounter.forward: returns (density_map, loss_mse-or-None)."""
    x = jnp.transpose(im_data_nchw.astype(jnp.float32), (1, 0, 2, 3))   # NCHW -> CNHW
    dm = mcnn_forward(params, x)
    density_map = jnp.transpose(dm, (1, 0, 2, 3))                        # CNHW -> NCHW
    loss = None
    if gt_data_nchw is not None:   # "training" path: build_loss == MSE(density, gt)
        loss = mse_loss(density_map, gt_data_nchw.astype(jnp.float32))
    return density_map, loss


# ----------------------------------------------------------------------------
if __name__ == "__main__":
    key = jax.random.PRNGKey(0)
    pkey, xkey, gkey = jax.random.split(key, 3)

    params = init_mcnn_params(pkey)
    # grayscale input image(s), NCHW like the PyTorch module; H, W divisible by 4
    im_data = jax.random.normal(xkey, (2, 1, 16, 16), jnp.float32)
    # ground-truth density map at quarter resolution (MCNN output resolution)
    gt_data = jnp.abs(jax.random.normal(gkey, (2, 1, 4, 4), jnp.float32))

    fwd = jax.jit(crowd_counter_forward)
    density_map, loss = fwd(params, im_data, gt_data)
    jax.block_until_ready(density_map)
    jax.block_until_ready(loss)

    assert density_map.shape == (2, 1, 4, 4)
    assert density_map.dtype == jnp.float32
    assert loss.shape == ()
    print("KERNEL_OK")
</pallas_src>

<mosaic_0001>
module attributes {stable_mosaic.version = 11 : i64} {
  func.func @_conv_gemm_kernel(%arg0: i32, %arg1: memref<60x81xf32, #tpu.memory_space<vmem>>, %arg2: memref<81x256xbf16, #tpu.memory_space<vmem>>, %arg3: memref<60x1xf32, #tpu.memory_space<vmem>>, %arg4: memref<60x256xbf16, #tpu.memory_space<vmem>>) attributes {dimension_semantics = [#tpu.dimension_semantics<parallel>], iteration_bounds = array<i64: 2>, scalar_prefetch = 0 : i64, scratch_operands = 0 : i64, tpu.core_type = #tpu.core_type<tc>, window_params = [{pipeline_mode = #tpu.pipeline_mode<synchronous>, transform_indices = @transform_0, window_bounds = array<i64: 60, 81>}, {transform_indices = @transform_1, window_bounds = array<i64: 81, 256>}, {pipeline_mode = #tpu.pipeline_mode<synchronous>, transform_indices = @transform_2, window_bounds = array<i64: 60, 1>}, {transform_indices = @transform_3, window_bounds = array<i64: 60, 256>}]} {
    %c0 = arith.constant 0 : index
    %c0_0 = arith.constant 0 : index
    %0 = vector.load %arg1[%c0, %c0_0] : memref<60x81xf32, #tpu.memory_space<vmem>>, vector<60x81xf32>
    %c0_1 = arith.constant 0 : index
    %c0_2 = arith.constant 0 : index
    %1 = vector.load %arg2[%c0_1, %c0_2] : memref<81x256xbf16, #tpu.memory_space<vmem>>, vector<81x256xbf16>
    %2 = arith.extf %1 : vector<81x256xbf16> to vector<81x256xf32>
    %cst = arith.constant dense<0.000000e+00> : vector<60x256xf32>
    %3 = tpu.matmul %0, %2, %cst {dimension_numbers = #tpu.dot_dimension_numbers<[1], [0], [0], [1], [0, 0, 1, 1], [], []>} : vector<60x81xf32>, vector<81x256xf32>, vector<60x256xf32> -> vector<60x256xf32>
    %c0_3 = arith.constant 0 : index
    %c0_4 = arith.constant 0 : index
    %4 = vector.load %arg3[%c0_3, %c0_4] : memref<60x1xf32, #tpu.memory_space<vmem>>, vector<60x1xf32>
    %5 = vector.broadcast %4 : vector<60x1xf32> to vector<60x256xf32>
    %6 = arith.addf %3, %5 : vector<60x256xf32>
    %cst_5 = arith.constant 0.000000e+00 : f32
    %7 = vector.broadcast %cst_5 : f32 to vector<60x256xf32>
    %8 = arith.maximumf %6, %7 : vector<60x256xf32>
    %9 = arith.truncf %8 : vector<60x256xf32> to vector<60x256xbf16>
    %c0_6 = arith.constant 0 : index
    %c0_7 = arith.constant 0 : index
    %10 = vector.load %arg4[%c0_6, %c0_7] : memref<60x256xbf16, #tpu.memory_space<vmem>>, vector<60x256xbf16>
    tpu.vector_store %arg4[%c0_6, %c0_7], %9 {strides = array<i32>} : memref<60x256xbf16, #tpu.memory_space<vmem>>, vector<60x256xbf16>,
    return
  }
  func.func @transform_0(%arg0: i32) -> (i32, i32) {
    %c0_i32 = arith.constant 0 : i32
    %c0_i32_0 = arith.constant 0 : i32
    %c0_i32_1 = arith.constant 0 : i32
    return %c0_i32, %c0_i32_0 : i32, i32
  }
  func.func @transform_1(%arg0: i32) -> (i32, i32) {
    %c0_i32 = arith.constant 0 : i32
    %c0_i32_0 = arith.constant 0 : i32
    return %c0_i32, %arg0 : i32, i32
  }
  func.func @transform_2(%arg0: i32) -> (i32, i32) {
    %c0_i32 = arith.constant 0 : i32
    %c0_i32_0 = arith.constant 0 : i32
    %c0_i32_1 = arith.constant 0 : i32
    return %c0_i32, %c0_i32_0 : i32, i32
  }
  func.func @transform_3(%arg0: i32) -> (i32, i32) {
    %c0_i32 = arith.constant 0 : i32
    %c0_i32_0 = arith.constant 0 : i32
    return %c0_i32, %arg0 : i32, i32
  }
}

module attributes {stable_mosaic.version = 11 : i64} {
  func.func @_conv_gemm_kernel(%arg0: i32, %arg1: memref<32x784xf32, #tpu.memory_space<vmem>>, %arg2: memref<784x128xbf16, #tpu.memory_space<vmem>>, %arg3: memref<32x1xf32, #tpu.memory_space<vmem>>, %arg4: memref<32x128xbf16, #tpu.memory_space<vmem>>) attributes {dimension_semantics = [#tpu.dimension_semantics<parallel>], iteration_bounds = array<i64: 1>, scalar_prefetch = 0 : i64, scratch_operands = 0 : i64, tpu.core_type = #tpu.core_type<tc>, window_params = [{pipeline_mode = #tpu.pipeline_mode<synchronous>, transform_indices = @transform_0, window_bounds = array<i64: 32, 784>}, {transform_indices = @transform_1, window_bounds = array<i64: 784, 128>}, {pipeline_mode = #tpu.pipeline_mode<synchronous>, transform_indices = @transform_2, window_bounds = array<i64: 32, 1>}, {transform_indices = @transform_3, window_bounds = array<i64: 32, 128>}]} {
    %c0 = arith.constant 0 : index
    %c0_0 = arith.constant 0 : index
    %0 = vector.load %arg1[%c0, %c0_0] : memref<32x784xf32, #tpu.memory_space<vmem>>, vector<32x784xf32>
    %c0_1 = arith.constant 0 : index
    %c0_2 = arith.constant 0 : index
    %1 = vector.load %arg2[%c0_1, %c0_2] : memref<784x128xbf16, #tpu.memory_space<vmem>>, vector<784x128xbf16>
    %2 = arith.extf %1 : vector<784x128xbf16> to vector<784x128xf32>
    %cst = arith.constant dense<0.000000e+00> : vector<32x128xf32>
    %3 = tpu.matmul %0, %2, %cst {dimension_numbers = #tpu.dot_dimension_numbers<[1], [0], [0], [1], [0, 0, 1, 1], [], []>} : vector<32x784xf32>, vector<784x128xf32>, vector<32x128xf32> -> vector<32x128xf32>
    %c0_3 = arith.constant 0 : index
    %c0_4 = arith.constant 0 : index
    %4 = vector.load %arg3[%c0_3, %c0_4] : memref<32x1xf32, #tpu.memory_space<vmem>>, vector<32x1xf32>
    %5 = vector.broadcast %4 : vector<32x1xf32> to vector<32x128xf32>
    %6 = arith.addf %3, %5 : vector<32x128xf32>
    %cst_5 = arith.constant 0.000000e+00 : f32
    %7 = vector.broadcast %cst_5 : f32 to vector<32x128xf32>
    %8 = arith.maximumf %6, %7 : vector<32x128xf32>
    %9 = arith.truncf %8 : vector<32x128xf32> to vector<32x128xbf16>
    %c0_6 = arith.constant 0 : index
    %c0_7 = arith.constant 0 : index
    %10 = vector.load %arg4[%c0_6, %c0_7] : memref<32x128xbf16, #tpu.memory_space<vmem>>, vector<32x128xbf16>
    tpu.vector_store %arg4[%c0_6, %c0_7], %9 {strides = array<i32>} : memref<32x128xbf16, #tpu.memory_space<vmem>>, vector<32x128xbf16>,
    return
  }
  func.func @transform_0(%arg0: i32) -> (i32, i32) {
    %c0_i32 = arith.constant 0 : i32
    %c0_i32_0 = arith.constant 0 : i32
    %c0_i32_1 = arith.constant 0 : i32
    return %c0_i32, %c0_i32_0 : i32, i32
  }
  func.func @transform_1(%arg0: i32) -> (i32, i32) {
    %c0_i32 = arith.constant 0 : i32
    %c0_i32_0 = arith.constant 0 : i32
    return %c0_i32, %arg0 : i32, i32
  }
  func.func @transform_2(%arg0: i32) -> (i32, i32) {
    %c0_i32 = arith.constant 0 : i32
    %c0_i32_0 = arith.constant 0 : i32
    %c0_i32_1 = arith.constant 0 : i32
    return %c0_i32, %c0_i32_0 : i32, i32
  }
  func.func @transform_3(%arg0: i32) -> (i32, i32) {
    %c0_i32 = arith.constant 0 : i32
    %c0_i32_0 = arith.constant 0 : i32
    return %c0_i32, %arg0 : i32, i32
  }
}

module attributes {stable_mosaic.version = 11 : i64} {
  func.func @_conv_gemm_kernel(%arg0: i32, %arg1: memref<16x1568xf32, #tpu.memory_space<vmem>>, %arg2: memref<1568x128xbf16, #tpu.memory_space<vmem>>, %arg3: memref<16x1xf32, #tpu.memory_space<vmem>>, %arg4: memref<16x128xbf16, #tpu.memory_space<vmem>>) attributes {dimension_semantics = [#tpu.dimension_semantics<parallel>], iteration_bounds = array<i64: 1>, scalar_prefetch = 0 : i64, scratch_operands = 0 : i64, tpu.core_type = #tpu.core_type<tc>, window_params = [{pipeline_mode = #tpu.pipeline_mode<synchronous>, transform_indices = @transform_0, window_bounds = array<i64: 16, 1568>}, {transform_indices = @transform_1, window_bounds = array<i64: 1568, 128>}, {pipeline_mode = #tpu.pipeline_mode<synchronous>, transform_indices = @transform_2, window_bounds = array<i64: 16, 1>}, {transform_indices = @transform_3, window_bounds = array<i64: 16, 128>}]} {
    %c0 = arith.constant 0 : index
    %c0_0 = arith.constant 0 : index
    %0 = vector.load %arg1[%c0, %c0_0] : memref<16x1568xf32, #tpu.memory_space<vmem>>, vector<16x1568xf32>
    %c0_1 = arith.constant 0 : index
    %c0_2 = arith.constant 0 : index
    %1 = vector.load %arg2[%c0_1, %c0_2] : memref<1568x128xbf16, #tpu.memory_space<vmem>>, vector<1568x128xbf16>
    %2 = arith.extf %1 : vector<1568x128xbf16> to vector<1568x128xf32>
    %cst = arith.constant dense<0.000000e+00> : vector<16x128xf32>
    %3 = tpu.matmul %0, %2, %cst {dimension_numbers = #tpu.dot_dimension_numbers<[1], [0], [0], [1], [0, 0, 1, 1], [], []>} : vector<16x1568xf32>, vector<1568x128xf32>, vector<16x128xf32> -> vector<16x128xf32>
    %c0_3 = arith.constant 0 : index
    %c0_4 = arith.constant 0 : index
    %4 = vector.load %arg3[%c0_3, %c0_4] : memref<16x1xf32, #tpu.memory_space<vmem>>, vector<16x1xf32>
    %5 = vector.broadcast %4 : vector<16x1xf32> to vector<16x128xf32>
    %6 = arith.addf %3, %5 : vector<16x128xf32>
    %cst_5 = arith.constant 0.000000e+00 : f32
    %7 = vector.broadcast %cst_5 : f32 to vector<16x128xf32>
    %8 = arith.maximumf %6, %7 : vector<16x128xf32>
    %9 = arith.truncf %8 : vector<16x128xf32> to vector<16x128xbf16>
    %c0_6 = arith.constant 0 : index
    %c0_7 = arith.constant 0 : index
    %10 = vector.load %arg4[%c0_6, %c0_7] : memref<16x128xbf16, #tpu.memory_space<vmem>>, vector<16x128xbf16>
    tpu.vector_store %arg4[%c0_6, %c0_7], %9 {strides = array<i32>} : memref<16x128xbf16, #tpu.memory_space<vmem>>, vector<16x128xbf16>,
    return
  }
  func.func @transform_0(%arg0: i32) -> (i32, i32) {
    %c0_i32 = arith.constant 0 : i32
    %c0_i32_0 = arith.constant 0 : i32
    %c0_i32_1 = arith.constant 0 : i32
    return %c0_i32, %c0_i32_0 : i32, i32
  }
  func.func @transform_1(%arg0: i32) -> (i32, i32) {
    %c0_i32 = arith.constant 0 : i32
    %c0_i32_0 = arith.constant 0 : i32
    return %c0_i32, %arg0 : i32, i32
  }
  func.func @transform_2(%arg0: i32) -> (i32, i32) {
    %c0_i32 = arith.constant 0 : i32
    %c0_i32_0 = arith.constant 0 : i32
    %c0_i32_1 = arith.constant 0 : i32
    return %c0_i32, %c0_i32_0 : i32, i32
  }
  func.func @transform_3(%arg0: i32) -> (i32, i32) {
    %c0_i32 = arith.constant 0 : i32
    %c0_i32_0 = arith.constant 0 : i32
    return %c0_i32, %arg0 : i32, i32
  }
}

module attributes {stable_mosaic.version = 11 : i64} {
  func.func @_conv_gemm_kernel(%arg0: i32, %arg1: memref<8x784xf32, #tpu.memory_space<vmem>>, %arg2: memref<784x128xbf16, #tpu.memory_space<vmem>>, %arg3: memref<8x1xf32, #tpu.memory_space<vmem>>, %arg4: memref<8x128xf32, #tpu.memory_space<vmem>>) attributes {dimension_semantics = [#tpu.dimension_semantics<parallel>], iteration_bounds = array<i64: 1>, scalar_prefetch = 0 : i64, scratch_operands = 0 : i64, tpu.core_type = #tpu.core_type<tc>, window_params = [{pipeline_mode = #tpu.pipeline_mode<synchronous>, transform_indices = @transform_0, window_bounds = array<i64: 8, 784>}, {transform_indices = @transform_1, window_bounds = array<i64: 784, 128>}, {pipeline_mode = #tpu.pipeline_mode<synchronous>, transform_indices = @transform_2, window_bounds = array<i64: 8, 1>}, {transform_indices = @transform_3, window_bounds = array<i64: 8, 128>}]} {
    %c0 = arith.constant 0 : index
    %c0_0 = arith.constant 0 : index
    %0 = vector.load %arg1[%c0, %c0_0] : memref<8x784xf32, #tpu.memory_space<vmem>>, vector<8x784xf32>
    %c0_1 = arith.constant 0 : index
    %c0_2 = arith.constant 0 : index
    %1 = vector.load %arg2[%c0_1, %c0_2] : memref<784x128xbf16, #tpu.memory_space<vmem>>, vector<784x128xbf16>
    %2 = arith.extf %1 : vector<784x128xbf16> to vector<784x128xf32>
    %cst = arith.constant dense<0.000000e+00> : vector<8x128xf32>
    %3 = tpu.matmul %0, %2, %cst {dimension_numbers = #tpu.dot_dimension_numbers<[1], [0], [0], [1], [0, 0, 1, 1], [], []>} : vector<8x784xf32>, vector<784x128xf32>, vector<8x128xf32> -> vector<8x128xf32>
    %c0_3 = arith.constant 0 : index
    %c0_4 = arith.constant 0 : index
    %4 = vector.load %arg3[%c0_3, %c0_4] : memref<8x1xf32, #tpu.memory_space<vmem>>, vector<8x1xf32>
    %5 = vector.broadcast %4 : vector<8x1xf32> to vector<8x128xf32>
    %6 = arith.addf %3, %5 : vector<8x128xf32>
    %cst_5 = arith.constant 0.000000e+00 : f32
    %7 = vector.broadcast %cst_5 : f32 to vector<8x128xf32>
    %8 = arith.maximumf %6, %7 : vector<8x128xf32>
    %c0_6 = arith.constant 0 : index
    %c0_7 = arith.constant 0 : index
    %9 = vector.load %arg4[%c0_6, %c0_7] : memref<8x128xf32, #tpu.memory_space<vmem>>, vector<8x128xf32>
    tpu.vector_store %arg4[%c0_6, %c0_7], %8 {strides = array<i32>} : memref<8x128xf32, #tpu.memory_space<vmem>>, vector<8x128xf32>,
    return
  }
  func.func @transform_0(%arg0: i32) -> (i32, i32) {
    %c0_i32 = arith.constant 0 : i32
    %c0_i32_0 = arith.constant 0 : i32
    %c0_i32_1 = arith.constant 0 : i32
    return %c0_i32, %c0_i32_0 : i32, i32
  }
  func.func @transform_1(%arg0: i32) -> (i32, i32) {
    %c0_i32 = arith.constant 0 : i32
    %c0_i32_0 = arith.constant 0 : i32
    return %c0_i32, %arg0 : i32, i32
  }
  func.func @transform_2(%arg0: i32) -> (i32, i32) {
    %c0_i32 = arith.constant 0 : i32
    %c0_i32_0 = arith.constant 0 : i32
    %c0_i32_1 = arith.constant 0 : i32
    return %c0_i32, %c0_i32_0 : i32, i32
  }
  func.func @transform_3(%arg0: i32) -> (i32, i32) {
    %c0_i32 = arith.constant 0 : i32
    %c0_i32_0 = arith.constant 0 : i32
    return %c0_i32, %arg0 : i32, i32
  }
}

module attributes {stable_mosaic.version = 11 : i64} {
  func.func @_conv_gemm_kernel(%arg0: i32, %arg1: memref<40x500xf32, #tpu.memory_space<vmem>>, %arg2: memref<500x128xbf16, #tpu.memory_space<vmem>>, %arg3: memref<40x1xf32, #tpu.memory_space<vmem>>, %arg4: memref<40x128xbf16, #tpu.memory_space<vmem>>) attributes {dimension_semantics = [#tpu.dimension_semantics<parallel>], iteration_bounds = array<i64: 1>, scalar_prefetch = 0 : i64, scratch_operands = 0 : i64, tpu.core_type = #tpu.core_type<tc>, window_params = [{pipeline_mode = #tpu.pipeline_mode<synchronous>, transform_indices = @transform_0, window_bounds = array<i64: 40, 500>}, {transform_indices = @transform_1, window_bounds = array<i64: 500, 128>}, {pipeline_mode = #tpu.pipeline_mode<synchronous>, transform_indices = @transform_2, window_bounds = array<i64: 40, 1>}, {transform_indices = @transform_3, window_bounds = array<i64: 40, 128>}]} {
    %c0 = arith.constant 0 : index
    %c0_0 = arith.constant 0 : index
    %0 = vector.load %arg1[%c0, %c0_0] : memref<40x500xf32, #tpu.memory_space<vmem>>, vector<40x500xf32>
    %c0_1 = arith.constant 0 : index
    %c0_2 = arith.constant 0 : index
    %1 = vector.load %arg2[%c0_1, %c0_2] : memref<500x128xbf16, #tpu.memory_space<vmem>>, vector<500x128xbf16>
    %2 = arith.extf %1 : vector<500x128xbf16> to vector<500x128xf32>
    %cst = arith.constant dense<0.000000e+00> : vector<40x128xf32>
    %3 = tpu.matmul %0, %2, %cst {dimension_numbers = #tpu.dot_dimension_numbers<[1], [0], [0], [1], [0, 0, 1, 1], [], []>} : vector<40x500xf32>, vector<500x128xf32>, vector<40x128xf32> -> vector<40x128xf32>
    %c0_3 = arith.constant 0 : index
    %c0_4 = arith.constant 0 : index
    %4 = vector.load %arg3[%c0_3, %c0_4] : memref<40x1xf32, #tpu.memory_space<vmem>>, vector<40x1xf32>
    %5 = vector.broadcast %4 : vector<40x1xf32> to vector<40x128xf32>
    %6 = arith.addf %3, %5 : vector<40x128xf32>
    %cst_5 = arith.constant 0.000000e+00 : f32
    %7 = vector.broadcast %cst_5 : f32 to vector<40x128xf32>
    %8 = arith.maximumf %6, %7 : vector<40x128xf32>
    %9 = arith.truncf %8 : vector<40x128xf32> to vector<40x128xbf16>
    %c0_6 = arith.constant 0 : index
    %c0_7 = arith.constant 0 : index
    %10 = vector.load %arg4[%c0_6, %c0_7] : memref<40x128xbf16, #tpu.memory_space<vmem>>, vector<40x128xbf16>
    tpu.vector_store %arg4[%c0_6, %c0_7], %9 {strides = array<i32>} : memref<40x128xbf16, #tpu.memory_space<vmem>>, vector<40x128xbf16>,
    return
  }
  func.func @transform_0(%arg0: i32) -> (i32, i32) {
    %c0_i32 = arith.constant 0 : i32
    %c0_i32_0 = arith.constant 0 : i32
    %c0_i32_1 = arith.constant 0 : i32
    return %c0_i32, %c0_i32_0 : i32, i32
  }
  func.func @transform_1(%arg0: i32) -> (i32, i32) {
    %c0_i32 = arith.constant 0 : i32
    %c0_i32_0 = arith.constant 0 : i32
    return %c0_i32, %arg0 : i32, i32
  }
  func.func @transform_2(%arg0: i32) -> (i32, i32) {
    %c0_i32 = arith.constant 0 : i32
    %c0_i32_0 = arith.constant 0 : i32
    %c0_i32_1 = arith.constant 0 : i32
    return %c0_i32, %c0_i32_0 : i32, i32
  }
  func.func @transform_3(%arg0: i32) -> (i32, i32) {
    %c0_i32 = arith.constant 0 : i32
    %c0_i32_0 = arith.constant 0 : i32
    return %c0_i32, %arg0 : i32, i32
  }
}

module attributes {stable_mosaic.version = 11 : i64} {
  func.func @_conv_gemm_kernel(%arg0: i32, %arg1: memref<20x1000xf32, #tpu.memory_space<vmem>>, %arg2: memref<1000x128xbf16, #tpu.memory_space<vmem>>, %arg3: memref<20x1xf32, #tpu.memory_space<vmem>>, %arg4: memref<20x128xbf16, #tpu.memory_space<vmem>>) attributes {dimension_semantics = [#tpu.dimension_semantics<parallel>], iteration_bounds = array<i64: 1>, scalar_prefetch = 0 : i64, scratch_operands = 0 : i64, tpu.core_type = #tpu.core_type<tc>, window_params = [{pipeline_mode = #tpu.pipeline_mode<synchronous>, transform_indices = @transform_0, window_bounds = array<i64: 20, 1000>}, {transform_indices = @transform_1, window_bounds = array<i64: 1000, 128>}, {pipeline_mode = #tpu.pipeline_mode<synchronous>, transform_indices = @transform_2, window_bounds = array<i64: 20, 1>}, {transform_indices = @transform_3, window_bounds = array<i64: 20, 128>}]} {
    %c0 = arith.constant 0 : index
    %c0_0 = arith.constant 0 : index
    %0 = vector.load %arg1[%c0, %c0_0] : memref<20x1000xf32, #tpu.memory_space<vmem>>, vector<20x1000xf32>
    %c0_1 = arith.constant 0 : index
    %c0_2 = arith.constant 0 : index
    %1 = vector.load %arg2[%c0_1, %c0_2] : memref<1000x128xbf16, #tpu.memory_space<vmem>>, vector<1000x128xbf16>
    %2 = arith.extf %1 : vector<1000x128xbf16> to vector<1000x128xf32>
    %cst = arith.constant dense<0.000000e+00> : vector<20x128xf32>
    %3 = tpu.matmul %0, %2, %cst {dimension_numbers = #tpu.dot_dimension_numbers<[1], [0], [0], [1], [0, 0, 1, 1], [], []>} : vector<20x1000xf32>, vector<1000x128xf32>, vector<20x128xf32> -> vector<20x128xf32>
    %c0_3 = arith.constant 0 : index
    %c0_4 = arith.constant 0 : index
    %4 = vector.load %arg3[%c0_3, %c0_4] : memref<20x1xf32, #tpu.memory_space<vmem>>, vector<20x1xf32>
    %5 = vector.broadcast %4 : vector<20x1xf32> to vector<20x128xf32>
    %6 = arith.addf %3, %5 : vector<20x128xf32>
    %cst_5 = arith.constant 0.000000e+00 : f32
    %7 = vector.broadcast %cst_5 : f32 to vector<20x128xf32>
    %8 = arith.maximumf %6, %7 : vector<20x128xf32>
    %9 = arith.truncf %8 : vector<20x128xf32> to vector<20x128xbf16>
    %c0_6 = arith.constant 0 : index
    %c0_7 = arith.constant 0 : index
    %10 = vector.load %arg4[%c0_6, %c0_7] : memref<20x128xbf16, #tpu.memory_space<vmem>>, vector<20x128xbf16>
    tpu.vector_store %arg4[%c0_6, %c0_7], %9 {strides = array<i32>} : memref<20x128xbf16, #tpu.memory_space<vmem>>, vector<20x128xbf16>,
    return
  }
  func.func @transform_0(%arg0: i32) -> (i32, i32) {
    %c0_i32 = arith.constant 0 : i32
    %c0_i32_0 = arith.constant 0 : i32
    %c0_i32_1 = arith.constant 0 : i32
    return %c0_i32, %c0_i32_0 : i32, i32
  }
  func.func @transform_1(%arg0: i32) -> (i32, i32) {
    %c0_i32 = arith.constant 0 : i32
    %c0_i32_0 = arith.constant 0 : i32
    return %c0_i32, %arg0 : i32, i32
  }
  func.func @transform_2(%arg0: i32) -> (i32, i32) {
    %c0_i32 = arith.constant 0 : i32
    %c0_i32_0 = arith.constant 0 : i32
    %c0_i32_1 = arith.constant 0 : i32
    return %c0_i32, %c0_i32_0 : i32, i32
  }
  func.func @transform_3(%arg0: i32) -> (i32, i32) {
    %c0_i32 = arith.constant 0 : i32
    %c0_i32_0 = arith.constant 0 : i32
    return %c0_i32, %arg0 : i32, i32
  }
}

module attributes {stable_mosaic.version = 11 : i64} {
  func.func @_conv_gemm_kernel(%arg0: i32, %arg1: memref<10x500xf32, #tpu.memory_space<vmem>>, %arg2: memref<500x128xbf16, #tpu.memory_space<vmem>>, %arg3: memref<10x1xf32, #tpu.memory_space<vmem>>, %arg4: memref<10x128xf32, #tpu.memory_space<vmem>>) attributes {dimension_semantics = [#tpu.dimension_semantics<parallel>], iteration_bounds = array<i64: 1>, scalar_prefetch = 0 : i64, scratch_operands = 0 : i64, tpu.core_type = #tpu.core_type<tc>, window_params = [{pipeline_mode = #tpu.pipeline_mode<synchronous>, transform_indices = @transform_0, window_bounds = array<i64: 10, 500>}, {transform_indices = @transform_1, window_bounds = array<i64: 500, 128>}, {pipeline_mode = #tpu.pipeline_mode<synchronous>, transform_indices = @transform_2, window_bounds = array<i64: 10, 1>}, {transform_indices = @transform_3, window_bounds = array<i64: 10, 128>}]} {
    %c0 = arith.constant 0 : index
    %c0_0 = arith.constant 0 : index
    %0 = vector.load %arg1[%c0, %c0_0] : memref<10x500xf32, #tpu.memory_space<vmem>>, vector<10x500xf32>
    %c0_1 = arith.constant 0 : index
    %c0_2 = arith.constant 0 : index
    %1 = vector.load %arg2[%c0_1, %c0_2] : memref<500x128xbf16, #tpu.memory_space<vmem>>, vector<500x128xbf16>
    %2 = arith.extf %1 : vector<500x128xbf16> to vector<500x128xf32>
    %cst = arith.constant dense<0.000000e+00> : vector<10x128xf32>
    %3 = tpu.matmul %0, %2, %cst {dimension_numbers = #tpu.dot_dimension_numbers<[1], [0], [0], [1], [0, 0, 1, 1], [], []>} : vector<10x500xf32>, vector<500x128xf32>, vector<10x128xf32> -> vector<10x128xf32>
    %c0_3 = arith.constant 0 : index
    %c0_4 = arith.constant 0 : index
    %4 = vector.load %arg3[%c0_3, %c0_4] : memref<10x1xf32, #tpu.memory_space<vmem>>, vector<10x1xf32>
    %5 = vector.broadcast %4 : vector<10x1xf32> to vector<10x128xf32>
    %6 = arith.addf %3, %5 : vector<10x128xf32>
    %cst_5 = arith.constant 0.000000e+00 : f32
    %7 = vector.broadcast %cst_5 : f32 to vector<10x128xf32>
    %8 = arith.maximumf %6, %7 : vector<10x128xf32>
    %c0_6 = arith.constant 0 : index
    %c0_7 = arith.constant 0 : index
    %9 = vector.load %arg4[%c0_6, %c0_7] : memref<10x128xf32, #tpu.memory_space<vmem>>, vector<10x128xf32>
    tpu.vector_store %arg4[%c0_6, %c0_7], %8 {strides = array<i32>} : memref<10x128xf32, #tpu.memory_space<vmem>>, vector<10x128xf32>,
    return
  }
  func.func @transform_0(%arg0: i32) -> (i32, i32) {
    %c0_i32 = arith.constant 0 : i32
    %c0_i32_0 = arith.constant 0 : i32
    %c0_i32_1 = arith.constant 0 : i32
    return %c0_i32, %c0_i32_0 : i32, i32
  }
  func.func @transform_1(%arg0: i32) -> (i32, i32) {
    %c0_i32 = arith.constant 0 : i32
    %c0_i32_0 = arith.constant 0 : i32
    return %c0_i32, %arg0 : i32, i32
  }
  func.func @transform_2(%arg0: i32) -> (i32, i32) {
    %c0_i32 = arith.constant 0 : i32
    %c0_i32_0 = arith.constant 0 : i32
    %c0_i32_1 = arith.constant 0 : i32
    return %c0_i32, %c0_i32_0 : i32, i32
  }
  func.func @transform_3(%arg0: i32) -> (i32, i32) {
    %c0_i32 = arith.constant 0 : i32
    %c0_i32_0 = arith.constant 0 : i32
    return %c0_i32, %arg0 : i32, i32
  }
}

module attributes {stable_mosaic.version = 11 : i64} {
  func.func @_conv_gemm_kernel(%arg0: i32, %arg1: memref<48x216xf32, #tpu.memory_space<vmem>>, %arg2: memref<216x128xbf16, #tpu.memory_space<vmem>>, %arg3: memref<48x1xf32, #tpu.memory_space<vmem>>, %arg4: memref<48x128xbf16, #tpu.memory_space<vmem>>) attributes {dimension_semantics = [#tpu.dimension_semantics<parallel>], iteration_bounds = array<i64: 1>, scalar_prefetch = 0 : i64, scratch_operands = 0 : i64, tpu.core_type = #tpu.core_type<tc>, window_params = [{pipeline_mode = #tpu.pipeline_mode<synchronous>, transform_indices = @transform_0, window_bounds = array<i64: 48, 216>}, {transform_indices = @transform_1, window_bounds = array<i64: 216, 128>}, {pipeline_mode = #tpu.pipeline_mode<synchronous>, transform_indices = @transform_2, window_bounds = array<i64: 48, 1>}, {transform_indices = @transform_3, window_bounds = array<i64: 48, 128>}]} {
    %c0 = arith.constant 0 : index
    %c0_0 = arith.constant 0 : index
    %0 = vector.load %arg1[%c0, %c0_0] : memref<48x216xf32, #tpu.memory_space<vmem>>, vector<48x216xf32>
    %c0_1 = arith.constant 0 : index
    %c0_2 = arith.constant 0 : index
    %1 = vector.load %arg2[%c0_1, %c0_2] : memref<216x128xbf16, #tpu.memory_space<vmem>>, vector<216x128xbf16>
    %2 = arith.extf %1 : vector<216x128xbf16> to vector<216x128xf32>
    %cst = arith.constant dense<0.000000e+00> : vector<48x128xf32>
    %3 = tpu.matmul %0, %2, %cst {dimension_numbers = #tpu.dot_dimension_numbers<[1], [0], [0], [1], [0, 0, 1, 1], [], []>} : vector<48x216xf32>, vector<216x128xf32>, vector<48x128xf32> -> vector<48x128xf32>
    %c0_3 = arith.constant 0 : index
    %c0_4 = arith.constant 0 : index
    %4 = vector.load %arg3[%c0_3, %c0_4] : memref<48x1xf32, #tpu.memory_space<vmem>>, vector<48x1xf32>
    %5 = vector.broadcast %4 : vector<48x1xf32> to vector<48x128xf32>
    %6 = arith.addf %3, %5 : vector<48x128xf32>
    %cst_5 = arith.constant 0.000000e+00 : f32
    %7 = vector.broadcast %cst_5 : f32 to vector<48x128xf32>
    %8 = arith.maximumf %6, %7 : vector<48x128xf32>
    %9 = arith.truncf %8 : vector<48x128xf32> to vector<48x128xbf16>
    %c0_6 = arith.constant 0 : index
    %c0_7 = arith.constant 0 : index
    %10 = vector.load %arg4[%c0_6, %c0_7] : memref<48x128xbf16, #tpu.memory_space<vmem>>, vector<48x128xbf16>
    tpu.vector_store %arg4[%c0_6, %c0_7], %9 {strides = array<i32>} : memref<48x128xbf16, #tpu.memory_space<vmem>>, vector<48x128xbf16>,
    return
  }
  func.func @transform_0(%arg0: i32) -> (i32, i32) {
    %c0_i32 = arith.constant 0 : i32
    %c0_i32_0 = arith.constant 0 : i32
    %c0_i32_1 = arith.constant 0 : i32
    return %c0_i32, %c0_i32_0 : i32, i32
  }
  func.func @transform_1(%arg0: i32) -> (i32, i32) {
    %c0_i32 = arith.constant 0 : i32
    %c0_i32_0 = arith.constant 0 : i32
    return %c0_i32, %arg0 : i32, i32
  }
  func.func @transform_2(%arg0: i32) -> (i32, i32) {
    %c0_i32 = arith.constant 0 : i32
    %c0_i32_0 = arith.constant 0 : i32
    %c0_i32_1 = arith.constant 0 : i32
    return %c0_i32, %c0_i32_0 : i32, i32
  }
  func.func @transform_3(%arg0: i32) -> (i32, i32) {
    %c0_i32 = arith.constant 0 : i32
    %c0_i32_0 = arith.constant 0 : i32
    return %c0_i32, %arg0 : i32, i32
  }
}

module attributes {stable_mosaic.version = 11 : i64} {
  func.func @_conv_gemm_kernel(%arg0: i32, %arg1: memref<24x432xf32, #tpu.memory_space<vmem>>, %arg2: memref<432x128xbf16, #tpu.memory_space<vmem>>, %arg3: memref<24x1xf32, #tpu.memory_space<vmem>>, %arg4: memref<24x128xbf16, #tpu.memory_space<vmem>>) attributes {dimension_semantics = [#tpu.dimension_semantics<parallel>], iteration_bounds = array<i64: 1>, scalar_prefetch = 0 : i64, scratch_operands = 0 : i64, tpu.core_type = #tpu.core_type<tc>, window_params = [{pipeline_mode = #tpu.pipeline_mode<synchronous>, transform_indices = @transform_0, window_bounds = array<i64: 24, 432>}, {transform_indices = @transform_1, window_bounds = array<i64: 432, 128>}, {pipeline_mode = #tpu.pipeline_mode<synchronous>, transform_indices = @transform_2, window_bounds = array<i64: 24, 1>}, {transform_indices = @transform_3, window_bounds = array<i64: 24, 128>}]} {
    %c0 = arith.constant 0 : index
    %c0_0 = arith.constant 0 : index
    %0 = vector.load %arg1[%c0, %c0_0] : memref<24x432xf32, #tpu.memory_space<vmem>>, vector<24x432xf32>
    %c0_1 = arith.constant 0 : index
    %c0_2 = arith.constant 0 : index
    %1 = vector.load %arg2[%c0_1, %c0_2] : memref<432x128xbf16, #tpu.memory_space<vmem>>, vector<432x128xbf16>
    %2 = arith.extf %1 : vector<432x128xbf16> to vector<432x128xf32>
    %cst = arith.constant dense<0.000000e+00> : vector<24x128xf32>
    %3 = tpu.matmul %0, %2, %cst {dimension_numbers = #tpu.dot_dimension_numbers<[1], [0], [0], [1], [0, 0, 1, 1], [], []>} : vector<24x432xf32>, vector<432x128xf32>, vector<24x128xf32> -> vector<24x128xf32>
    %c0_3 = arith.constant 0 : index
    %c0_4 = arith.constant 0 : index
    %4 = vector.load %arg3[%c0_3, %c0_4] : memref<24x1xf32, #tpu.memory_space<vmem>>, vector<24x1xf32>
    %5 = vector.broadcast %4 : vector<24x1xf32> to vector<24x128xf32>
    %6 = arith.addf %3, %5 : vector<24x128xf32>
    %cst_5 = arith.constant 0.000000e+00 : f32
    %7 = vector.broadcast %cst_5 : f32 to vector<24x128xf32>
    %8 = arith.maximumf %6, %7 : vector<24x128xf32>
    %9 = arith.truncf %8 : vector<24x128xf32> to vector<24x128xbf16>
    %c0_6 = arith.constant 0 : index
    %c0_7 = arith.constant 0 : index
    %10 = vector.load %arg4[%c0_6, %c0_7] : memref<24x128xbf16, #tpu.memory_space<vmem>>, vector<24x128xbf16>
    tpu.vector_store %arg4[%c0_6, %c0_7], %9 {strides = array<i32>} : memref<24x128xbf16, #tpu.memory_space<vmem>>, vector<24x128xbf16>,
    return
  }
  func.func @transform_0(%arg0: i32) -> (i32, i32) {
    %c0_i32 = arith.constant 0 : i32
    %c0_i32_0 = arith.constant 0 : i32
    %c0_i32_1 = arith.constant 0 : i32
    return %c0_i32, %c0_i32_0 : i32, i32
  }
  func.func @transform_1(%arg0: i32) -> (i32, i32) {
    %c0_i32 = arith.constant 0 : i32
    %c0_i32_0 = arith.constant 0 : i32
    return %c0_i32, %arg0 : i32, i32
  }
  func.func @transform_2(%arg0: i32) -> (i32, i32) {
    %c0_i32 = arith.constant 0 : i32
    %c0_i32_0 = arith.constant 0 : i32
    %c0_i32_1 = arith.constant 0 : i32
    return %c0_i32, %c0_i32_0 : i32, i32
  }
  func.func @transform_3(%arg0: i32) -> (i32, i32) {
    %c0_i32 = arith.constant 0 : i32
    %c0_i32_0 = arith.constant 0 : i32
    return %c0_i32, %arg0 : i32, i32
  }
}

module attributes {stable_mosaic.version = 11 : i64} {
  func.func @_conv_gemm_kernel(%arg0: i32, %arg1: memref<12x216xf32, #tpu.memory_space<vmem>>, %arg2: memref<216x128xbf16, #tpu.memory_space<vmem>>, %arg3: memref<12x1xf32, #tpu.memory_space<vmem>>, %arg4: memref<12x128xf32, #tpu.memory_space<vmem>>) attributes {dimension_semantics = [#tpu.dimension_semantics<parallel>], iteration_bounds = array<i64: 1>, scalar_prefetch = 0 : i64, scratch_operands = 0 : i64, tpu.core_type = #tpu.core_type<tc>, window_params = [{pipeline_mode = #tpu.pipeline_mode<synchronous>, transform_indices = @transform_0, window_bounds = array<i64: 12, 216>}, {transform_indices = @transform_1, window_bounds = array<i64: 216, 128>}, {pipeline_mode = #tpu.pipeline_mode<synchronous>, transform_indices = @transform_2, window_bounds = array<i64: 12, 1>}, {transform_indices = @transform_3, window_bounds = array<i64: 12, 128>}]} {
    %c0 = arith.constant 0 : index
    %c0_0 = arith.constant 0 : index
    %0 = vector.load %arg1[%c0, %c0_0] : memref<12x216xf32, #tpu.memory_space<vmem>>, vector<12x216xf32>
    %c0_1 = arith.constant 0 : index
    %c0_2 = arith.constant 0 : index
    %1 = vector.load %arg2[%c0_1, %c0_2] : memref<216x128xbf16, #tpu.memory_space<vmem>>, vector<216x128xbf16>
    %2 = arith.extf %1 : vector<216x128xbf16> to vector<216x128xf32>
    %cst = arith.constant dense<0.000000e+00> : vector<12x128xf32>
    %3 = tpu.matmul %0, %2, %cst {dimension_numbers = #tpu.dot_dimension_numbers<[1], [0], [0], [1], [0, 0, 1, 1], [], []>} : vector<12x216xf32>, vector<216x128xf32>, vector<12x128xf32> -> vector<12x128xf32>
    %c0_3 = arith.constant 0 : index
    %c0_4 = arith.constant 0 : index
    %4 = vector.load %arg3[%c0_3, %c0_4] : memref<12x1xf32, #tpu.memory_space<vmem>>, vector<12x1xf32>
    %5 = vector.broadcast %4 : vector<12x1xf32> to vector<12x128xf32>
    %6 = arith.addf %3, %5 : vector<12x128xf32>
    %cst_5 = arith.constant 0.000000e+00 : f32
    %7 = vector.broadcast %cst_5 : f32 to vector<12x128xf32>
    %8 = arith.maximumf %6, %7 : vector<12x128xf32>
    %c0_6 = arith.constant 0 : index
    %c0_7 = arith.constant 0 : index
    %9 = vector.load %arg4[%c0_6, %c0_7] : memref<12x128xf32, #tpu.memory_space<vmem>>, vector<12x128xf32>
    tpu.vector_store %arg4[%c0_6, %c0_7], %8 {strides = array<i32>} : memref<12x128xf32, #tpu.memory_space<vmem>>, vector<12x128xf32>,
    return
  }
  func.func @transform_0(%arg0: i32) -> (i32, i32) {
    %c0_i32 = arith.constant 0 : i32
    %c0_i32_0 = arith.constant 0 : i32
    %c0_i32_1 = arith.constant 0 : i32
    return %c0_i32, %c0_i32_0 : i32, i32
  }
  func.func @transform_1(%arg0: i32) -> (i32, i32) {
    %c0_i32 = arith.constant 0 : i32
    %c0_i32_0 = arith.constant 0 : i32
    return %c0_i32, %arg0 : i32, i32
  }
  func.func @transform_2(%arg0: i32) -> (i32, i32) {
    %c0_i32 = arith.constant 0 : i32
    %c0_i32_0 = arith.constant 0 : i32
    %c0_i32_1 = arith.constant 0 : i32
    return %c0_i32, %c0_i32_0 : i32, i32
  }
  func.func @transform_3(%arg0: i32) -> (i32, i32) {
    %c0_i32 = arith.constant 0 : i32
    %c0_i32_0 = arith.constant 0 : i32
    return %c0_i32, %arg0 : i32, i32
  }
}

module attributes {stable_mosaic.version = 11 : i64} {
  func.func @_fuse_1x1_kernel(%arg0: i32, %arg1: memref<30x128xf32, #tpu.memory_space<vmem>>, %arg2: memref<30x1xf32, #tpu.memory_space<vmem>>, %arg3: memref<1x1xf32, #tpu.memory_space<vmem>>, %arg4: memref<1x128xf32, #tpu.memory_space<vmem>>) attributes {dimension_semantics = [#tpu.dimension_semantics<parallel>], iteration_bounds = array<i64: 1>, scalar_prefetch = 0 : i64, scratch_operands = 0 : i64, tpu.core_type = #tpu.core_type<tc>, window_params = [{transform_indices = @transform_0, window_bounds = array<i64: 30, 128>}, {pipeline_mode = #tpu.pipeline_mode<synchronous>, transform_indices = @transform_1, window_bounds = array<i64: 30, 1>}, {pipeline_mode = #tpu.pipeline_mode<synchronous>, transform_indices = @transform_2, window_bounds = array<i64: 1, 1>}, {transform_indices = @transform_3, window_bounds = array<i64: 1, 128>}]} {
    %c0 = arith.constant 0 : index
    %c0_0 = arith.constant 0 : index
    %0 = vector.load %arg1[%c0, %c0_0] : memref<30x128xf32, #tpu.memory_space<vmem>>, vector<30x128xf32>
    %c0_1 = arith.constant 0 : index
    %c0_2 = arith.constant 0 : index
    %1 = vector.load %arg2[%c0_1, %c0_2] : memref<30x1xf32, #tpu.memory_space<vmem>>, vector<30x1xf32>
    %2 = vector.broadcast %1 : vector<30x1xf32> to vector<30x128xf32>
    %3 = arith.mulf %0, %2 : vector<30x128xf32>
    %cst = arith.constant dense<0.000000e+00> : vector<128xf32>
    %4 = vector.multi_reduction <add>, %3, %cst [0] : vector<30x128xf32> to vector<128xf32>
    %5 = vector.shape_cast %4 : vector<128xf32> to vector<1x128xf32>
    %c0_3 = arith.constant 0 : index
    %c0_4 = arith.constant 0 : index
    %6 = vector.load %arg3[%c0_3, %c0_4] : memref<1x1xf32, #tpu.memory_space<vmem>>, vector<1x1xf32>
    %7 = vector.broadcast %6 : vector<1x1xf32> to vector<1x128xf32>
    %8 = arith.addf %5, %7 : vector<1x128xf32>
    %cst_5 = arith.constant 0.000000e+00 : f32
    %9 = vector.broadcast %cst_5 : f32 to vector<1x128xf32>
    %10 = arith.maximumf %8, %9 : vector<1x128xf32>
    %c0_6 = arith.constant 0 : index
    %c0_7 = arith.constant 0 : index
    %11 = vector.load %arg4[%c0_6, %c0_7] : memref<1x128xf32, #tpu.memory_space<vmem>>, vector<1x128xf32>
    tpu.vector_store %arg4[%c0_6, %c0_7], %10 {strides = array<i32>} : memref<1x128xf32, #tpu.memory_space<vmem>>, vector<1x128xf32>,
    return
  }
  func.func @transform_0(%arg0: i32) -> (i32, i32) {
    %c0_i32 = arith.constant 0 : i32
    %c0_i32_0 = arith.constant 0 : i32
    return %c0_i32, %arg0 : i32, i32
  }
  func.func @transform_1(%arg0: i32) -> (i32, i32) {
    %c0_i32 = arith.constant 0 : i32
    %c0_i32_0 = arith.constant 0 : i32
    %c0_i32_1 = arith.constant 0 : i32
    return %c0_i32, %c0_i32_0 : i32, i32
  }
  func.func @transform_2(%arg0: i32) -> (i32, i32) {
    %c0_i32 = arith.constant 0 : i32
    %c0_i32_0 = arith.constant 0 : i32
    %c0_i32_1 = arith.constant 0 : i32
    return %c0_i32, %c0_i32_0 : i32, i32
  }
  func.func @transform_3(%arg0: i32) -> (i32, i32) {
    %c0_i32 = arith.constant 0 : i32
    %c0_i32_0 = arith.constant 0 : i32
    return %c0_i32, %arg0 : i32, i32
  }
}

module attributes {stable_mosaic.version = 11 : i64} {
  func.func @_mse_kernel(%arg0: i32, %arg1: memref<1x128xf32, #tpu.memory_space<vmem>>, %arg2: memref<1x128xf32, #tpu.memory_space<vmem>>, %arg3: memref<1x1xf32, #tpu.memory_space<vmem>>, %arg4: memref<1x1xf32, #tpu.memory_space<vmem>>) attributes {dimension_semantics = [#tpu.dimension_semantics<arbitrary>], iteration_bounds = array<i64: 1>, scalar_prefetch = 0 : i64, scratch_operands = 1 : i64, tpu.core_type = #tpu.core_type<tc>, window_params = [{transform_indices = @transform_0, window_bounds = array<i64: 1, 128>}, {transform_indices = @transform_1, window_bounds = array<i64: 1, 128>}, {pipeline_mode = #tpu.pipeline_mode<synchronous>, transform_indices = @transform_2, window_bounds = array<i64: 1, 1>}]} {
    %c0_i32 = arith.constant 0 : i32
    %0 = arith.cmpi eq, %arg0, %c0_i32 : i32
    %1 = arith.extui %0 : i1 to i32
    %c0_i32_0 = arith.constant 0 : i32
    %2 = arith.cmpi ne, %1, %c0_i32_0 : i32
    scf.if %2 {
      %cst_10 = arith.constant 0.000000e+00 : f32
      %18 = vector.broadcast %cst_10 : f32 to vector<1x1xf32>
      %c0_11 = arith.constant 0 : index
      %c0_12 = arith.constant 0 : index
      %19 = vector.load %arg4[%c0_11, %c0_12] : memref<1x1xf32, #tpu.memory_space<vmem>>, vector<1x1xf32>
      tpu.vector_store %arg4[%c0_11, %c0_12], %18 {strides = array<i32>} : memref<1x1xf32, #tpu.memory_space<vmem>>, vector<1x1xf32>,
    } else {
    }
    %c0 = arith.constant 0 : index
    %c0_1 = arith.constant 0 : index
    %3 = vector.load %arg1[%c0, %c0_1] : memref<1x128xf32, #tpu.memory_space<vmem>>, vector<1x128xf32>
    %c0_2 = arith.constant 0 : index
    %c0_3 = arith.constant 0 : index
    %4 = vector.load %arg2[%c0_2, %c0_3] : memref<1x128xf32, #tpu.memory_space<vmem>>, vector<1x128xf32>
    %5 = arith.subf %3, %4 : vector<1x128xf32>
    %c0_4 = arith.constant 0 : index
    %c0_5 = arith.constant 0 : index
    %6 = vector.load %arg4[%c0_4, %c0_5] : memref<1x1xf32, #tpu.memory_space<vmem>>, vector<1x1xf32>
    %7 = arith.mulf %5, %5 : vector<1x128xf32>
    %8 = vector.shape_cast %7 : vector<1x128xf32> to vector<1x1x128xf32>
    %cst = arith.constant dense<0.000000e+00> : vector<1xf32>
    %9 = vector.multi_reduction <add>, %8, %cst [1, 2] : vector<1x1x128xf32> to vector<1xf32>
    %10 = vector.shape_cast %9 : vector<1xf32> to vector<1x1x1xf32>
    %11 = vector.extract %10[0, 0, 0] : f32 from vector<1x1x1xf32>
    %12 = vector.broadcast %11 : f32 to vector<1x1xf32>
    %13 = arith.addf %6, %12 : vector<1x1xf32>
    %c0_6 = arith.constant 0 : index
    %c0_7 = arith.constant 0 : index
    %14 = vector.load %arg4[%c0_6, %c0_7] : memref<1x1xf32, #tpu.memory_space<vmem>>, vector<1x1xf32>
    tpu.vector_store %arg4[%c0_6, %c0_7], %13 {strides = array<i32>} : memref<1x1xf32, #tpu.memory_space<vmem>>, vector<1x1xf32>,
    %c0_i32_8 = arith.constant 0 : i32
    %15 = arith.cmpi eq, %arg0, %c0_i32_8 : i32
    %16 = arith.extui %15 : i1 to i32
    %c0_i32_9 = arith.constant 0 : i32
    %17 = arith.cmpi ne, %16, %c0_i32_9 : i32
    scf.if %17 {
      %c0_10 = arith.constant 0 : index
      %c0_11 = arith.constant 0 : index
      %18 = vector.load %arg4[%c0_10, %c0_11] : memref<1x1xf32, #tpu.memory_space<vmem>>, vector<1x1xf32>
      %cst_12 = arith.constant 3.125000e-02 : f32
      %19 = vector.broadcast %cst_12 : f32 to vector<1x1xf32>
      %20 = arith.mulf %18, %19 : vector<1x1xf32>
      %c0_13 = arith.constant 0 : index
      %c0_14 = arith.constant 0 : index
      %21 = vector.load %arg3[%c0_13, %c0_14] : memref<1x1xf32, #tpu.memory_space<vmem>>, vector<1x1xf32>
      tpu.vector_store %arg3[%c0_13, %c0_14], %20 {strides = array<i32>} : memref<1x1xf32, #tpu.memory_space<vmem>>, vector<1x1xf32>,
    } else {
    }
    return
  }
  func.func @transform_0(%arg0: i32) -> (i32, i32) {
    %c0_i32 = arith.constant 0 : i32
    %c0_i32_0 = arith.constant 0 : i32
    return %c0_i32, %arg0 : i32, i32
  }
  func.func @transform_1(%arg0: i32) -> (i32, i32) {
    %c0_i32 = arith.constant 0 : i32
    %c0_i32_0 = arith.constant 0 : i32
    return %c0_i32, %arg0 : i32, i32
  }
  func.func @transform_2(%arg0: i32) -> (i32, i32) {
    %c0_i32 = arith.constant 0 : i32
    %c0_i32_0 = arith.constant 0 : i32
    %c0_i32_1 = arith.constant 0 : i32
    return %c0_i32, %c0_i32_0 : i32, i32
  }
}

</mosaic_0001>

<llo_original>
// kernel: crowd_counter_forward.12
$region0: #{crowd_counter_forward.12}
  #allocation0 [shape = 'u32[]', space=smem, size = 0x4, offset = 0x4, fixed_abs, tag = 'smem constant byte address 0x4 - core index']
  #allocation1 [shape = 'u32[72,128]{1,0:T(1,128)}', space=vmem, size = 0x9000, scoped, tag = 'internal scratch']
  %s0 = inlined_call_operand.vmem [shape: f32[60,81], index: 0, kind: input, shape index: {}]
  %s1 = inlined_call_operand.vmem [shape: bf16[81,512], index: 1, kind: input, shape index: {}]
  %s2 = inlined_call_operand.vmem [shape: f32[60,1], index: 2, kind: input, shape index: {}]
  %s3 = inlined_call_operand.vmem [shape: bf16[60,512], index: 3, kind: output, shape index: {}]
  %s4 = sld [smem:[#allocation0]]
  $region117: #{crowd_counter_forward.12} parent=0
    _
  %s6 = ssub.s32 1, %s4
  %s7 = scalar_select 0, %s6, %s4
  $region1: #{crowd_counter_forward.12} parent=0
    #allocation2 [shape = 'u8[90112]{0}', space=vmem, size = 0x16000, scoped, tag = 'input window, operand 1']
    #allocation3 [shape = 'u8[65536]{0}', space=vmem, size = 0x10000, scoped, tag = 'output window, operand 0']
    loop: start=0, step=1, limit=4
    $region2: #{crowd_counter_forward.12} parent=1 // loop_pre_header
      _
    $region3: #{crowd_counter_forward.12} parent=1 // loop_header
      %s9 = sphi 0, %s13
      %p10 = scmp.ge.s32.totalorder %s9, 4
      %s17 = sphi 0, %s17
      %s19 = sphi 0, %s17
      %s20 = sphi 0, %s19
      %s34 = sphi 0, %s20
      %s40 = sphi 0, %s42
      %s43 = sphi 0, %s40
      %s44 = sphi 0, %s43
      %s60 = sphi 0, %s44
      %s64 = sphi 0, %s64
      %s66 = sphi 0, %s64
      %s67 = sphi 0, %s66
      %s81 = sphi 0, %s67
      %s87 = sphi 0, %s89
      %s90 = sphi 0, %s87
      %s91 = sphi 0, %s90
      %s107 = sphi 0, %s91
    $region4: #{crowd_counter_forward.12} parent=1 // loop_header_branch
      %12 = sbr.rel (%p10) target = $region8
    $region5: #{crowd_counter_forward.12} parent=1 // loop_body
      %s14 = ssub.s32 %s9, 1
      %s15 = ssub.s32 %s9, 2
      %s16 = sadd.s32 %s9, 1
      %s18 = sadd.s32 %s17, 1
      %p21 = scmp.eq.s32.totalorder %s9, 1
      %p22 = scmp.ne.s32.totalorder %s17, %s19
      %p23 = scmp.eq.s32.totalorder %s9, 0
      %p24 = por %p22, %p23
      %p25 = scmp.ne.s32.totalorder %s17, %s19
      %p26 = scmp.eq.s32.totalorder %s14, 1
      %p27 = por %p25, %p26
      %p28 = scmp.ne.s32.totalorder %s19, %s20
      %p29 = scmp.eq.s32.totalorder %s14, 0
      %p30 = por %p28, %p29
      %p31 = scmp.ne.s32.totalorder %s19, %s20
      %p32 = scmp.eq.s32.totalorder %s15, 1
      %p33 = por %p31, %p32
      %p35 = scmp.ne.s32.totalorder %s20, %s34
      %p36 = scmp.eq.s32.totalorder %s15, 0
      %p37 = por %p35, %p36
      %s38 = ssub.s32 %s9, %s16
      %p39 = scmp.eq.s32.totalorder %s38, 0
      %s41 = sadd.s32 %s40, 1
      %s42 = scalar_select %p39, %s40, %s41
      %p45 = pneg %p39
      %p46 = scmp.eq.s32.totalorder %s9, 1
      %p47 = por %p45, %p46
      %p48 = scmp.ne.s32.totalorder %s40, %s43
      %p49 = scmp.eq.s32.totalorder %s9, 0
      %p50 = por %p48, %p49
      %p51 = scmp.ne.s32.totalorder %s40, %s43
      %p52 = scmp.eq.s32.totalorder %s14, 1
      %p53 = por %p51, %p52
      %p54 = scmp.ne.s32.totalorder %s43, %s44
      %p55 = scmp.eq.s32.totalorder %s14, 0
      %p56 = por %p54, %p55
      %p57 = scmp.ne.s32.totalorder %s43, %s44
      %p58 = scmp.eq.s32.totalorder %s15, 1
      %p59 = por %p57, %p58
      %p61 = scmp.ne.s32.totalorder %s44, %s60
      %p62 = scmp.eq.s32.totalorder %s15, 0
      %p63 = por %p61, %p62
      %s65 = sadd.s32 %s64, 1
      %p68 = scmp.eq.s32.totalorder %s9, 1
      %p69 = scmp.ne.s32.totalorder %s64, %s66
      %p70 = scmp.eq.s32.totalorder %s9, 0
      %p71 = por %p69, %p70
      %p72 = scmp.ne.s32.totalorder %s64, %s66
      %p73 = scmp.eq.s32.totalorder %s14, 1
      %p74 = por %p72, %p73
      %p75 = scmp.ne.s32.totalorder %s66, %s67
      %p76 = scmp.eq.s32.totalorder %s14, 0
      %p77 = por %p75, %p76
      %p78 = scmp.ne.s32.totalorder %s66, %s67
      %p79 = scmp.eq.s32.totalorder %s15, 1
      %p80 = por %p78, %p79
      %p82 = scmp.ne.s32.totalorder %s67, %s81
      %p83 = scmp.eq.s32.totalorder %s15, 0
      %p84 = por %p82, %p83
      %s85 = ssub.s32 %s9, %s16
      %p86 = scmp.eq.s32.totalorder %s85, 0
      %s88 = sadd.s32 %s87, 1
      %s89 = scalar_select %p86, %s87, %s88
      %p92 = pneg %p86
      %p93 = scmp.eq.s32.totalorder %s9, 1
      %p94 = por %p92, %p93
      %p95 = scmp.ne.s32.totalorder %s87, %s90
      %p96 = scmp.eq.s32.totalorder %s9, 0
      %p97 = por %p95, %p96
      %p98 = scmp.ne.s32.totalorder %s87, %s90
      %p99 = scmp.eq.s32.totalorder %s14, 1
      %p100 = por %p98, %p99
      %p101 = scmp.ne.s32.totalorder %s90, %s91
      %p102 = scmp.eq.s32.totalorder %s14, 0
      %p103 = por %p101, %p102
      %p104 = scmp.ne.s32.totalorder %s90, %s91
      %p105 = scmp.eq.s32.totalorder %s15, 1
      %p106 = por %p104, %p105
      %p108 = scmp.ne.s32.totalorder %s91, %s107
      %p109 = scmp.eq.s32.totalorder %s15, 0
      %p110 = por %p108, %p109
      %p111 = scmp.le.s32.totalorder 1, %s9
      %p112 = scmp.lt.s32.totalorder %s9, 3
      %p113 = pnand %p111, %p112
      %p114 = pneg %p113
      // Predicated region
      $region9: #{crowd_counter_forward.12} parent=5 // pred_check
        _
      $region10: #{crowd_counter_forward.12} parent=5 // pred_check_branch
        %116 = sbr.rel (%p113) target = $region12
      $region11: #{crowd_counter_forward.12} parent=5 // pred_region
        %s117 = ssub.s32 %s9, 1
        // Predicated region
        $region13: #{crowd_counter_forward.12} parent=11 // pred_check
          %p118 = pneg %p30
        $region14: #{crowd_counter_forward.12} parent=11 // pred_check_branch
          %120 = sbr.rel (%p118) target = $region16
        $region15: #{crowd_counter_forward.12} parent=11 // pred_region
          _
        $region16: #{crowd_counter_forward.12} parent=11 // pred_fallthru
          _
        // Predicated region
        $region17: #{crowd_counter_forward.12} parent=11 // pred_check
          %p121 = pneg %p77
        $region18: #{crowd_counter_forward.12} parent=11 // pred_check_branch
          %123 = sbr.rel (%p121) target = $region20
        $region19: #{crowd_counter_forward.12} parent=11 // pred_region
          _
        $region20: #{crowd_counter_forward.12} parent=11 // pred_fallthru
          _
      $region12: #{crowd_counter_forward.12} parent=5 // pred_fallthru
        _
      %p124 = scmp.lt.s32.totalorder %s9, 2
      // Predicated region
      $region21: #{crowd_counter_forward.12} parent=5 // pred_check
        %p125 = pneg %p124
      $region22: #{crowd_counter_forward.12} parent=5 // pred_check_branch
        %127 = sbr.rel (%p125) target = $region24
      $region23: #{crowd_counter_forward.12} parent=5 // pred_region
        // Predicated region
        $region25: #{crowd_counter_forward.12} parent=23 // pred_check
          %p128 = pneg %p50
        $region26: #{crowd_counter_forward.12} parent=23 // pred_check_branch
          %130 = sbr.rel (%p128) target = $region28
        $region27: #{crowd_counter_forward.12} parent=23 // pred_region
          %s131 = sand.u32 %s40, 1
          %s132 = sand.u32 %s40, 1
          %s133 = smul.addr %s132, 88
          %s134 = scalar_lea.vmem [#allocation2], %s133
          %s135 = smul.u32 2, %s9
          %s136 = smul.addr %s135, 4
          %s137 = scalar_lea.vmem %s1, %s136
          // Predicated region
          $region29: #{crowd_counter_forward.12} parent=27 // pred_check
            _
          $region30: #{crowd_counter_forward.12} parent=27 // pred_check_branch
            %139 = sbr.rel (0) target = $region32
          $region31: #{crowd_counter_forward.12} parent=27 // pred_region
            // Predicated region
            $region33: #{crowd_counter_forward.12} parent=31 // pred_check
              _
            $region34: #{crowd_counter_forward.12} parent=31 // pred_check_branch
              %141 = sbr.rel (0) target = $region36
            $region35: #{crowd_counter_forward.12} parent=31 // pred_region
              // Predicated region
              $region48: #{crowd_counter_forward.12} parent=35 // pred_check
                _
              $region49: #{crowd_counter_forward.12} parent=35 // pred_check_branch
                %177 = sbr.rel (0) target = $region51
              $region50: #{crowd_counter_forward.12} parent=35 // pred_region
                loop: start=0, step=1, limit=1
                $region52: #{crowd_counter_forward.12} parent=50 // loop_pre_header
                  _
                $region53: #{crowd_counter_forward.12} parent=50 // loop_header
                  %s179 = sphi 0, %s183
                  %p180 = scmp.ge.s32.totalorder %s179, 1
                  %s184 = sphi %s137, %s137
                  %s185 = sphi %s134, %s134
                $region54: #{crowd_counter_forward.12} parent=50 // loop_header_branch
                  %182 = sbr.rel (%p180) target = $region58
                $region55: #{crowd_counter_forward.12} parent=50 // loop_body
                  %v186 = vld [vmem:[%s184] sm:$0xff]
                  %187 = vst [vmem:[%s185] sm:$0xff] %v186
                  %v188 = vld [vmem:[%s184 + $0x10] sm:$0xff]
                  %189 = vst [vmem:[%s185 + $0x8] sm:$0xff] %v188
                  %v190 = vld [vmem:[%s184 + $0x20] sm:$0xff]
                  %191 = vst [vmem:[%s185 + $0x10] sm:$0xff] %v190
                  %v192 = vld [vmem:[%s184 + $0x30] sm:$0xff]
                  %193 = vst [vmem:[%s185 + $0x18] sm:$0xff] %v192
                  %v194 = vld [vmem:[%s184 + $0x40] sm:$0xff]
                  %195 = vst [vmem:[%s185 + $0x20] sm:$0xff] %v194
                  %v196 = vld [vmem:[%s184 + $0x50] sm:$0xff]
                  %197 = vst [vmem:[%s185 + $0x28] sm:$0xff] %v196
                  %v198 = vld [vmem:[%s184 + $0x60] sm:$0xff]
                  %199 = vst [vmem:[%s185 + $0x30] sm:$0xff] %v198
                  %v200 = vld [vmem:[%s184 + $0x70] sm:$0xff]
                  %201 = vst [vmem:[%s185 + $0x38] sm:$0xff] %v200
                  %v202 = vld [vmem:[%s184 + $0x80] sm:$0xff]
                  %203 = vst [vmem:[%s185 + $0x40] sm:$0xff] %v202
                  %v204 = vld [vmem:[%s184 + $0x90] sm:$0xff]
                  %205 = vst [vmem:[%s185 + $0x48] sm:$0xff] %v204
                  %v206 = vld [vmem:[%s184 + $0xa0] sm:$0xff]
                  %207 = vst [vmem:[%s185 + $0x50] sm:$0xff] %v206
                $region56: #{crowd_counter_forward.12} parent=50 // loop_footer
                  %s183 = sadd.s32 1, %s179
                $region57: #{crowd_counter_forward.12} parent=50 // loop_footer_branch
                  %178 = sbr.rel target = $region53
                $region58: #{crowd_counter_forward.12} parent=50 // loop_exit
                  _
              $region51: #{crowd_counter_forward.12} parent=35 // pred_fallthru
                _
              // Predicated region
              $region59: #{crowd_counter_forward.12} parent=35 // pred_check
                _
              $region60: #{crowd_counter_forward.12} parent=35 // pred_check_branch
                %209 = sbr.rel target = $region62
              $region61: #{crowd_counter_forward.12} parent=35 // pred_region
                _
              $region62: #{crowd_counter_forward.12} parent=35 // pred_fallthru
                _
            $region36: #{crowd_counter_forward.12} parent=31 // pred_fallthru
              _
            // Predicated region
            $region37: #{crowd_counter_forward.12} parent=31 // pred_check
              _
            $region38: #{crowd_counter_forward.12} parent=31 // pred_check_branch
              %143 = sbr.rel target = $region40
            $region39: #{crowd_counter_forward.12} parent=31 // pred_region
              %s145 = ssub.s32 256, 1
              loop: start=0, step=1, limit=1
              $region41: #{crowd_counter_forward.12} parent=39 // loop_pre_header
                _
              $region42: #{crowd_counter_forward.12} parent=39 // loop_header
                %s147 = sphi 0, %s151
                %p148 = scmp.ge.s32.totalorder %s147, 1
                %s152 = sphi %s137, %s137
                %s153 = sphi %s134, %s134
              $region43: #{crowd_counter_forward.12} parent=39 // loop_header_branch
                %150 = sbr.rel (%p148) target = $region47
              $region44: #{crowd_counter_forward.12} parent=39 // loop_body
                %v154 = vld [vmem:[%s152] sm:%s145]
                %155 = vst [vmem:[%s153] sm:%s145] %v154
                %v156 = vld [vmem:[%s152 + $0x10] sm:%s145]
                %157 = vst [vmem:[%s153 + $0x8] sm:%s145] %v156
                %v158 = vld [vmem:[%s152 + $0x20] sm:%s145]
                %159 = vst [vmem:[%s153 + $0x10] sm:%s145] %v158
                %v160 = vld [vmem:[%s152 + $0x30] sm:%s145]
                %161 = vst [vmem:[%s153 + $0x18] sm:%s145] %v160
                %v162 = vld [vmem:[%s152 + $0x40] sm:%s145]
                %163 = vst [vmem:[%s153 + $0x20] sm:%s145] %v162
                %v164 = vld [vmem:[%s152 + $0x50] sm:%s145]
                %165 = vst [vmem:[%s153 + $0x28] sm:%s145] %v164
                %v166 = vld [vmem:[%s152 + $0x60] sm:%s145]
                %167 = vst [vmem:[%s153 + $0x30] sm:%s145] %v166
                %v168 = vld [vmem:[%s152 + $0x70] sm:%s145]
                %169 = vst [vmem:[%s153 + $0x38] sm:%s145] %v168
                %v170 = vld [vmem:[%s152 + $0x80] sm:%s145]
                %171 = vst [vmem:[%s153 + $0x40] sm:%s145] %v170
                %v172 = vld [vmem:[%s152 + $0x90] sm:%s145]
                %173 = vst [vmem:[%s153 + $0x48] sm:%s145] %v172
                %v174 = vld [vmem:[%s152 + $0xa0] sm:%s145]
                %175 = vst [vmem:[%s153 + $0x50] sm:%s145] %v174
              $region45: #{crowd_counter_forward.12} parent=39 // loop_footer
                %s151 = sadd.s32 1, %s147
              $region46: #{crowd_counter_forward.12} parent=39 // loop_footer_branch
                %146 = sbr.rel target = $region42
              $region47: #{crowd_counter_forward.12} parent=39 // loop_exit
                _
            $region40: #{crowd_counter_forward.12} parent=31 // pred_fallthru
              _
          $region32: #{crowd_counter_forward.12} parent=27 // pred_fallthru
            _
          %210 = vnop
        $region28: #{crowd_counter_forward.12} parent=23 // pred_fallthru
          _
      $region24: #{crowd_counter_forward.12} parent=5 // pred_fallthru
        _
      %p211 = scmp.le.s32.totalorder 1, %s9
      %p212 = scmp.lt.s32.totalorder %s9, 3
      %p213 = pnand %p211, %p212
      %p214 = pneg %p213
      // Predicated region
      $region63: #{crowd_counter_forward.12} parent=5 // pred_check
        _
      $region64: #{crowd_counter_forward.12} parent=5 // pred_check_branch
        %216 = sbr.rel (%p213) target = $region66
      $region65: #{crowd_counter_forward.12} parent=5 // pred_region
        %s217 = ssub.s32 %s9, 1
        %s218 = sand.u32 %s43, 1
        %s219 = sand.u32 %s43, 1
        %s220 = smul.addr %s219, 88
        %s221 = scalar_lea.vmem [#allocation2], %s220
        // Predicated region
        $region67: #{crowd_counter_forward.12} parent=65 // pred_check
          %p222 = pneg %p56
        $region68: #{crowd_counter_forward.12} parent=65 // pred_check_branch
          %224 = sbr.rel (%p222) target = $region70
        $region69: #{crowd_counter_forward.12} parent=65 // pred_region
          _
        $region70: #{crowd_counter_forward.12} parent=65 // pred_fallthru
          _
        %p225 = pneg %p30
        %p226 = pneg %p27
        %s227 = sand.u32 %s43, 1
        %s228 = sand.u32 %s43, 1
        %s229 = smul.addr %s228, 88
        %s230 = scalar_lea.vmem [#allocation2], %s229
        %p231 = pneg %p56
        %p232 = pneg %p53
        %p233 = pneg %p77
        %p234 = pneg %p74
        %p235 = pneg %p103
        %p236 = pneg %p100
        %s237 = sand.u32 %s90, 1
        %s238 = sand.u32 %s90, 1
        %s239 = smul.addr %s238, 64
        %s240 = scalar_lea.vmem [#allocation3], %s239
        %s241 = smul.u32 2, %s14
        %s242 = smul.u32 2, %s14
        %v243 = vld [vmem:[%s0] sm:$0xff]
        %v244 = vld [vmem:[%s0 + $0x8] sm:$0xff]
        %v245 = vld [vmem:[%s0 + $0x10] sm:$0xff]
        %v246 = vld [vmem:[%s0 + $0x18] sm:$0xff]
        %v247 = vld [vmem:[%s0 + $0x20] sm:$0xff]
        %v248 = vld [vmem:[%s0 + $0x28] sm:$0xff]
        %v249 = vld [vmem:[%s0 + $0x30] sm:$0xff]
        %v250 = vld [vmem:[%s0 + $0x38] sm:$0xf]
        %v251 = vld [vmem:[%s221] sm:$0xff]
        %v252 = vld [vmem:[%s221 + $0x8] sm:$0xff]
        %v253 = vld [vmem:[%s221 + $0x10] sm:$0xff]
        %v254 = vld [vmem:[%s221 + $0x18] sm:$0xff]
        %v255 = vld [vmem:[%s221 + $0x20] sm:$0xff]
        %v256 = vld [vmem:[%s221 + $0x28] sm:$0xff]
        %v257 = vld [vmem:[%s221 + $0x30] sm:$0xff]
        %v258 = vld [vmem:[%s221 + $0x38] sm:$0xff]
        %v259 = vld [vmem:[%s221 + $0x40] sm:$0xff]
        %v260 = vld [vmem:[%s221 + $0x48] sm:$0xff]
        %v261 = vld [vmem:[%s221 + $0x50] sm:$0x11]
        %v262 = vunpack.c.l.bf16 %v251
        %v263 = vunpack.c.h.bf16 %v251
        %v264 = vunpack.c.l.bf16 %v252
        %v265 = vunpack.c.h.bf16 %v252
        %v266 = vunpack.c.l.bf16 %v253
        %v267 = vunpack.c.h.bf16 %v253
        %v268 = vunpack.c.l.bf16 %v254
        %v269 = vunpack.c.h.bf16 %v254
        %v270 = vunpack.c.l.bf16 %v255
        %v271 = vunpack.c.h.bf16 %v255
        %v272 = vunpack.c.l.bf16 %v256
        %v273 = vunpack.c.h.bf16 %v256
        %v274 = vunpack.c.l.bf16 %v257
        %v275 = vunpack.c.h.bf16 %v257
        %v276 = vunpack.c.l.bf16 %v258
        %v277 = vunpack.c.h.bf16 %v258
        %v278 = vunpack.c.l.bf16 %v259
        %v279 = vunpack.c.h.bf16 %v259
        %v280 = vunpack.c.l.bf16 %v260
        %v281 = vunpack.c.h.bf16 %v260
        %v282 = vunpack.c.l.bf16 %v261
        %v283 = vunpack.c.h.bf16 %v261
        %v284 = vld [vmem:[%s2] sm:$0xff]
        %v285 = vld [vmem:[%s2 + $0x8] sm:$0xff]
        %v286 = vld [vmem:[%s2 + $0x10] sm:$0xff]
        %v287 = vld [vmem:[%s2 + $0x18] sm:$0xff]
        %v288 = vld [vmem:[%s2 + $0x20] sm:$0xff]
        %v289 = vld [vmem:[%s2 + $0x28] sm:$0xff]
        %v290 = vld [vmem:[%s2 + $0x30] sm:$0xff]
        %v291 = vld [vmem:[%s2 + $0x38] sm:$0xf]
        %293 = vset.pattern.permute.xlu0 0
        %294 = vperm.xlu0 %293, %v284
        %v295 = vpop.permute.xlu0 %294
        %298 = vset.pattern.permute.xlu0 0
        %299 = vperm.xlu0 %298, %v285
        %v300 = vpop.permute.xlu0 %299
        %303 = vset.pattern.permute.xlu0 0
        %304 = vperm.xlu0 %303, %v286
        %v305 = vpop.permute.xlu0 %304
        %308 = vset.pattern.permute.xlu0 0
        %309 = vperm.xlu0 %308, %v287
        %v310 = vpop.permute.xlu0 %309
        %313 = vset.pattern.permute.xlu0 0
        %314 = vperm.xlu0 %313, %v288
        %v315 = vpop.permute.xlu0 %314
        %318 = vset.pattern.permute.xlu0 0
        %319 = vperm.xlu0 %318, %v289
        %v320 = vpop.permute.xlu0 %319
        %323 = vset.pattern.permute.xlu0 0
        %324 = vperm.xlu0 %323, %v290
        %v325 = vpop.permute.xlu0 %324
        %328 = vset.pattern.permute.xlu0 0
        %329 = vperm.xlu0 %328, %v291
        %v330 = vpop.permute.xlu0 %329
        %vm332 = vcmask 662528
        %v334 = vsel %vm332, %v243, 0
        %v337 = vsel %vm332, %v244, 0
        %v340 = vsel %vm332, %v245, 0
        %v343 = vsel %vm332, %v246, 0
        %v346 = vsel %vm332, %v247, 0
        %v349 = vsel %vm332, %v248, 0
        %v352 = vsel %vm332, %v249, 0
        %v355 = vsel %vm332, %v250, 0
        %vm357 = vcmask 1040384
        %v359 = vsel %vm357, %v282, 0
        %v362 = vsel %vm357, %v283, 0
        %364 = vmatpush.msra.mxu0 0.0
        %365 = vmatpush.msra.mxu0 0.0
        %366 = vmatpush.msra.mxu0 0.0
        %367 = vmatpush.msra.mxu0 0.0
        %368 = vmatpush.msra.mxu0 0.0
        %369 = vmatpush.msra.mxu0 %v359
        %370 = vmatpush.msra.mxu0 %v280
        %371 = vmatpush.msra.mxu0 %v278
        %372 = vmatpush.msra.mxu0 %v276
        %373 = vmatpush.msra.mxu0 %v274
        %374 = vmatpush.msra.mxu0 %v272
        %375 = vmatpush.msra.mxu0 %v270
        %376 = vmatpush.msra.mxu0 %v268
        %377 = vmatpush.msra.mxu0 %v266
        %378 = vmatpush.msra.mxu0 %v264
        %379 = vmatpush.msra.mxu0 %v262
        %380 = vmatmul.f32.gmra.mxu0 %v334
        %v381 = vpop.f32.mrf.mxu0
        %v382 = vadd.f32 %v295, %v381
        %383 = vmatmul.f32.gmra.mxu0 %v337
        %v384 = vpop.f32.mrf.mxu0
        %v385 = vadd.f32 %v300, %v384
        %386 = vmatmul.f32.gmra.mxu0 %v340
        %v387 = vpop.f32.mrf.mxu0
        %v388 = vadd.f32 %v305, %v387
        %389 = vmatmul.f32.gmra.mxu0 %v343
        %v390 = vpop.f32.mrf.mxu0
        %v391 = vadd.f32 %v310, %v390
        %392 = vmatmul.f32.gmra.mxu0 %v346
        %v393 = vpop.f32.mrf.mxu0
        %v394 = vadd.f32 %v315, %v393
        %395 = vmatmul.f32.gmra.mxu0 %v349
        %v396 = vpop.f32.mrf.mxu0
        %v397 = vadd.f32 %v320, %v396
        %398 = vmatmul.f32.gmra.mxu0 %v352
        %v399 = vpop.f32.mrf.mxu0
        %v400 = vadd.f32 %v325, %v399
        %401 = vmatmul.f32.gmra.mxu0 %v355
        %v402 = vpop.f32.mrf.mxu0
        %v403 = vadd.f32 %v330, %v402
        %404 = vdwg.mxu0
        %405 = vmatpush.msra.mxu0 0.0
        %406 = vmatpush.msra.mxu0 0.0
        %407 = vmatpush.msra.mxu0 0.0
        %408 = vmatpush.msra.mxu0 0.0
        %409 = vmatpush.msra.mxu0 0.0
        %410 = vmatpush.msra.mxu0 %v362
        %411 = vmatpush.msra.mxu0 %v281
        %412 = vmatpush.msra.mxu0 %v279
        %413 = vmatpush.msra.mxu0 %v277
        %414 = vmatpush.msra.mxu0 %v275
        %415 = vmatpush.msra.mxu0 %v273
        %416 = vmatpush.msra.mxu0 %v271
        %417 = vmatpush.msra.mxu0 %v269
        %418 = vmatpush.msra.mxu0 %v267
        %419 = vmatpush.msra.mxu0 %v265
        %420 = vmatpush.msra.mxu0 %v263
        %421 = vmatmul.f32.gmra.mxu0 %v334
        %v422 = vpop.f32.mrf.mxu0
        %v423 = vadd.f32 %v295, %v422
        %424 = vmatmul.f32.gmra.mxu0 %v337
        %v425 = vpop.f32.mrf.mxu0
        %v426 = vadd.f32 %v300, %v425
        %427 = vmatmul.f32.gmra.mxu0 %v340
        %v428 = vpop.f32.mrf.mxu0
        %v429 = vadd.f32 %v305, %v428
        %430 = vmatmul.f32.gmra.mxu0 %v343
        %v431 = vpop.f32.mrf.mxu0
        %v432 = vadd.f32 %v310, %v431
        %433 = vmatmul.f32.gmra.mxu0 %v346
        %v434 = vpop.f32.mrf.mxu0
        %v435 = vadd.f32 %v315, %v434
        %436 = vmatmul.f32.gmra.mxu0 %v349
        %v437 = vpop.f32.mrf.mxu0
        %v438 = vadd.f32 %v320, %v437
        %439 = vmatmul.f32.gmra.mxu0 %v352
        %v440 = vpop.f32.mrf.mxu0
        %v441 = vadd.f32 %v325, %v440
        %442 = vmatmul.f32.gmra.mxu0 %v355
        %v443 = vpop.f32.mrf.mxu0
        %v444 = vadd.f32 %v330, %v443
        %445 = vdwg.mxu0
        %v446 = vmax.f32 %v382, 0.0
        %v447 = vmax.f32 %v423, 0.0
        %v448 = vmax.f32 %v385, 0.0
        %v449 = vmax.f32 %v426, 0.0
        %v450 = vmax.f32 %v388, 0.0
        %v451 = vmax.f32 %v429, 0.0
        %v452 = vmax.f32 %v391, 0.0
        %v453 = vmax.f32 %v432, 0.0
        %v454 = vmax.f32 %v394, 0.0
        %v455 = vmax.f32 %v435, 0.0
        %v456 = vmax.f32 %v397, 0.0
        %v457 = vmax.f32 %v438, 0.0
        %v458 = vmax.f32 %v400, 0.0
        %v459 = vmax.f32 %v441, 0.0
        %v460 = vmax.f32 %v403, 0.0
        %v461 = vmax.f32 %v444, 0.0
        %v462 = vpack.c.bf16 %v447, %v446
        %v463 = vpack.c.bf16 %v449, %v448
        %v464 = vpack.c.bf16 %v451, %v450
        %v465 = vpack.c.bf16 %v453, %v452
        %v466 = vpack.c.bf16 %v455, %v454
        %v467 = vpack.c.bf16 %v457, %v456
        %v468 = vpack.c.bf16 %v459, %v458
        %v469 = vpack.c.bf16 %v461, %v460
        %470 = vst [vmem:[%s240] sm:$0xff] %v462
        %471 = vst [vmem:[%s240 + $0x8] sm:$0xff] %v463
        %472 = vst [vmem:[%s240 + $0x10] sm:$0xff] %v464
        %473 = vst [vmem:[%s240 + $0x18] sm:$0xff] %v465
        %474 = vst [vmem:[%s240 + $0x20] sm:$0xff] %v466
        %475 = vst [vmem:[%s240 + $0x28] sm:$0xff] %v467
        %476 = vst [vmem:[%s240 + $0x30] sm:$0xff] %v468
        %477 = vst [vmem:[%s240 + $0x38] sm:$0x33] %v469
        %s478 = sand.u32 %s90, 1
        %s479 = sand.u32 %s90, 1
        %s480 = smul.addr %s479, 64
        %s481 = scalar_lea.vmem [#allocation3], %s480
        // Predicated region
        $region71: #{crowd_counter_forward.12} parent=65 // pred_check
          %p482 = pneg %p100
        $region72: #{crowd_counter_forward.12} parent=65 // pred_check_branch
          %484 = sbr.rel (%p482) target = $region74
        $region73: #{crowd_counter_forward.12} parent=65 // pred_region
          %s485 = smul.u32 2, %s14
          %s486 = smul.addr %s485, 4
          %s487 = scalar_lea.vmem %s3, %s486
          // Predicated region
          $region75: #{crowd_counter_forward.12} parent=73 // pred_check
            _
          $region76: #{crowd_counter_forward.12} parent=73 // pred_check_branch
            %489 = sbr.rel (0) target = $region78
          $region77: #{crowd_counter_forward.12} parent=73 // pred_region
            // Predicated region
            $region79: #{crowd_counter_forward.12} parent=77 // pred_check
              _
            $region80: #{crowd_counter_forward.12} parent=77 // pred_check_branch
              %491 = sbr.rel (0) target = $region82
            $region81: #{crowd_counter_forward.12} parent=77 // pred_region
              // Predicated region
              $region94: #{crowd_counter_forward.12} parent=81 // pred_check
                _
              $region95: #{crowd_counter_forward.12} parent=81 // pred_check_branch
                %521 = sbr.rel (0) target = $region97
              $region96: #{crowd_counter_forward.12} parent=81 // pred_region
                loop: start=0, step=1, limit=1
                $region98: #{crowd_counter_forward.12} parent=96 // loop_pre_header
                  _
                $region99: #{crowd_counter_forward.12} parent=96 // loop_header
                  %s523 = sphi 0, %s527
                  %p524 = scmp.ge.s32.totalorder %s523, 1
                  %s528 = sphi %s481, %s481
                  %s529 = sphi %s487, %s487
                $region100: #{crowd_counter_forward.12} parent=96 // loop_header_branch
                  %526 = sbr.rel (%p524) target = $region104
                $region101: #{crowd_counter_forward.12} parent=96 // loop_body
                  %v530 = vld [vmem:[%s528] sm:$0xff]
                  %531 = vst [vmem:[%s529] sm:$0xff] %v530
                  %v532 = vld [vmem:[%s528 + $0x8] sm:$0xff]
                  %533 = vst [vmem:[%s529 + $0x10] sm:$0xff] %v532
                  %v534 = vld [vmem:[%s528 + $0x10] sm:$0xff]
                  %535 = vst [vmem:[%s529 + $0x20] sm:$0xff] %v534
                  %v536 = vld [vmem:[%s528 + $0x18] sm:$0xff]
                  %537 = vst [vmem:[%s529 + $0x30] sm:$0xff] %v536
                  %v538 = vld [vmem:[%s528 + $0x20] sm:$0xff]
                  %539 = vst [vmem:[%s529 + $0x40] sm:$0xff] %v538
                  %v540 = vld [vmem:[%s528 + $0x28] sm:$0xff]
                  %541 = vst [vmem:[%s529 + $0x50] sm:$0xff] %v540
                  %v542 = vld [vmem:[%s528 + $0x30] sm:$0xff]
                  %543 = vst [vmem:[%s529 + $0x60] sm:$0xff] %v542
                  %v544 = vld [vmem:[%s528 + $0x38] sm:$0xff]
                  %545 = vst [vmem:[%s529 + $0x70] sm:$0xff] %v544
                $region102: #{crowd_counter_forward.12} parent=96 // loop_footer
                  %s527 = sadd.s32 1, %s523
                $region103: #{crowd_counter_forward.12} parent=96 // loop_footer_branch
                  %522 = sbr.rel target = $region99
                $region104: #{crowd_counter_forward.12} parent=96 // loop_exit
                  _
              $region97: #{crowd_counter_forward.12} parent=81 // pred_fallthru
                _
              // Predicated region
              $region105: #{crowd_counter_forward.12} parent=81 // pred_check
                _
              $region106: #{crowd_counter_forward.12} parent=81 // pred_check_branch
                %547 = sbr.rel target = $region108
              $region107: #{crowd_counter_forward.12} parent=81 // pred_region
                _
              $region108: #{crowd_counter_forward.12} parent=81 // pred_fallthru
                _
            $region82: #{crowd_counter_forward.12} parent=77 // pred_fallthru
              _
            // Predicated region
            $region83: #{crowd_counter_forward.12} parent=77 // pred_check
              _
            $region84: #{crowd_counter_forward.12} parent=77 // pred_check_branch
              %493 = sbr.rel target = $region86
            $region85: #{crowd_counter_forward.12} parent=77 // pred_region
              %s495 = ssub.s32 256, 1
              loop: start=0, step=1, limit=1
              $region87: #{crowd_counter_forward.12} parent=85 // loop_pre_header
                _
              $region88: #{crowd_counter_forward.12} parent=85 // loop_header
                %s497 = sphi 0, %s501
                %p498 = scmp.ge.s32.totalorder %s497, 1
                %s502 = sphi %s481, %s481
                %s503 = sphi %s487, %s487
              $region89: #{crowd_counter_forward.12} parent=85 // loop_header_branch
                %500 = sbr.rel (%p498) target = $region93
              $region90: #{crowd_counter_forward.12} parent=85 // loop_body
                %v504 = vld [vmem:[%s502] sm:%s495]
                %505 = vst [vmem:[%s503] sm:%s495] %v504
                %v506 = vld [vmem:[%s502 + $0x8] sm:%s495]
                %507 = vst [vmem:[%s503 + $0x10] sm:%s495] %v506
                %v508 = vld [vmem:[%s502 + $0x10] sm:%s495]
                %509 = vst [vmem:[%s503 + $0x20] sm:%s495] %v508
                %v510 = vld [vmem:[%s502 + $0x18] sm:%s495]
                %511 = vst [vmem:[%s503 + $0x30] sm:%s495] %v510
                %v512 = vld [vmem:[%s502 + $0x20] sm:%s495]
                %513 = vst [vmem:[%s503 + $0x40] sm:%s495] %v512
                %v514 = vld [vmem:[%s502 + $0x28] sm:%s495]
                %515 = vst [vmem:[%s503 + $0x50] sm:%s495] %v514
                %v516 = vld [vmem:[%s502 + $0x30] sm:%s495]
                %517 = vst [vmem:[%s503 + $0x60] sm:%s495] %v516
                %v518 = vld [vmem:[%s502 + $0x38] sm:%s495]
                %519 = vst [vmem:[%s503 + $0x70] sm:%s495] %v518
              $region91: #{crowd_counter_forward.12} parent=85 // loop_footer
                %s501 = sadd.s32 1, %s497
              $region92: #{crowd_counter_forward.12} parent=85 // loop_footer_branch
                %496 = sbr.rel target = $region88
              $region93: #{crowd_counter_forward.12} parent=85 // loop_exit
                _
            $region86: #{crowd_counter_forward.12} parent=77 // pred_fallthru
              _
          $region78: #{crowd_counter_forward.12} parent=73 // pred_fallthru
            _
          %548 = vnop
        $region74: #{crowd_counter_forward.12} parent=65 // pred_fallthru
          _
      $region66: #{crowd_counter_forward.12} parent=5 // pred_fallthru
        _
      %p549 = scmp.le.s32.totalorder 2, %s9
      // Predicated region
      $region109: #{crowd_counter_forward.12} parent=5 // pred_check
        %p550 = pneg %p549
      $region110: #{crowd_counter_forward.12} parent=5 // pred_check_branch
        %552 = sbr.rel (%p550) target = $region112
      $region111: #{crowd_counter_forward.12} parent=5 // pred_region
        %s553 = ssub.s32 %s9, 2
        // Predicated region
        $region113: #{crowd_counter_forward.12} parent=111 // pred_check
          %p554 = pneg %p106
        $region114: #{crowd_counter_forward.12} parent=111 // pred_check_branch
          %556 = sbr.rel (%p554) target = $region116
        $region115: #{crowd_counter_forward.12} parent=111 // pred_region
          %s557 = sand.u32 %s91, 1
          %s558 = sand.u32 %s91, 1
          %s559 = smul.addr %s558, 64
          %s560 = scalar_lea.vmem [#allocation3], %s559
        $region116: #{crowd_counter_forward.12} parent=111 // pred_fallthru
          _
      $region112: #{crowd_counter_forward.12} parent=5 // pred_fallthru
        _
    $region6: #{crowd_counter_forward.12} parent=1 // loop_footer
      %s13 = sadd.s32 1, %s9
    $region7: #{crowd_counter_forward.12} parent=1 // loop_footer_branch
      %8 = sbr.rel target = $region3
    $region8: #{crowd_counter_forward.12} parent=1 // loop_exit
      _

// kernel: crowd_counter_forward.13
$region0: #{crowd_counter_forward.13}
  #allocation0 [shape = 'u32[]', space=smem, size = 0x4, offset = 0x4, fixed_abs, tag = 'smem constant byte address 0x4 - core index']
  #allocation1 [shape = 'u32[72,128]{1,0:T(1,128)}', space=vmem, size = 0x9000, scoped, tag = 'internal scratch']
  %s0 = inlined_call_operand.vmem [shape: f32[32,784], index: 0, kind: input, shape index: {}]
  %s1 = inlined_call_operand.vmem [shape: bf16[784,128], index: 1, kind: input, shape index: {}]
  %s2 = inlined_call_operand.vmem [shape: f32[32,1], index: 2, kind: input, shape index: {}]
  %s3 = inlined_call_operand.vmem [shape: bf16[32,128], index: 3, kind: output, shape index: {}]
  %s4 = sld [smem:[#allocation0]]
  $region22: #{crowd_counter_forward.13} parent=0
    _
  %s6 = ssub.s32 1, %s4
  %s7 = scalar_select 0, %s6, %s4
  // Predicated region
  $region2: #{crowd_counter_forward.13} parent=0 // pred_check
    _
  $region3: #{crowd_counter_forward.13} parent=0 // pred_check_branch
    %9 = sbr.rel (0) target = $region5
  $region4: #{crowd_counter_forward.13} parent=0 // pred_region
    _
  $region5: #{crowd_counter_forward.13} parent=0 // pred_fallthru
    _
  // Predicated region
  $region6: #{crowd_counter_forward.13} parent=0 // pred_check
    _
  $region7: #{crowd_counter_forward.13} parent=0 // pred_check_branch
    %11 = sbr.rel (0) target = $region9
  $region8: #{crowd_counter_forward.13} parent=0 // pred_region
    _
  $region9: #{crowd_counter_forward.13} parent=0 // pred_fallthru
    _
  // Predicated region
  $region10: #{crowd_counter_forward.13} parent=0 // pred_check
    _
  $region11: #{crowd_counter_forward.13} parent=0 // pred_check_branch
    %13 = sbr.rel (0) target = $region13
  $region12: #{crowd_counter_forward.13} parent=0 // pred_region
    _
  $region13: #{crowd_counter_forward.13} parent=0 // pred_fallthru
    _
  %v14 = vld [vmem:[%s0] sm:$0xff]
  %v15 = vld [vmem:[%s0 + $0x8] sm:$0xff]
  %v16 = vld [vmem:[%s0 + $0x10] sm:$0xff]
  %v17 = vld [vmem:[%s0 + $0x18] sm:$0xff]
  %v18 = vld [vmem:[%s0 + $0x20] sm:$0xff]
  %v19 = vld [vmem:[%s0 + $0x28] sm:$0xff]
  %v20 = vld [vmem:[%s0 + $0x30] sm:$0xff]
  %v21 = vld [vmem:[%s0 + $0x38] sm:$0xff]
  %v22 = vld [vmem:[%s0 + $0x40] sm:$0xff]
  %v23 = vld [vmem:[%s0 + $0x48] sm:$0xff]
  %v24 = vld [vmem:[%s0 + $0x50] sm:$0xff]
  %v25 = vld [vmem:[%s0 + $0x58] sm:$0xff]
  %v26 = vld [vmem:[%s0 + $0x60] sm:$0xff]
  %v27 = vld [vmem:[%s0 + $0x68] sm:$0xff]
  %v28 = vld [vmem:[%s0 + $0x70] sm:$0xff]
  %v29 = vld [vmem:[%s0 + $0x78] sm:$0xff]
  %v30 = vld [vmem:[%s0 + $0x80] sm:$0xff]
  %v31 = vld [vmem:[%s0 + $0x88] sm:$0xff]
  %v32 = vld [vmem:[%s0 + $0x90] sm:$0xff]
  %v33 = vld [vmem:[%s0 + $0x98] sm:$0xff]
  %v34 = vld [vmem:[%s0 + $0xa0] sm:$0xff]
  %v35 = vld [vmem:[%s0 + $0xa8] sm:$0xff]
  %v36 = vld [vmem:[%s0 + $0xb0] sm:$0xff]
  %v37 = vld [vmem:[%s0 + $0xb8] sm:$0xff]
  %v38 = vld [vmem:[%s0 + $0xc0] sm:$0xff]
  %v39 = vld [vmem:[%s0 + $0xc8] sm:$0xff]
  %v40 = vld [vmem:[%s0 + $0xd0] sm:$0xff]
  %v41 = vld [vmem:[%s0 + $0xd8] sm:$0xff]
  %v42 = vld [vmem:[%s1] sm:$0xf]
  %v43 = vld [vmem:[%s1 + $0x4] sm:$0xf]
  %v44 = vld [vmem:[%s1 + $0x8] sm:$0xf]
  %v45 = vld [vmem:[%s1 + $0xc] sm:$0xf]
  %v46 = vld [vmem:[%s1 + $0x10] sm:$0xf]
  %v47 = vld [vmem:[%s1 + $0x14] sm:$0xf]
  %v48 = vld [vmem:[%s1 + $0x18] sm:$0xf]
  %v49 = vld [vmem:[%s1 + $0x1c] sm:$0xf]
  %v50 = vld [vmem:[%s1 + $0x20] sm:$0xf]
  %v51 = vld [vmem:[%s1 + $0x24] sm:$0xf]
  %v52 = vld [vmem:[%s1 + $0x28] sm:$0xf]
  %v53 = vld [vmem:[%s1 + $0x2c] sm:$0xf]
  %v54 = vld [vmem:[%s1 + $0x30] sm:$0xf]
  %v55 = vld [vmem:[%s1 + $0x34] sm:$0xf]
  %v56 = vld [vmem:[%s1 + $0x38] sm:$0xf]
  %v57 = vld [vmem:[%s1 + $0x3c] sm:$0xf]
  %v58 = vld [vmem:[%s1 + $0x40] sm:$0xf]
  %v59 = vld [vmem:[%s1 + $0x44] sm:$0xf]
  %v60 = vld [vmem:[%s1 + $0x48] sm:$0xf]
  %v61 = vld [vmem:[%s1 + $0x4c] sm:$0xf]
  %v62 = vld [vmem:[%s1 + $0x50] sm:$0xf]
  %v63 = vld [vmem:[%s1 + $0x54] sm:$0xf]
  %v64 = vld [vmem:[%s1 + $0x58] sm:$0xf]
  %v65 = vld [vmem:[%s1 + $0x5c] sm:$0xf]
  %v66 = vld [vmem:[%s1 + $0x60] sm:$0xf]
  %v67 = vld [vmem:[%s1 + $0x64] sm:$0xf]
  %v68 = vld [vmem:[%s1 + $0x68] sm:$0xf]
  %v69 = vld [vmem:[%s1 + $0x6c] sm:$0xf]
  %v70 = vld [vmem:[%s1 + $0x70] sm:$0xf]
  %v71 = vld [vmem:[%s1 + $0x74] sm:$0xf]
  %v72 = vld [vmem:[%s1 + $0x78] sm:$0xf]
  %v73 = vld [vmem:[%s1 + $0x7c] sm:$0xf]
  %v74 = vld [vmem:[%s1 + $0x80] sm:$0xf]
  %v75 = vld [vmem:[%s1 + $0x84] sm:$0xf]
  %v76 = vld [vmem:[%s1 + $0x88] sm:$0xf]
  %v77 = vld [vmem:[%s1 + $0x8c] sm:$0xf]
  %v78 = vld [vmem:[%s1 + $0x90] sm:$0xf]
  %v79 = vld [vmem:[%s1 + $0x94] sm:$0xf]
  %v80 = vld [vmem:[%s1 + $0x98] sm:$0xf]
  %v81 = vld [vmem:[%s1 + $0x9c] sm:$0xf]
  %v82 = vld [vmem:[%s1 + $0xa0] sm:$0xf]
  %v83 = vld [vmem:[%s1 + $0xa4] sm:$0xf]
  %v84 = vld [vmem:[%s1 + $0xa8] sm:$0xf]
  %v85 = vld [vmem:[%s1 + $0xac] sm:$0xf]
  %v86 = vld [vmem:[%s1 + $0xb0] sm:$0xf]
  %v87 = vld [vmem:[%s1 + $0xb4] sm:$0xf]
  %v88 = vld [vmem:[%s1 + $0xb8] sm:$0xf]
  %v89 = vld [vmem:[%s1 + $0xbc] sm:$0xf]
  %v90 = vld [vmem:[%s1 + $0xc0] sm:$0xf]
  %v91 = vld [vmem:[%s1 + $0xc4] sm:$0xf]
  %v92 = vld [vmem:[%s1 + $0xc8] sm:$0xf]
  %v93 = vld [vmem:[%s1 + $0xcc] sm:$0xf]
  %v94 = vld [vmem:[%s1 + $0xd0] sm:$0xf]
  %v95 = vld [vmem:[%s1 + $0xd4] sm:$0xf]
  %v96 = vld [vmem:[%s1 + $0xd8] sm:$0xf]
  %v97 = vld [vmem:[%s1 + $0xdc] sm:$0xf]
  %v98 = vld [vmem:[%s1 + $0xe0] sm:$0xf]
  %v99 = vld [vmem:[%s1 + $0xe4] sm:$0xf]
  %v100 = vld [vmem:[%s1 + $0xe8] sm:$0xf]
  %v101 = vld [vmem:[%s1 + $0xec] sm:$0xf]
  %v102 = vld [vmem:[%s1 + $0xf0] sm:$0xf]
  %v103 = vld [vmem:[%s1 + $0xf4] sm:$0xf]
  %v104 = vld [vmem:[%s1 + $0xf8] sm:$0xf]
  %v105 = vld [vmem:[%s1 + $0xfc] sm:$0xf]
  %v106 = vld [vmem:[%s1 + $0x100] sm:$0xf]
  %v107 = vld [vmem:[%s1 + $0x104] sm:$0xf]
  %v108 = vld [vmem:[%s1 + $0x108] sm:$0xf]
  %v109 = vld [vmem:[%s1 + $0x10c] sm:$0xf]
  %v110 = vld [vmem:[%s1 + $0x110] sm:$0xf]
  %v111 = vld [vmem:[%s1 + $0x114] sm:$0xf]
  %v112 = vld [vmem:[%s1 + $0x118] sm:$0xf]
  %v113 = vld [vmem:[%s1 + $0x11c] sm:$0xf]
  %v114 = vld [vmem:[%s1 + $0x120] sm:$0xf]
  %v115 = vld [vmem:[%s1 + $0x124] sm:$0xf]
  %v116 = vld [vmem:[%s1 + $0x128] sm:$0xf]
  %v117 = vld [vmem:[%s1 + $0x12c] sm:$0xf]
  %v118 = vld [vmem:[%s1 + $0x130] sm:$0xf]
  %v119 = vld [vmem:[%s1 + $0x134] sm:$0xf]
  %v120 = vld [vmem:[%s1 + $0x138] sm:$0xf]
  %v121 = vld [vmem:[%s1 + $0x13c] sm:$0xf]
  %v122 = vld [vmem:[%s1 + $0x140] sm:$0xf]
  %v123 = vld [vmem:[%s1 + $0x144] sm:$0xf]
  %v124 = vld [vmem:[%s1 + $0x148] sm:$0xf]
  %v125 = vld [vmem:[%s1 + $0x14c] sm:$0xf]
  %v126 = vld [vmem:[%s1 + $0x150] sm:$0xf]
  %v127 = vld [vmem:[%s1 + $0x154] sm:$0xf]
  %v128 = vld [vmem:[%s1 + $0x158] sm:$0xf]
  %v129 = vld [vmem:[%s1 + $0x15c] sm:$0xf]
  %v130 = vld [vmem:[%s1 + $0x160] sm:$0xf]
  %v131 = vld [vmem:[%s1 + $0x164] sm:$0xf]
  %v132 = vld [vmem:[%s1 + $0x168] sm:$0xf]
  %v133 = vld [vmem:[%s1 + $0x16c] sm:$0xf]
  %v134 = vld [vmem:[%s1 + $0x170] sm:$0xf]
  %v135 = vld [vmem:[%s1 + $0x174] sm:$0xf]
  %v136 = vld [vmem:[%s1 + $0x178] sm:$0xf]
  %v137 = vld [vmem:[%s1 + $0x17c] sm:$0xf]
  %v138 = vld [vmem:[%s1 + $0x180] sm:$0xf]
  %v139 = vld [vmem:[%s1 + $0x184] sm:$0xf]
  %v140 = vunpack.c.l.bf16 %v42
  %v141 = vunpack.c.l.bf16 %v43
  %v142 = vunpack.c.l.bf16 %v44
  %v143 = vunpack.c.l.bf16 %v45
  %v144 = vunpack.c.l.bf16 %v46
  %v145 = vunpack.c.l.bf16 %v47
  %v146 = vunpack.c.l.bf16 %v48
  %v147 = vunpack.c.l.bf16 %v49
  %v148 = vunpack.c.l.bf16 %v50
  %v149 = vunpack.c.l.bf16 %v51
  %v150 = vunpack.c.l.bf16 %v52
  %v151 = vunpack.c.l.bf16 %v53
  %v152 = vunpack.c.l.bf16 %v54
  %v153 = vunpack.c.l.bf16 %v55
  %v154 = vunpack.c.l.bf16 %v56
  %v155 = vunpack.c.l.bf16 %v57
  %v156 = vunpack.c.l.bf16 %v58
  %v157 = vunpack.c.l.bf16 %v59
  %v158 = vunpack.c.l.bf16 %v60
  %v159 = vunpack.c.l.bf16 %v61
  %v160 = vunpack.c.l.bf16 %v62
  %v161 = vunpack.c.l.bf16 %v63
  %v162 = vunpack.c.l.bf16 %v64
  %v163 = vunpack.c.l.bf16 %v65
  %v164 = vunpack.c.l.bf16 %v66
  %v165 = vunpack.c.l.bf16 %v67
  %v166 = vunpack.c.l.bf16 %v68
  %v167 = vunpack.c.l.bf16 %v69
  %v168 = vunpack.c.l.bf16 %v70
  %v169 = vunpack.c.l.bf16 %v71
  %v170 = vunpack.c.l.bf16 %v72
  %v171 = vunpack.c.l.bf16 %v73
  %v172 = vunpack.c.l.bf16 %v74
  %v173 = vunpack.c.l.bf16 %v75
  %v174 = vunpack.c.l.bf16 %v76
  %v175 = vunpack.c.l.bf16 %v77
  %v176 = vunpack.c.l.bf16 %v78
  %v177 = vunpack.c.l.bf16 %v79
  %v178 = vunpack.c.l.bf16 %v80
  %v179 = vunpack.c.l.bf16 %v81
  %v180 = vunpack.c.l.bf16 %v82
  %v181 = vunpack.c.l.bf16 %v83
  %v182 = vunpack.c.l.bf16 %v84
  %v183 = vunpack.c.l.bf16 %v85
  %v184 = vunpack.c.l.bf16 %v86
  %v185 = vunpack.c.l.bf16 %v87
  %v186 = vunpack.c.l.bf16 %v88
  %v187 = vunpack.c.l.bf16 %v89
  %v188 = vunpack.c.l.bf16 %v90
  %v189 = vunpack.c.l.bf16 %v91
  %v190 = vunpack.c.l.bf16 %v92
  %v191 = vunpack.c.l.bf16 %v93
  %v192 = vunpack.c.l.bf16 %v94
  %v193 = vunpack.c.l.bf16 %v95
  %v194 = vunpack.c.l.bf16 %v96
  %v195 = vunpack.c.l.bf16 %v97
  %v196 = vunpack.c.l.bf16 %v98
  %v197 = vunpack.c.l.bf16 %v99
  %v198 = vunpack.c.l.bf16 %v100
  %v199 = vunpack.c.l.bf16 %v101
  %v200 = vunpack.c.l.bf16 %v102
  %v201 = vunpack.c.l.bf16 %v103
  %v202 = vunpack.c.l.bf16 %v104
  %v203 = vunpack.c.l.bf16 %v105
  %v204 = vunpack.c.l.bf16 %v106
  %v205 = vunpack.c.l.bf16 %v107
  %v206 = vunpack.c.l.bf16 %v108
  %v207 = vunpack.c.l.bf16 %v109
  %v208 = vunpack.c.l.bf16 %v110
  %v209 = vunpack.c.l.bf16 %v111
  %v210 = vunpack.c.l.bf16 %v112
  %v211 = vunpack.c.l.bf16 %v113
  %v212 = vunpack.c.l.bf16 %v114
  %v213 = vunpack.c.l.bf16 %v115
  %v214 = vunpack.c.l.bf16 %v116
  %v215 = vunpack.c.l.bf16 %v117
  %v216 = vunpack.c.l.bf16 %v118
  %v217 = vunpack.c.l.bf16 %v119
  %v218 = vunpack.c.l.bf16 %v120
  %v219 = vunpack.c.l.bf16 %v121
  %v220 = vunpack.c.l.bf16 %v122
  %v221 = vunpack.c.l.bf16 %v123
  %v222 = vunpack.c.l.bf16 %v124
  %v223 = vunpack.c.l.bf16 %v125
  %v224 = vunpack.c.l.bf16 %v126
  %v225 = vunpack.c.l.bf16 %v127
  %v226 = vunpack.c.l.bf16 %v128
  %v227 = vunpack.c.l.bf16 %v129
  %v228 = vunpack.c.l.bf16 %v130
  %v229 = vunpack.c.l.bf16 %v131
  %v230 = vunpack.c.l.bf16 %v132
  %v231 = vunpack.c.l.bf16 %v133
  %v232 = vunpack.c.l.bf16 %v134
  %v233 = vunpack.c.l.bf16 %v135
  %v234 = vunpack.c.l.bf16 %v136
  %v235 = vunpack.c.l.bf16 %v137
  %v236 = vunpack.c.l.bf16 %v138
  %v237 = vunpack.c.l.bf16 %v139
  %v238 = vld [vmem:[%s2] sm:$0xff]
  %v239 = vld [vmem:[%s2 + $0x8] sm:$0xff]
  %v240 = vld [vmem:[%s2 + $0x10] sm:$0xff]
  %v241 = vld [vmem:[%s2 + $0x18] sm:$0xff]
  %243 = vset.pattern.permute.xlu0 0
  %244 = vperm.xlu0 %243, %v238
  %v245 = vpop.permute.xlu0 %244
  %248 = vset.pattern.permute.xlu0 0
  %249 = vperm.xlu0 %248, %v239
  %v250 = vpop.permute.xlu0 %249
  %253 = vset.pattern.permute.xlu0 0
  %254 = vperm.xlu0 %253, %v240
  %v255 = vpop.permute.xlu0 %254
  %258 = vset.pattern.permute.xlu0 0
  %259 = vperm.xlu0 %258, %v241
  %v260 = vpop.permute.xlu0 %259
  %vm262 = vcmask 130048
  %v264 = vsel %vm262, %v20, 0
  %v267 = vsel %vm262, %v27, 0
  %v270 = vsel %vm262, %v34, 0
  %v273 = vsel %vm262, %v41, 0
  %275 = vmatpush.msra.mxu0 %v155
  %276 = vmatpush.msra.mxu0 %v154
  %277 = vmatpush.msra.mxu0 %v153
  %278 = vmatpush.msra.mxu0 %v152
  %279 = vmatpush.msra.mxu0 %v151
  %280 = vmatpush.msra.mxu0 %v150
  %281 = vmatpush.msra.mxu0 %v149
  %282 = vmatpush.msra.mxu0 %v148
  %283 = vmatpush.msra.mxu0 %v147
  %284 = vmatpush.msra.mxu0 %v146
  %285 = vmatpush.msra.mxu0 %v145
  %286 = vmatpush.msra.mxu0 %v144
  %287 = vmatpush.msra.mxu0 %v143
  %288 = vmatpush.msra.mxu0 %v142
  %289 = vmatpush.msra.mxu0 %v141
  %290 = vmatpush.msra.mxu0 %v140
  %291 = vmatmul.f32.gmra.mxu0 %v14
  %v292 = vpop.f32.mrf.mxu0
  %v293 = vadd.f32 %v245, %v292
  %294 = vmatmul.f32.gmra.mxu0 %v21
  %v295 = vpop.f32.mrf.mxu0
  %v296 = vadd.f32 %v250, %v295
  %297 = vmatmul.f32.gmra.mxu0 %v28
  %v298 = vpop.f32.mrf.mxu0
  %v299 = vadd.f32 %v255, %v298
  %300 = vmatmul.f32.gmra.mxu0 %v35
  %v301 = vpop.f32.mrf.mxu0
  %v302 = vadd.f32 %v260, %v301
  %303 = vdwg.mxu0
  %304 = vmatpush.msra.mxu0 %v171
  %305 = vmatpush.msra.mxu0 %v170
  %306 = vmatpush.msra.mxu0 %v169
  %307 = vmatpush.msra.mxu0 %v168
  %308 = vmatpush.msra.mxu0 %v167
  %309 = vmatpush.msra.mxu0 %v166
  %310 = vmatpush.msra.mxu0 %v165
  %311 = vmatpush.msra.mxu0 %v164
  %312 = vmatpush.msra.mxu0 %v163
  %313 = vmatpush.msra.mxu0 %v162
  %314 = vmatpush.msra.mxu0 %v161
  %315 = vmatpush.msra.mxu0 %v160
  %316 = vmatpush.msra.mxu0 %v159
  %317 = vmatpush.msra.mxu0 %v158
  %318 = vmatpush.msra.mxu0 %v157
  %319 = vmatpush.msra.mxu0 %v156
  %320 = vmatmul.f32.gmra.mxu0 %v15
  %v321 = vpop.f32.mrf.mxu0
  %v322 = vadd.f32 %v293, %v321
  %323 = vmatmul.f32.gmra.mxu0 %v22
  %v324 = vpop.f32.mrf.mxu0
  %v325 = vadd.f32 %v296, %v324
  %326 = vmatmul.f32.gmra.mxu0 %v29
  %v327 = vpop.f32.mrf.mxu0
  %v328 = vadd.f32 %v299, %v327
  %329 = vmatmul.f32.gmra.mxu0 %v36
  %v330 = vpop.f32.mrf.mxu0
  %v331 = vadd.f32 %v302, %v330
  %332 = vdwg.mxu0
  %333 = vmatpush.msra.mxu0 %v187
  %334 = vmatpush.msra.mxu0 %v186
  %335 = vmatpush.msra.mxu0 %v185
  %336 = vmatpush.msra.mxu0 %v184
  %337 = vmatpush.msra.mxu0 %v183
  %338 = vmatpush.msra.mxu0 %v182
  %339 = vmatpush.msra.mxu0 %v181
  %340 = vmatpush.msra.mxu0 %v180
  %341 = vmatpush.msra.mxu0 %v179
  %342 = vmatpush.msra.mxu0 %v178
  %343 = vmatpush.msra.mxu0 %v177
  %344 = vmatpush.msra.mxu0 %v176
  %345 = vmatpush.msra.mxu0 %v175
  %346 = vmatpush.msra.mxu0 %v174
  %347 = vmatpush.msra.mxu0 %v173
  %348 = vmatpush.msra.mxu0 %v172
  %349 = vmatmul.f32.gmra.mxu0 %v16
  %v350 = vpop.f32.mrf.mxu0
  %v351 = vadd.f32 %v322, %v350
  %352 = vmatmul.f32.gmra.mxu0 %v23
  %v353 = vpop.f32.mrf.mxu0
  %v354 = vadd.f32 %v325, %v353
  %355 = vmatmul.f32.gmra.mxu0 %v30
  %v356 = vpop.f32.mrf.mxu0
  %v357 = vadd.f32 %v328, %v356
  %358 = vmatmul.f32.gmra.mxu0 %v37
  %v359 = vpop.f32.mrf.mxu0
  %v360 = vadd.f32 %v331, %v359
  %361 = vdwg.mxu0
  %362 = vmatpush.msra.mxu0 %v203
  %363 = vmatpush.msra.mxu0 %v202
  %364 = vmatpush.msra.mxu0 %v201
  %365 = vmatpush.msra.mxu0 %v200
  %366 = vmatpush.msra.mxu0 %v199
  %367 = vmatpush.msra.mxu0 %v198
  %368 = vmatpush.msra.mxu0 %v197
  %369 = vmatpush.msra.mxu0 %v196
  %370 = vmatpush.msra.mxu0 %v195
  %371 = vmatpush.msra.mxu0 %v194
  %372 = vmatpush.msra.mxu0 %v193
  %373 = vmatpush.msra.mxu0 %v192
  %374 = vmatpush.msra.mxu0 %v191
  %375 = vmatpush.msra.mxu0 %v190
  %376 = vmatpush.msra.mxu0 %v189
  %377 = vmatpush.msra.mxu0 %v188
  %378 = vmatmul.f32.gmra.mxu0 %v17
  %v379 = vpop.f32.mrf.mxu0
  %v380 = vadd.f32 %v351, %v379
  %381 = vmatmul.f32.gmra.mxu0 %v24
  %v382 = vpop.f32.mrf.mxu0
  %v383 = vadd.f32 %v354, %v382
  %384 = vmatmul.f32.gmra.mxu0 %v31
  %v385 = vpop.f32.mrf.mxu0
  %v386 = vadd.f32 %v357, %v385
  %387 = vmatmul.f32.gmra.mxu0 %v38
  %v388 = vpop.f32.mrf.mxu0
  %v389 = vadd.f32 %v360, %v388
  %390 = vdwg.mxu0
  %391 = vmatpush.msra.mxu0 %v219
  %392 = vmatpush.msra.mxu0 %v218
  %393 = vmatpush.msra.mxu0 %v217
  %394 = vmatpush.msra.mxu0 %v216
  %395 = vmatpush.msra.mxu0 %v215
  %396 = vmatpush.msra.mxu0 %v214
  %397 = vmatpush.msra.mxu0 %v213
  %398 = vmatpush.msra.mxu0 %v212
  %399 = vmatpush.msra.mxu0 %v211
  %400 = vmatpush.msra.mxu0 %v210
  %401 = vmatpush.msra.mxu0 %v209
  %402 = vmatpush.msra.mxu0 %v208
  %403 = vmatpush.msra.mxu0 %v207
  %404 = vmatpush.msra.mxu0 %v206
  %405 = vmatpush.msra.mxu0 %v205
  %406 = vmatpush.msra.mxu0 %v204
  %407 = vmatmul.f32.gmra.mxu0 %v18
  %v408 = vpop.f32.mrf.mxu0
  %v409 = vadd.f32 %v380, %v408
  %410 = vmatmul.f32.gmra.mxu0 %v25
  %v411 = vpop.f32.mrf.mxu0
  %v412 = vadd.f32 %v383, %v411
  %413 = vmatmul.f32.gmra.mxu0 %v32
  %v414 = vpop.f32.mrf.mxu0
  %v415 = vadd.f32 %v386, %v414
  %416 = vmatmul.f32.gmra.mxu0 %v39
  %v417 = vpop.f32.mrf.mxu0
  %v418 = vadd.f32 %v389, %v417
  %419 = vdwg.mxu0
  %420 = vmatpush.msra.mxu0 %v235
  %421 = vmatpush.msra.mxu0 %v234
  %422 = vmatpush.msra.mxu0 %v233
  %423 = vmatpush.msra.mxu0 %v232
  %424 = vmatpush.msra.mxu0 %v231
  %425 = vmatpush.msra.mxu0 %v230
  %426 = vmatpush.msra.mxu0 %v229
  %427 = vmatpush.msra.mxu0 %v228
  %428 = vmatpush.msra.mxu0 %v227
  %429 = vmatpush.msra.mxu0 %v226
  %430 = vmatpush.msra.mxu0 %v225
  %431 = vmatpush.msra.mxu0 %v224
  %432 = vmatpush.msra.mxu0 %v223
  %433 = vmatpush.msra.mxu0 %v222
  %434 = vmatpush.msra.mxu0 %v221
  %435 = vmatpush.msra.mxu0 %v220
  %436 = vmatmul.f32.gmra.mxu0 %v19
  %v437 = vpop.f32.mrf.mxu0
  %v438 = vadd.f32 %v409, %v437
  %439 = vmatmul.f32.gmra.mxu0 %v26
  %v440 = vpop.f32.mrf.mxu0
  %v441 = vadd.f32 %v412, %v440
  %442 = vmatmul.f32.gmra.mxu0 %v33
  %v443 = vpop.f32.mrf.mxu0
  %v444 = vadd.f32 %v415, %v443
  %445 = vmatmul.f32.gmra.mxu0 %v40
  %v446 = vpop.f32.mrf.mxu0
  %v447 = vadd.f32 %v418, %v446
  %448 = vdwg.mxu0
  %449 = vmatpush.msra.mxu0 0.0
  %450 = vmatpush.msra.mxu0 0.0
  %451 = vmatpush.msra.mxu0 0.0
  %452 = vmatpush.msra.mxu0 0.0
  %453 = vmatpush.msra.mxu0 0.0
  %454 = vmatpush.msra.mxu0 0.0
  %455 = vmatpush.msra.mxu0 0.0
  %456 = vmatpush.msra.mxu0 0.0
  %457 = vmatpush.msra.mxu0 0.0
  %458 = vmatpush.msra.mxu0 0.0
  %459 = vmatpush.msra.mxu0 0.0
  %460 = vmatpush.msra.mxu0 0.0
  %461 = vmatpush.msra.mxu0 0.0
  %462 = vmatpush.msra.mxu0 0.0
  %463 = vmatpush.msra.mxu0 %v237
  %464 = vmatpush.msra.mxu0 %v236
  %465 = vmatmul.f32.gmra.mxu0 %v264
  %v466 = vpop.f32.mrf.mxu0
  %v467 = vadd.f32 %v438, %v466
  %468 = vmatmul.f32.gmra.mxu0 %v267
  %v469 = vpop.f32.mrf.mxu0
  %v470 = vadd.f32 %v441, %v469
  %471 = vmatmul.f32.gmra.mxu0 %v270
  %v472 = vpop.f32.mrf.mxu0
  %v473 = vadd.f32 %v444, %v472
  %474 = vmatmul.f32.gmra.mxu0 %v273
  %v475 = vpop.f32.mrf.mxu0
  %v476 = vadd.f32 %v447, %v475
  %477 = vdwg.mxu0
  %v478 = vmax.f32 %v467, 0.0
  %v479 = vmax.f32 %v470, 0.0
  %v480 = vmax.f32 %v473, 0.0
  %v481 = vmax.f32 %v476, 0.0
  %v482 = vpack.c.bf16 %v478, %v478
  %v483 = vpack.c.bf16 %v479, %v479
  %v484 = vpack.c.bf16 %v480, %v480
  %v485 = vpack.c.bf16 %v481, %v481
  %486 = vst [vmem:[%s3] sm:$0xf] %v482
  %487 = vst [vmem:[%s3 + $0x4] sm:$0xf] %v483
  %488 = vst [vmem:[%s3 + $0x8] sm:$0xf] %v484
  %489 = vst [vmem:[%s3 + $0xc] sm:$0xf] %v485
  // Predicated region
  $region14: #{crowd_counter_forward.13} parent=0 // pred_check
    _
  $region15: #{crowd_counter_forward.13} parent=0 // pred_check_branch
    %491 = sbr.rel (0) target = $region17
  $region16: #{crowd_counter_forward.13} parent=0 // pred_region
    _
  $region17: #{crowd_counter_forward.13} parent=0 // pred_fallthru
    _
  // Predicated region
  $region18: #{crowd_counter_forward.13} parent=0 // pred_check
    _
  $region19: #{crowd_counter_forward.13} parent=0 // pred_check_branch
    %493 = sbr.rel (0) target = $region21
  $region20: #{crowd_counter_forward.13} parent=0 // pred_region
    _
  $region21: #{crowd_counter_forward.13} parent=0 // pred_fallthru
    _

// kernel: crowd_counter_forward.14
$region0: #{crowd_counter_forward.14}
  #allocation0 [shape = 'u32[]', space=smem, size = 0x4, offset = 0x4, fixed_abs, tag = 'smem constant byte address 0x4 - core index']
  #allocation1 [shape = 'u32[72,128]{1,0:T(1,128)}', space=vmem, size = 0x9000, scoped, tag = 'internal scratch']
  %s0 = inlined_call_operand.vmem [shape: f32[16,1568], index: 0, kind: input, shape index: {}]
  %s1 = inlined_call_operand.vmem [shape: bf16[1568,128], index: 1, kind: input, shape index: {}]
  %s2 = inlined_call_operand.vmem [shape: f32[16,1], index: 2, kind: input, shape index: {}]
  %s3 = inlined_call_operand.vmem [shape: bf16[16,128], index: 3, kind: output, shape index: {}]
  %s4 = sld [smem:[#allocation0]]
  $region22: #{crowd_counter_forward.14} parent=0
    _
  %s6 = ssub.s32 1, %s4
  %s7 = scalar_select 0, %s6, %s4
  // Predicated region
  $region2: #{crowd_counter_forward.14} parent=0 // pred_check
    _
  $region3: #{crowd_counter_forward.14} parent=0 // pred_check_branch
    %9 = sbr.rel (0) target = $region5
  $region4: #{crowd_counter_forward.14} parent=0 // pred_region
    _
  $region5: #{crowd_counter_forward.14} parent=0 // pred_fallthru
    _
  // Predicated region
  $region6: #{crowd_counter_forward.14} parent=0 // pred_check
    _
  $region7: #{crowd_counter_forward.14} parent=0 // pred_check_branch
    %11 = sbr.rel (0) target = $region9
  $region8: #{crowd_counter_forward.14} parent=0 // pred_region
    _
  $region9: #{crowd_counter_forward.14} parent=0 // pred_fallthru
    _
  // Predicated region
  $region10: #{crowd_counter_forward.14} parent=0 // pred_check
    _
  $region11: #{crowd_counter_forward.14} parent=0 // pred_check_branch
    %13 = sbr.rel (0) target = $region13
  $region12: #{crowd_counter_forward.14} parent=0 // pred_region
    _
  $region13: #{crowd_counter_forward.14} parent=0 // pred_fallthru
    _
  %v14 = vld [vmem:[%s0] sm:$0xff]
  %v15 = vld [vmem:[%s0 + $0x8] sm:$0xff]
  %v16 = vld [vmem:[%s0 + $0x10] sm:$0xff]
  %v17 = vld [vmem:[%s0 + $0x18] sm:$0xff]
  %v18 = vld [vmem:[%s0 + $0x20] sm:$0xff]
  %v19 = vld [vmem:[%s0 + $0x28] sm:$0xff]
  %v20 = vld [vmem:[%s0 + $0x30] sm:$0xff]
  %v21 = vld [vmem:[%s0 + $0x38] sm:$0xff]
  %v22 = vld [vmem:[%s0 + $0x40] sm:$0xff]
  %v23 = vld [vmem:[%s0 + $0x48] sm:$0xff]
  %v24 = vld [vmem:[%s0 + $0x50] sm:$0xff]
  %v25 = vld [vmem:[%s0 + $0x58] sm:$0xff]
  %v26 = vld [vmem:[%s0 + $0x60] sm:$0xff]
  %v27 = vld [vmem:[%s0 + $0x68] sm:$0xff]
  %v28 = vld [vmem:[%s0 + $0x70] sm:$0xff]
  %v29 = vld [vmem:[%s0 + $0x78] sm:$0xff]
  %v30 = vld [vmem:[%s0 + $0x80] sm:$0xff]
  %v31 = vld [vmem:[%s0 + $0x88] sm:$0xff]
  %v32 = vld [vmem:[%s0 + $0x90] sm:$0xff]
  %v33 = vld [vmem:[%s0 + $0x98] sm:$0xff]
  %v34 = vld [vmem:[%s0 + $0xa0] sm:$0xff]
  %v35 = vld [vmem:[%s0 + $0xa8] sm:$0xff]
  %v36 = vld [vmem:[%s0 + $0xb0] sm:$0xff]
  %v37 = vld [vmem:[%s0 + $0xb8] sm:$0xff]
  %v38 = vld [vmem:[%s0 + $0xc0] sm:$0xff]
  %v39 = vld [vmem:[%s0 + $0xc8] sm:$0xff]
  %v40 = vld [vmem:[%s1] sm:$0xf]
  %v41 = vld [vmem:[%s1 + $0x4] sm:$0xf]
  %v42 = vld [vmem:[%s1 + $0x8] sm:$0xf]
  %v43 = vld [vmem:[%s1 + $0xc] sm:$0xf]
  %v44 = vld [vmem:[%s1 + $0x10] sm:$0xf]
  %v45 = vld [vmem:[%s1 + $0x14] sm:$0xf]
  %v46 = vld [vmem:[%s1 + $0x18] sm:$0xf]
  %v47 = vld [vmem:[%s1 + $0x1c] sm:$0xf]
  %v48 = vld [vmem:[%s1 + $0x20] sm:$0xf]
  %v49 = vld [vmem:[%s1 + $0x24] sm:$0xf]
  %v50 = vld [vmem:[%s1 + $0x28] sm:$0xf]
  %v51 = vld [vmem:[%s1 + $0x2c] sm:$0xf]
  %v52 = vld [vmem:[%s1 + $0x30] sm:$0xf]
  %v53 = vld [vmem:[%s1 + $0x34] sm:$0xf]
  %v54 = vld [vmem:[%s1 + $0x38] sm:$0xf]
  %v55 = vld [vmem:[%s1 + $0x3c] sm:$0xf]
  %v56 = vld [vmem:[%s1 + $0x40] sm:$0xf]
  %v57 = vld [vmem:[%s1 + $0x44] sm:$0xf]
  %v58 = vld [vmem:[%s1 + $0x48] sm:$0xf]
  %v59 = vld [vmem:[%s1 + $0x4c] sm:$0xf]
  %v60 = vld [vmem:[%s1 + $0x50] sm:$0xf]
  %v61 = vld [vmem:[%s1 + $0x54] sm:$0xf]
  %v62 = vld [vmem:[%s1 + $0x58] sm:$0xf]
  %v63 = vld [vmem:[%s1 + $0x5c] sm:$0xf]
  %v64 = vld [vmem:[%s1 + $0x60] sm:$0xf]
  %v65 = vld [vmem:[%s1 + $0x64] sm:$0xf]
  %v66 = vld [vmem:[%s1 + $0x68] sm:$0xf]
  %v67 = vld [vmem:[%s1 + $0x6c] sm:$0xf]
  %v68 = vld [vmem:[%s1 + $0x70] sm:$0xf]
  %v69 = vld [vmem:[%s1 + $0x74] sm:$0xf]
  %v70 = vld [vmem:[%s1 + $0x78] sm:$0xf]
  %v71 = vld [vmem:[%s1 + $0x7c] sm:$0xf]
  %v72 = vld [vmem:[%s1 + $0x80] sm:$0xf]
  %v73 = vld [vmem:[%s1 + $0x84] sm:$0xf]
  %v74 = vld [vmem:[%s1 + $0x88] sm:$0xf]
  %v75 = vld [vmem:[%s1 + $0x8c] sm:$0xf]
  %v76 = vld [vmem:[%s1 + $0x90] sm:$0xf]
  %v77 = vld [vmem:[%s1 + $0x94] sm:$0xf]
  %v78 = vld [vmem:[%s1 + $0x98] sm:$0xf]
  %v79 = vld [vmem:[%s1 + $0x9c] sm:$0xf]
  %v80 = vld [vmem:[%s1 + $0xa0] sm:$0xf]
  %v81 = vld [vmem:[%s1 + $0xa4] sm:$0xf]
  %v82 = vld [vmem:[%s1 + $0xa8] sm:$0xf]
  %v83 = vld [vmem:[%s1 + $0xac] sm:$0xf]
  %v84 = vld [vmem:[%s1 + $0xb0] sm:$0xf]
  %v85 = vld [vmem:[%s1 + $0xb4] sm:$0xf]
  %v86 = vld [vmem:[%s1 + $0xb8] sm:$0xf]
  %v87 = vld [vmem:[%s1 + $0xbc] sm:$0xf]
  %v88 = vld [vmem:[%s1 + $0xc0] sm:$0xf]
  %v89 = vld [vmem:[%s1 + $0xc4] sm:$0xf]
  %v90 = vld [vmem:[%s1 + $0xc8] sm:$0xf]
  %v91 = vld [vmem:[%s1 + $0xcc] sm:$0xf]
  %v92 = vld [vmem:[%s1 + $0xd0] sm:$0xf]
  %v93 = vld [vmem:[%s1 + $0xd4] sm:$0xf]
  %v94 = vld [vmem:[%s1 + $0xd8] sm:$0xf]
  %v95 = vld [vmem:[%s1 + $0xdc] sm:$0xf]
  %v96 = vld [vmem:[%s1 + $0xe0] sm:$0xf]
  %v97 = vld [vmem:[%s1 + $0xe4] sm:$0xf]
  %v98 = vld [vmem:[%s1 + $0xe8] sm:$0xf]
  %v99 = vld [vmem:[%s1 + $0xec] sm:$0xf]
  %v100 = vld [vmem:[%s1 + $0xf0] sm:$0xf]
  %v101 = vld [vmem:[%s1 + $0xf4] sm:$0xf]
  %v102 = vld [vmem:[%s1 + $0xf8] sm:$0xf]
  %v103 = vld [vmem:[%s1 + $0xfc] sm:$0xf]
  %v104 = vld [vmem:[%s1 + $0x100] sm:$0xf]
  %v105 = vld [vmem:[%s1 + $0x104] sm:$0xf]
  %v106 = vld [vmem:[%s1 + $0x108] sm:$0xf]
  %v107 = vld [vmem:[%s1 + $0x10c] sm:$0xf]
  %v108 = vld [vmem:[%s1 + $0x110] sm:$0xf]
  %v109 = vld [vmem:[%s1 + $0x114] sm:$0xf]
  %v110 = vld [vmem:[%s1 + $0x118] sm:$0xf]
  %v111 = vld [vmem:[%s1 + $0x11c] sm:$0xf]
  %v112 = vld [vmem:[%s1 + $0x120] sm:$0xf]
  %v113 = vld [vmem:[%s1 + $0x124] sm:$0xf]
  %v114 = vld [vmem:[%s1 + $0x128] sm:$0xf]
  %v115 = vld [vmem:[%s1 + $0x12c] sm:$0xf]
  %v116 = vld [vmem:[%s1 + $0x130] sm:$0xf]
  %v117 = vld [vmem:[%s1 + $0x134] sm:$0xf]
  %v118 = vld [vmem:[%s1 + $0x138] sm:$0xf]
  %v119 = vld [vmem:[%s1 + $0x13c] sm:$0xf]
  %v120 = vld [vmem:[%s1 + $0x140] sm:$0xf]
  %v121 = vld [vmem:[%s1 + $0x144] sm:$0xf]
  %v122 = vld [vmem:[%s1 + $0x148] sm:$0xf]
  %v123 = vld [vmem:[%s1 + $0x14c] sm:$0xf]
  %v124 = vld [vmem:[%s1 + $0x150] sm:$0xf]
  %v125 = vld [vmem:[%s1 + $0x154] sm:$0xf]
  %v126 = vld [vmem:[%s1 + $0x158] sm:$0xf]
  %v127 = vld [vmem:[%s1 + $0x15c] sm:$0xf]
  %v128 = vld [vmem:[%s1 + $0x160] sm:$0xf]
  %v129 = vld [vmem:[%s1 + $0x164] sm:$0xf]
  %v130 = vld [vmem:[%s1 + $0x168] sm:$0xf]
  %v131 = vld [vmem:[%s1 + $0x16c] sm:$0xf]
  %v132 = vld [vmem:[%s1 + $0x170] sm:$0xf]
  %v133 = vld [vmem:[%s1 + $0x174] sm:$0xf]
  %v134 = vld [vmem:[%s1 + $0x178] sm:$0xf]
  %v135 = vld [vmem:[%s1 + $0x17c] sm:$0xf]
  %v136 = vld [vmem:[%s1 + $0x180] sm:$0xf]
  %v137 = vld [vmem:[%s1 + $0x184] sm:$0xf]
  %v138 = vld [vmem:[%s1 + $0x188] sm:$0xf]
  %v139 = vld [vmem:[%s1 + $0x18c] sm:$0xf]
  %v140 = vld [vmem:[%s1 + $0x190] sm:$0xf]
  %v141 = vld [vmem:[%s1 + $0x194] sm:$0xf]
  %v142 = vld [vmem:[%s1 + $0x198] sm:$0xf]
  %v143 = vld [vmem:[%s1 + $0x19c] sm:$0xf]
  %v144 = vld [vmem:[%s1 + $0x1a0] sm:$0xf]
  %v145 = vld [vmem:[%s1 + $0x1a4] sm:$0xf]
  %v146 = vld [vmem:[%s1 + $0x1a8] sm:$0xf]
  %v147 = vld [vmem:[%s1 + $0x1ac] sm:$0xf]
  %v148 = vld [vmem:[%s1 + $0x1b0] sm:$0xf]
  %v149 = vld [vmem:[%s1 + $0x1b4] sm:$0xf]
  %v150 = vld [vmem:[%s1 + $0x1b8] sm:$0xf]
  %v151 = vld [vmem:[%s1 + $0x1bc] sm:$0xf]
  %v152 = vld [vmem:[%s1 + $0x1c0] sm:$0xf]
  %v153 = vld [vmem:[%s1 + $0x1c4] sm:$0xf]
  %v154 = vld [vmem:[%s1 + $0x1c8] sm:$0xf]
  %v155 = vld [vmem:[%s1 + $0x1cc] sm:$0xf]
  %v156 = vld [vmem:[%s1 + $0x1d0] sm:$0xf]
  %v157 = vld [vmem:[%s1 + $0x1d4] sm:$0xf]
  %v158 = vld [vmem:[%s1 + $0x1d8] sm:$0xf]
  %v159 = vld [vmem:[%s1 + $0x1dc] sm:$0xf]
  %v160 = vld [vmem:[%s1 + $0x1e0] sm:$0xf]
  %v161 = vld [vmem:[%s1 + $0x1e4] sm:$0xf]
  %v162 = vld [vmem:[%s1 + $0x1e8] sm:$0xf]
  %v163 = vld [vmem:[%s1 + $0x1ec] sm:$0xf]
  %v164 = vld [vmem:[%s1 + $0x1f0] sm:$0xf]
  %v165 = vld [vmem:[%s1 + $0x1f4] sm:$0xf]
  %v166 = vld [vmem:[%s1 + $0x1f8] sm:$0xf]
  %v167 = vld [vmem:[%s1 + $0x1fc] sm:$0xf]
  %v168 = vld [vmem:[%s1 + $0x200] sm:$0xf]
  %v169 = vld [vmem:[%s1 + $0x204] sm:$0xf]
  %v170 = vld [vmem:[%s1 + $0x208] sm:$0xf]
  %v171 = vld [vmem:[%s1 + $0x20c] sm:$0xf]
  %v172 = vld [vmem:[%s1 + $0x210] sm:$0xf]
  %v173 = vld [vmem:[%s1 + $0x214] sm:$0xf]
  %v174 = vld [vmem:[%s1 + $0x218] sm:$0xf]
  %v175 = vld [vmem:[%s1 + $0x21c] sm:$0xf]
  %v176 = vld [vmem:[%s1 + $0x220] sm:$0xf]
  %v177 = vld [vmem:[%s1 + $0x224] sm:$0xf]
  %v178 = vld [vmem:[%s1 + $0x228] sm:$0xf]
  %v179 = vld [vmem:[%s1 + $0x22c] sm:$0xf]
  %v180 = vld [vmem:[%s1 + $0x230] sm:$0xf]
  %v181 = vld [vmem:[%s1 + $0x234] sm:$0xf]
  %v182 = vld [vmem:[%s1 + $0x238] sm:$0xf]
  %v183 = vld [vmem:[%s1 + $0x23c] sm:$0xf]
  %v184 = vld [vmem:[%s1 + $0x240] sm:$0xf]
  %v185 = vld [vmem:[%s1 + $0x244] sm:$0xf]
  %v186 = vld [vmem:[%s1 + $0x248] sm:$0xf]
  %v187 = vld [vmem:[%s1 + $0x24c] sm:$0xf]
  %v188 = vld [vmem:[%s1 + $0x250] sm:$0xf]
  %v189 = vld [vmem:[%s1 + $0x254] sm:$0xf]
  %v190 = vld [vmem:[%s1 + $0x258] sm:$0xf]
  %v191 = vld [vmem:[%s1 + $0x25c] sm:$0xf]
  %v192 = vld [vmem:[%s1 + $0x260] sm:$0xf]
  %v193 = vld [vmem:[%s1 + $0x264] sm:$0xf]
  %v194 = vld [vmem:[%s1 + $0x268] sm:$0xf]
  %v195 = vld [vmem:[%s1 + $0x26c] sm:$0xf]
  %v196 = vld [vmem:[%s1 + $0x270] sm:$0xf]
  %v197 = vld [vmem:[%s1 + $0x274] sm:$0xf]
  %v198 = vld [vmem:[%s1 + $0x278] sm:$0xf]
  %v199 = vld [vmem:[%s1 + $0x27c] sm:$0xf]
  %v200 = vld [vmem:[%s1 + $0x280] sm:$0xf]
  %v201 = vld [vmem:[%s1 + $0x284] sm:$0xf]
  %v202 = vld [vmem:[%s1 + $0x288] sm:$0xf]
  %v203 = vld [vmem:[%s1 + $0x28c] sm:$0xf]
  %v204 = vld [vmem:[%s1 + $0x290] sm:$0xf]
  %v205 = vld [vmem:[%s1 + $0x294] sm:$0xf]
  %v206 = vld [vmem:[%s1 + $0x298] sm:$0xf]
  %v207 = vld [vmem:[%s1 + $0x29c] sm:$0xf]
  %v208 = vld [vmem:[%s1 + $0x2a0] sm:$0xf]
  %v209 = vld [vmem:[%s1 + $0x2a4] sm:$0xf]
  %v210 = vld [vmem:[%s1 + $0x2a8] sm:$0xf]
  %v211 = vld [vmem:[%s1 + $0x2ac] sm:$0xf]
  %v212 = vld [vmem:[%s1 + $0x2b0] sm:$0xf]
  %v213 = vld [vmem:[%s1 + $0x2b4] sm:$0xf]
  %v214 = vld [vmem:[%s1 + $0x2b8] sm:$0xf]
  %v215 = vld [vmem:[%s1 + $0x2bc] sm:$0xf]
  %v216 = vld [vmem:[%s1 + $0x2c0] sm:$0xf]
  %v217 = vld [vmem:[%s1 + $0x2c4] sm:$0xf]
  %v218 = vld [vmem:[%s1 + $0x2c8] sm:$0xf]
  %v219 = vld [vmem:[%s1 + $0x2cc] sm:$0xf]
  %v220 = vld [vmem:[%s1 + $0x2d0] sm:$0xf]
  %v221 = vld [vmem:[%s1 + $0x2d4] sm:$0xf]
  %v222 = vld [vmem:[%s1 + $0x2d8] sm:$0xf]
  %v223 = vld [vmem:[%s1 + $0x2dc] sm:$0xf]
  %v224 = vld [vmem:[%s1 + $0x2e0] sm:$0xf]
  %v225 = vld [vmem:[%s1 + $0x2e4] sm:$0xf]
  %v226 = vld [vmem:[%s1 + $0x2e8] sm:$0xf]
  %v227 = vld [vmem:[%s1 + $0x2ec] sm:$0xf]
  %v228 = vld [vmem:[%s1 + $0x2f0] sm:$0xf]
  %v229 = vld [vmem:[%s1 + $0x2f4] sm:$0xf]
  %v230 = vld [vmem:[%s1 + $0x2f8] sm:$0xf]
  %v231 = vld [vmem:[%s1 + $0x2fc] sm:$0xf]
  %v232 = vld [vmem:[%s1 + $0x300] sm:$0xf]
  %v233 = vld [vmem:[%s1 + $0x304] sm:$0xf]
  %v234 = vld [vmem:[%s1 + $0x308] sm:$0xf]
  %v235 = vld [vmem:[%s1 + $0x30c] sm:$0xf]
  %v236 = vunpack.c.l.bf16 %v40
  %v237 = vunpack.c.l.bf16 %v41
  %v238 = vunpack.c.l.bf16 %v42
  %v239 = vunpack.c.l.bf16 %v43
  %v240 = vunpack.c.l.bf16 %v44
  %v241 = vunpack.c.l.bf16 %v45
  %v242 = vunpack.c.l.bf16 %v46
  %v243 = vunpack.c.l.bf16 %v47
  %v244 = vunpack.c.l.bf16 %v48
  %v245 = vunpack.c.l.bf16 %v49
  %v246 = vunpack.c.l.bf16 %v50
  %v247 = vunpack.c.l.bf16 %v51
  %v248 = vunpack.c.l.bf16 %v52
  %v249 = vunpack.c.l.bf16 %v53
  %v250 = vunpack.c.l.bf16 %v54
  %v251 = vunpack.c.l.bf16 %v55
  %v252 = vunpack.c.l.bf16 %v56
  %v253 = vunpack.c.l.bf16 %v57
  %v254 = vunpack.c.l.bf16 %v58
  %v255 = vunpack.c.l.bf16 %v59
  %v256 = vunpack.c.l.bf16 %v60
  %v257 = vunpack.c.l.bf16 %v61
  %v258 = vunpack.c.l.bf16 %v62
  %v259 = vunpack.c.l.bf16 %v63
  %v260 = vunpack.c.l.bf16 %v64
  %v261 = vunpack.c.l.bf16 %v65
  %v262 = vunpack.c.l.bf16 %v66
  %v263 = vunpack.c.l.bf16 %v67
  %v264 = vunpack.c.l.bf16 %v68
  %v265 = vunpack.c.l.bf16 %v69
  %v266 = vunpack.c.l.bf16 %v70
  %v267 = vunpack.c.l.bf16 %v71
  %v268 = vunpack.c.l.bf16 %v72
  %v269 = vunpack.c.l.bf16 %v73
  %v270 = vunpack.c.l.bf16 %v74
  %v271 = vunpack.c.l.bf16 %v75
  %v272 = vunpack.c.l.bf16 %v76
  %v273 = vunpack.c.l.bf16 %v77
  %v274 = vunpack.c.l.bf16 %v78
  %v275 = vunpack.c.l.bf16 %v79
  %v276 = vunpack.c.l.bf16 %v80
  %v277 = vunpack.c.l.bf16 %v81
  %v278 = vunpack.c.l.bf16 %v82
  %v279 = vunpack.c.l.bf16 %v83
  %v280 = vunpack.c.l.bf16 %v84
  %v281 = vunpack.c.l.bf16 %v85
  %v282 = vunpack.c.l.bf16 %v86
  %v283 = vunpack.c.l.bf16 %v87
  %v284 = vunpack.c.l.bf16 %v88
  %v285 = vunpack.c.l.bf16 %v89
  %v286 = vunpack.c.l.bf16 %v90
  %v287 = vunpack.c.l.bf16 %v91
  %v288 = vunpack.c.l.bf16 %v92
  %v289 = vunpack.c.l.bf16 %v93
  %v290 = vunpack.c.l.bf16 %v94
  %v291 = vunpack.c.l.bf16 %v95
  %v292 = vunpack.c.l.bf16 %v96
  %v293 = vunpack.c.l.bf16 %v97
  %v294 = vunpack.c.l.bf16 %v98
  %v295 = vunpack.c.l.bf16 %v99
  %v296 = vunpack.c.l.bf16 %v100
  %v297 = vunpack.c.l.bf16 %v101
  %v298 = vunpack.c.l.bf16 %v102
  %v299 = vunpack.c.l.bf16 %v103
  %v300 = vunpack.c.l.bf16 %v104
  %v301 = vunpack.c.l.bf16 %v105
  %v302 = vunpack.c.l.bf16 %v106
  %v303 = vunpack.c.l.bf16 %v107
  %v304 = vunpack.c.l.bf16 %v108
  %v305 = vunpack.c.l.bf16 %v109
  %v306 = vunpack.c.l.bf16 %v110
  %v307 = vunpack.c.l.bf16 %v111
  %v308 = vunpack.c.l.bf16 %v112
  %v309 = vunpack.c.l.bf16 %v113
  %v310 = vunpack.c.l.bf16 %v114
  %v311 = vunpack.c.l.bf16 %v115
  %v312 = vunpack.c.l.bf16 %v116
  %v313 = vunpack.c.l.bf16 %v117
  %v314 = vunpack.c.l.bf16 %v118
  %v315 = vunpack.c.l.bf16 %v119
  %v316 = vunpack.c.l.bf16 %v120
  %v317 = vunpack.c.l.bf16 %v121
  %v318 = vunpack.c.l.bf16 %v122
  %v319 = vunpack.c.l.bf16 %v123
  %v320 = vunpack.c.l.bf16 %v124
  %v321 = vunpack.c.l.bf16 %v125
  %v322 = vunpack.c.l.bf16 %v126
  %v323 = vunpack.c.l.bf16 %v127
  %v324 = vunpack.c.l.bf16 %v128
  %v325 = vunpack.c.l.bf16 %v129
  %v326 = vunpack.c.l.bf16 %v130
  %v327 = vunpack.c.l.bf16 %v131
  %v328 = vunpack.c.l.bf16 %v132
  %v329 = vunpack.c.l.bf16 %v133
  %v330 = vunpack.c.l.bf16 %v134
  %v331 = vunpack.c.l.bf16 %v135
  %v332 = vunpack.c.l.bf16 %v136
  %v333 = vunpack.c.l.bf16 %v137
  %v334 = vunpack.c.l.bf16 %v138
  %v335 = vunpack.c.l.bf16 %v139
  %v336 = vunpack.c.l.bf16 %v140
  %v337 = vunpack.c.l.bf16 %v141
  %v338 = vunpack.c.l.bf16 %v142
  %v339 = vunpack.c.l.bf16 %v143
  %v340 = vunpack.c.l.bf16 %v144
  %v341 = vunpack.c.l.bf16 %v145
  %v342 = vunpack.c.l.bf16 %v146
  %v343 = vunpack.c.l.bf16 %v147
  %v344 = vunpack.c.l.bf16 %v148
  %v345 = vunpack.c.l.bf16 %v149
  %v346 = vunpack.c.l.bf16 %v150
  %v347 = vunpack.c.l.bf16 %v151
  %v348 = vunpack.c.l.bf16 %v152
  %v349 = vunpack.c.l.bf16 %v153
  %v350 = vunpack.c.l.bf16 %v154
  %v351 = vunpack.c.l.bf16 %v155
  %v352 = vunpack.c.l.bf16 %v156
  %v353 = vunpack.c.l.bf16 %v157
  %v354 = vunpack.c.l.bf16 %v158
  %v355 = vunpack.c.l.bf16 %v159
  %v356 = vunpack.c.l.bf16 %v160
  %v357 = vunpack.c.l.bf16 %v161
  %v358 = vunpack.c.l.bf16 %v162
  %v359 = vunpack.c.l.bf16 %v163
  %v360 = vunpack.c.l.bf16 %v164
  %v361 = vunpack.c.l.bf16 %v165
  %v362 = vunpack.c.l.bf16 %v166
  %v363 = vunpack.c.l.bf16 %v167
  %v364 = vunpack.c.l.bf16 %v168
  %v365 = vunpack.c.l.bf16 %v169
  %v366 = vunpack.c.l.bf16 %v170
  %v367 = vunpack.c.l.bf16 %v171
  %v368 = vunpack.c.l.bf16 %v172
  %v369 = vunpack.c.l.bf16 %v173
  %v370 = vunpack.c.l.bf16 %v174
  %v371 = vunpack.c.l.bf16 %v175
  %v372 = vunpack.c.l.bf16 %v176
  %v373 = vunpack.c.l.bf16 %v177
  %v374 = vunpack.c.l.bf16 %v178
  %v375 = vunpack.c.l.bf16 %v179
  %v376 = vunpack.c.l.bf16 %v180
  %v377 = vunpack.c.l.bf16 %v181
  %v378 = vunpack.c.l.bf16 %v182
  %v379 = vunpack.c.l.bf16 %v183
  %v380 = vunpack.c.l.bf16 %v184
  %v381 = vunpack.c.l.bf16 %v185
  %v382 = vunpack.c.l.bf16 %v186
  %v383 = vunpack.c.l.bf16 %v187
  %v384 = vunpack.c.l.bf16 %v188
  %v385 = vunpack.c.l.bf16 %v189
  %v386 = vunpack.c.l.bf16 %v190
  %v387 = vunpack.c.l.bf16 %v191
  %v388 = vunpack.c.l.bf16 %v192
  %v389 = vunpack.c.l.bf16 %v193
  %v390 = vunpack.c.l.bf16 %v194
  %v391 = vunpack.c.l.bf16 %v195
  %v392 = vunpack.c.l.bf16 %v196
  %v393 = vunpack.c.l.bf16 %v197
  %v394 = vunpack.c.l.bf16 %v198
  %v395 = vunpack.c.l.bf16 %v199
  %v396 = vunpack.c.l.bf16 %v200
  %v397 = vunpack.c.l.bf16 %v201
  %v398 = vunpack.c.l.bf16 %v202
  %v399 = vunpack.c.l.bf16 %v203
  %v400 = vunpack.c.l.bf16 %v204
  %v401 = vunpack.c.l.bf16 %v205
  %v402 = vunpack.c.l.bf16 %v206
  %v403 = vunpack.c.l.bf16 %v207
  %v404 = vunpack.c.l.bf16 %v208
  %v405 = vunpack.c.l.bf16 %v209
  %v406 = vunpack.c.l.bf16 %v210
  %v407 = vunpack.c.l.bf16 %v211
  %v408 = vunpack.c.l.bf16 %v212
  %v409 = vunpack.c.l.bf16 %v213
  %v410 = vunpack.c.l.bf16 %v214
  %v411 = vunpack.c.l.bf16 %v215
  %v412 = vunpack.c.l.bf16 %v216
  %v413 = vunpack.c.l.bf16 %v217
  %v414 = vunpack.c.l.bf16 %v218
  %v415 = vunpack.c.l.bf16 %v219
  %v416 = vunpack.c.l.bf16 %v220
  %v417 = vunpack.c.l.bf16 %v221
  %v418 = vunpack.c.l.bf16 %v222
  %v419 = vunpack.c.l.bf16 %v223
  %v420 = vunpack.c.l.bf16 %v224
  %v421 = vunpack.c.l.bf16 %v225
  %v422 = vunpack.c.l.bf16 %v226
  %v423 = vunpack.c.l.bf16 %v227
  %v424 = vunpack.c.l.bf16 %v228
  %v425 = vunpack.c.l.bf16 %v229
  %v426 = vunpack.c.l.bf16 %v230
  %v427 = vunpack.c.l.bf16 %v231
  %v428 = vunpack.c.l.bf16 %v232
  %v429 = vunpack.c.l.bf16 %v233
  %v430 = vunpack.c.l.bf16 %v234
  %v431 = vunpack.c.l.bf16 %v235
  %v432 = vld [vmem:[%s2] sm:$0xff]
  %v433 = vld [vmem:[%s2 + $0x8] sm:$0xff]
  %435 = vset.pattern.permute.xlu0 0
  %436 = vperm.xlu0 %435, %v432
  %v437 = vpop.permute.xlu0 %436
  %440 = vset.pattern.permute.xlu0 0
  %441 = vperm.xlu0 %440, %v433
  %v442 = vpop.permute.xlu0 %441
  %vm444 = vcmask 261120
  %v446 = vsel %vm444, %v26, 0
  %v449 = vsel %vm444, %v39, 0
  %451 = vmatpush.msra.mxu0 %v251
  %452 = vmatpush.msra.mxu0 %v250
  %453 = vmatpush.msra.mxu0 %v249
  %454 = vmatpush.msra.mxu0 %v248
  %455 = vmatpush.msra.mxu0 %v247
  %456 = vmatpush.msra.mxu0 %v246
  %457 = vmatpush.msra.mxu0 %v245
  %458 = vmatpush.msra.mxu0 %v244
  %459 = vmatpush.msra.mxu0 %v243
  %460 = vmatpush.msra.mxu0 %v242
  %461 = vmatpush.msra.mxu0 %v241
  %462 = vmatpush.msra.mxu0 %v240
  %463 = vmatpush.msra.mxu0 %v239
  %464 = vmatpush.msra.mxu0 %v238
  %465 = vmatpush.msra.mxu0 %v237
  %466 = vmatpush.msra.mxu0 %v236
  %467 = vmatmul.f32.gmra.mxu0 %v14
  %v468 = vpop.f32.mrf.mxu0
  %v469 = vadd.f32 %v437, %v468
  %470 = vmatmul.f32.gmra.mxu0 %v27
  %v471 = vpop.f32.mrf.mxu0
  %v472 = vadd.f32 %v442, %v471
  %473 = vdwg.mxu0
  %474 = vmatpush.msra.mxu0 %v267
  %475 = vmatpush.msra.mxu0 %v266
  %476 = vmatpush.msra.mxu0 %v265
  %477 = vmatpush.msra.mxu0 %v264
  %478 = vmatpush.msra.mxu0 %v263
  %479 = vmatpush.msra.mxu0 %v262
  %480 = vmatpush.msra.mxu0 %v261
  %481 = vmatpush.msra.mxu0 %v260
  %482 = vmatpush.msra.mxu0 %v259
  %483 = vmatpush.msra.mxu0 %v258
  %484 = vmatpush.msra.mxu0 %v257
  %485 = vmatpush.msra.mxu0 %v256
  %486 = vmatpush.msra.mxu0 %v255
  %487 = vmatpush.msra.mxu0 %v254
  %488 = vmatpush.msra.mxu0 %v253
  %489 = vmatpush.msra.mxu0 %v252
  %490 = vmatmul.f32.gmra.mxu0 %v15
  %v491 = vpop.f32.mrf.mxu0
  %v492 = vadd.f32 %v469, %v491
  %493 = vmatmul.f32.gmra.mxu0 %v28
  %v494 = vpop.f32.mrf.mxu0
  %v495 = vadd.f32 %v472, %v494
  %496 = vdwg.mxu0
  %497 = vmatpush.msra.mxu0 %v283
  %498 = vmatpush.msra.mxu0 %v282
  %499 = vmatpush.msra.mxu0 %v281
  %500 = vmatpush.msra.mxu0 %v280
  %501 = vmatpush.msra.mxu0 %v279
  %502 = vmatpush.msra.mxu0 %v278
  %503 = vmatpush.msra.mxu0 %v277
  %504 = vmatpush.msra.mxu0 %v276
  %505 = vmatpush.msra.mxu0 %v275
  %506 = vmatpush.msra.mxu0 %v274
  %507 = vmatpush.msra.mxu0 %v273
  %508 = vmatpush.msra.mxu0 %v272
  %509 = vmatpush.msra.mxu0 %v271
  %510 = vmatpush.msra.mxu0 %v270
  %511 = vmatpush.msra.mxu0 %v269
  %512 = vmatpush.msra.mxu0 %v268
  %513 = vmatmul.f32.gmra.mxu0 %v16
  %v514 = vpop.f32.mrf.mxu0
  %v515 = vadd.f32 %v492, %v514
  %516 = vmatmul.f32.gmra.mxu0 %v29
  %v517 = vpop.f32.mrf.mxu0
  %v518 = vadd.f32 %v495, %v517
  %519 = vdwg.mxu0
  %520 = vmatpush.msra.mxu0 %v299
  %521 = vmatpush.msra.mxu0 %v298
  %522 = vmatpush.msra.mxu0 %v297
  %523 = vmatpush.msra.mxu0 %v296
  %524 = vmatpush.msra.mxu0 %v295
  %525 = vmatpush.msra.mxu0 %v294
  %526 = vmatpush.msra.mxu0 %v293
  %527 = vmatpush.msra.mxu0 %v292
  %528 = vmatpush.msra.mxu0 %v291
  %529 = vmatpush.msra.mxu0 %v290
  %530 = vmatpush.msra.mxu0 %v289
  %531 = vmatpush.msra.mxu0 %v288
  %532 = vmatpush.msra.mxu0 %v287
  %533 = vmatpush.msra.mxu0 %v286
  %534 = vmatpush.msra.mxu0 %v285
  %535 = vmatpush.msra.mxu0 %v284
  %536 = vmatmul.f32.gmra.mxu0 %v17
  %v537 = vpop.f32.mrf.mxu0
  %v538 = vadd.f32 %v515, %v537
  %539 = vmatmul.f32.gmra.mxu0 %v30
  %v540 = vpop.f32.mrf.mxu0
  %v541 = vadd.f32 %v518, %v540
  %542 = vdwg.mxu0
  %543 = vmatpush.msra.mxu0 %v315
  %544 = vmatpush.msra.mxu0 %v314
  %545 = vmatpush.msra.mxu0 %v313
  %546 = vmatpush.msra.mxu0 %v312
  %547 = vmatpush.msra.mxu0 %v311
  %548 = vmatpush.msra.mxu0 %v310
  %549 = vmatpush.msra.mxu0 %v309
  %550 = vmatpush.msra.mxu0 %v308
  %551 = vmatpush.msra.mxu0 %v307
  %552 = vmatpush.msra.mxu0 %v306
  %553 = vmatpush.msra.mxu0 %v305
  %554 = vmatpush.msra.mxu0 %v304
  %555 = vmatpush.msra.mxu0 %v303
  %556 = vmatpush.msra.mxu0 %v302
  %557 = vmatpush.msra.mxu0 %v301
  %558 = vmatpush.msra.mxu0 %v300
  %559 = vmatmul.f32.gmra.mxu0 %v18
  %v560 = vpop.f32.mrf.mxu0
  %v561 = vadd.f32 %v538, %v560
  %562 = vmatmul.f32.gmra.mxu0 %v31
  %v563 = vpop.f32.mrf.mxu0
  %v564 = vadd.f32 %v541, %v563
  %565 = vdwg.mxu0
  %566 = vmatpush.msra.mxu0 %v331
  %567 = vmatpush.msra.mxu0 %v330
  %568 = vmatpush.msra.mxu0 %v329
  %569 = vmatpush.msra.mxu0 %v328
  %570 = vmatpush.msra.mxu0 %v327
  %571 = vmatpush.msra.mxu0 %v326
  %572 = vmatpush.msra.mxu0 %v325
  %573 = vmatpush.msra.mxu0 %v324
  %574 = vmatpush.msra.mxu0 %v323
  %575 = vmatpush.msra.mxu0 %v322
  %576 = vmatpush.msra.mxu0 %v321
  %577 = vmatpush.msra.mxu0 %v320
  %578 = vmatpush.msra.mxu0 %v319
  %579 = vmatpush.msra.mxu0 %v318
  %580 = vmatpush.msra.mxu0 %v317
  %581 = vmatpush.msra.mxu0 %v316
  %582 = vmatmul.f32.gmra.mxu0 %v19
  %v583 = vpop.f32.mrf.mxu0
  %v584 = vadd.f32 %v561, %v583
  %585 = vmatmul.f32.gmra.mxu0 %v32
  %v586 = vpop.f32.mrf.mxu0
  %v587 = vadd.f32 %v564, %v586
  %588 = vdwg.mxu0
  %589 = vmatpush.msra.mxu0 %v347
  %590 = vmatpush.msra.mxu0 %v346
  %591 = vmatpush.msra.mxu0 %v345
  %592 = vmatpush.msra.mxu0 %v344
  %593 = vmatpush.msra.mxu0 %v343
  %594 = vmatpush.msra.mxu0 %v342
  %595 = vmatpush.msra.mxu0 %v341
  %596 = vmatpush.msra.mxu0 %v340
  %597 = vmatpush.msra.mxu0 %v339
  %598 = vmatpush.msra.mxu0 %v338
  %599 = vmatpush.msra.mxu0 %v337
  %600 = vmatpush.msra.mxu0 %v336
  %601 = vmatpush.msra.mxu0 %v335
  %602 = vmatpush.msra.mxu0 %v334
  %603 = vmatpush.msra.mxu0 %v333
  %604 = vmatpush.msra.mxu0 %v332
  %605 = vmatmul.f32.gmra.mxu0 %v20
  %v606 = vpop.f32.mrf.mxu0
  %v607 = vadd.f32 %v584, %v606
  %608 = vmatmul.f32.gmra.mxu0 %v33
  %v609 = vpop.f32.mrf.mxu0
  %v610 = vadd.f32 %v587, %v609
  %611 = vdwg.mxu0
  %612 = vmatpush.msra.mxu0 %v363
  %613 = vmatpush.msra.mxu0 %v362
  %614 = vmatpush.msra.mxu0 %v361
  %615 = vmatpush.msra.mxu0 %v360
  %616 = vmatpush.msra.mxu0 %v359
  %617 = vmatpush.msra.mxu0 %v358
  %618 = vmatpush.msra.mxu0 %v357
  %619 = vmatpush.msra.mxu0 %v356
  %620 = vmatpush.msra.mxu0 %v355
  %621 = vmatpush.msra.mxu0 %v354
  %622 = vmatpush.msra.mxu0 %v353
  %623 = vmatpush.msra.mxu0 %v352
  %624 = vmatpush.msra.mxu0 %v351
  %625 = vmatpush.msra.mxu0 %v350
  %626 = vmatpush.msra.mxu0 %v349
  %627 = vmatpush.msra.mxu0 %v348
  %628 = vmatmul.f32.gmra.mxu0 %v21
  %v629 = vpop.f32.mrf.mxu0
  %v630 = vadd.f32 %v607, %v629
  %631 = vmatmul.f32.gmra.mxu0 %v34
  %v632 = vpop.f32.mrf.mxu0
  %v633 = vadd.f32 %v610, %v632
  %634 = vdwg.mxu0
  %635 = vmatpush.msra.mxu0 %v379
  %636 = vmatpush.msra.mxu0 %v378
  %637 = vmatpush.msra.mxu0 %v377
  %638 = vmatpush.msra.mxu0 %v376
  %639 = vmatpush.msra.mxu0 %v375
  %640 = vmatpush.msra.mxu0 %v374
  %641 = vmatpush.msra.mxu0 %v373
  %642 = vmatpush.msra.mxu0 %v372
  %643 = vmatpush.msra.mxu0 %v371
  %644 = vmatpush.msra.mxu0 %v370
  %645 = vmatpush.msra.mxu0 %v369
  %646 = vmatpush.msra.mxu0 %v368
  %647 = vmatpush.msra.mxu0 %v367
  %648 = vmatpush.msra.mxu0 %v366
  %649 = vmatpush.msra.mxu0 %v365
  %650 = vmatpush.msra.mxu0 %v364
  %651 = vmatmul.f32.gmra.mxu0 %v22
  %v652 = vpop.f32.mrf.mxu0
  %v653 = vadd.f32 %v630, %v652
  %654 = vmatmul.f32.gmra.mxu0 %v35
  %v655 = vpop.f32.mrf.mxu0
  %v656 = vadd.f32 %v633, %v655
  %657 = vdwg.mxu0
  %658 = vmatpush.msra.mxu0 %v395
  %659 = vmatpush.msra.mxu0 %v394
  %660 = vmatpush.msra.mxu0 %v393
  %661 = vmatpush.msra.mxu0 %v392
  %662 = vmatpush.msra.mxu0 %v391
  %663 = vmatpush.msra.mxu0 %v390
  %664 = vmatpush.msra.mxu0 %v389
  %665 = vmatpush.msra.mxu0 %v388
  %666 = vmatpush.msra.mxu0 %v387
  %667 = vmatpush.msra.mxu0 %v386
  %668 = vmatpush.msra.mxu0 %v385
  %669 = vmatpush.msra.mxu0 %v384
  %670 = vmatpush.msra.mxu0 %v383
  %671 = vmatpush.msra.mxu0 %v382
  %672 = vmatpush.msra.mxu0 %v381
  %673 = vmatpush.msra.mxu0 %v380
  %674 = vmatmul.f32.gmra.mxu0 %v23
  %v675 = vpop.f32.mrf.mxu0
  %v676 = vadd.f32 %v653, %v675
  %677 = vmatmul.f32.gmra.mxu0 %v36
  %v678 = vpop.f32.mrf.mxu0
  %v679 = vadd.f32 %v656, %v678
  %680 = vdwg.mxu0
  %681 = vmatpush.msra.mxu0 %v411
  %682 = vmatpush.msra.mxu0 %v410
  %683 = vmatpush.msra.mxu0 %v409
  %684 = vmatpush.msra.mxu0 %v408
  %685 = vmatpush.msra.mxu0 %v407
  %686 = vmatpush.msra.mxu0 %v406
  %687 = vmatpush.msra.mxu0 %v405
  %688 = vmatpush.msra.mxu0 %v404
  %689 = vmatpush.msra.mxu0 %v403
  %690 = vmatpush.msra.mxu0 %v402
  %691 = vmatpush.msra.mxu0 %v401
  %692 = vmatpush.msra.mxu0 %v400
  %693 = vmatpush.msra.mxu0 %v399
  %694 = vmatpush.msra.mxu0 %v398
  %695 = vmatpush.msra.mxu0 %v397
  %696 = vmatpush.msra.mxu0 %v396
  %697 = vmatmul.f32.gmra.mxu0 %v24
  %v698 = vpop.f32.mrf.mxu0
  %v699 = vadd.f32 %v676, %v698
  %700 = vmatmul.f32.gmra.mxu0 %v37
  %v701 = vpop.f32.mrf.mxu0
  %v702 = vadd.f32 %v679, %v701
  %703 = vdwg.mxu0
  %704 = vmatpush.msra.mxu0 %v427
  %705 = vmatpush.msra.mxu0 %v426
  %706 = vmatpush.msra.mxu0 %v425
  %707 = vmatpush.msra.mxu0 %v424
  %708 = vmatpush.msra.mxu0 %v423
  %709 = vmatpush.msra.mxu0 %v422
  %710 = vmatpush.msra.mxu0 %v421
  %711 = vmatpush.msra.mxu0 %v420
  %712 = vmatpush.msra.mxu0 %v419
  %713 = vmatpush.msra.mxu0 %v418
  %714 = vmatpush.msra.mxu0 %v417
  %715 = vmatpush.msra.mxu0 %v416
  %716 = vmatpush.msra.mxu0 %v415
  %717 = vmatpush.msra.mxu0 %v414
  %718 = vmatpush.msra.mxu0 %v413
  %719 = vmatpush.msra.mxu0 %v412
  %720 = vmatmul.f32.gmra.mxu0 %v25
  %v721 = vpop.f32.mrf.mxu0
  %v722 = vadd.f32 %v699, %v721
  %723 = vmatmul.f32.gmra.mxu0 %v38
  %v724 = vpop.f32.mrf.mxu0
  %v725 = vadd.f32 %v702, %v724
  %726 = vdwg.mxu0
  %727 = vmatpush.msra.mxu0 0.0
  %728 = vmatpush.msra.mxu0 0.0
  %729 = vmatpush.msra.mxu0 0.0
  %730 = vmatpush.msra.mxu0 0.0
  %731 = vmatpush.msra.mxu0 0.0
  %732 = vmatpush.msra.mxu0 0.0
  %733 = vmatpush.msra.mxu0 0.0
  %734 = vmatpush.msra.mxu0 0.0
  %735 = vmatpush.msra.mxu0 0.0
  %736 = vmatpush.msra.mxu0 0.0
  %737 = vmatpush.msra.mxu0 0.0
  %738 = vmatpush.msra.mxu0 0.0
  %739 = vmatpush.msra.mxu0 %v431
  %740 = vmatpush.msra.mxu0 %v430
  %741 = vmatpush.msra.mxu0 %v429
  %742 = vmatpush.msra.mxu0 %v428
  %743 = vmatmul.f32.gmra.mxu0 %v446
  %v744 = vpop.f32.mrf.mxu0
  %v745 = vadd.f32 %v722, %v744
  %746 = vmatmul.f32.gmra.mxu0 %v449
  %v747 = vpop.f32.mrf.mxu0
  %v748 = vadd.f32 %v725, %v747
  %749 = vdwg.mxu0
  %v750 = vmax.f32 %v745, 0.0
  %v751 = vmax.f32 %v748, 0.0
  %v752 = vpack.c.bf16 %v750, %v750
  %v753 = vpack.c.bf16 %v751, %v751
  %754 = vst [vmem:[%s3] sm:$0xf] %v752
  %755 = vst [vmem:[%s3 + $0x4] sm:$0xf] %v753
  // Predicated region
  $region14: #{crowd_counter_forward.14} parent=0 // pred_check
    _
  $region15: #{crowd_counter_forward.14} parent=0 // pred_check_branch
    %757 = sbr.rel (0) target = $region17
  $region16: #{crowd_counter_forward.14} parent=0 // pred_region
    _
  $region17: #{crowd_counter_forward.14} parent=0 // pred_fallthru
    _
  // Predicated region
  $region18: #{crowd_counter_forward.14} parent=0 // pred_check
    _
  $region19: #{crowd_counter_forward.14} parent=0 // pred_check_branch
    %759 = sbr.rel (0) target = $region21
  $region20: #{crowd_counter_forward.14} parent=0 // pred_region
    _
  $region21: #{crowd_counter_forward.14} parent=0 // pred_fallthru
    _

// kernel: crowd_counter_forward.15
$region0: #{crowd_counter_forward.15}
  #allocation0 [shape = 'u32[]', space=smem, size = 0x4, offset = 0x4, fixed_abs, tag = 'smem constant byte address 0x4 - core index']
  #allocation1 [shape = 'u32[72,128]{1,0:T(1,128)}', space=vmem, size = 0x9000, scoped, tag = 'internal scratch']
  %s0 = inlined_call_operand.vmem [shape: f32[8,784], index: 0, kind: input, shape index: {}]
  %s1 = inlined_call_operand.vmem [shape: bf16[784,128], index: 1, kind: input, shape index: {}]
  %s2 = inlined_call_operand.vmem [shape: f32[8,1], index: 2, kind: input, shape index: {}]
  %s3 = inlined_call_operand.vmem [shape: f32[8,128], index: 3, kind: output, shape index: {}]
  %s4 = sld [smem:[#allocation0]]
  $region22: #{crowd_counter_forward.15} parent=0
    _
  %s6 = ssub.s32 1, %s4
  %s7 = scalar_select 0, %s6, %s4
  // Predicated region
  $region2: #{crowd_counter_forward.15} parent=0 // pred_check
    _
  $region3: #{crowd_counter_forward.15} parent=0 // pred_check_branch
    %9 = sbr.rel (0) target = $region5
  $region4: #{crowd_counter_forward.15} parent=0 // pred_region
    _
  $region5: #{crowd_counter_forward.15} parent=0 // pred_fallthru
    _
  // Predicated region
  $region6: #{crowd_counter_forward.15} parent=0 // pred_check
    _
  $region7: #{crowd_counter_forward.15} parent=0 // pred_check_branch
    %11 = sbr.rel (0) target = $region9
  $region8: #{crowd_counter_forward.15} parent=0 // pred_region
    _
  $region9: #{crowd_counter_forward.15} parent=0 // pred_fallthru
    _
  // Predicated region
  $region10: #{crowd_counter_forward.15} parent=0 // pred_check
    _
  $region11: #{crowd_counter_forward.15} parent=0 // pred_check_branch
    %13 = sbr.rel (0) target = $region13
  $region12: #{crowd_counter_forward.15} parent=0 // pred_region
    _
  $region13: #{crowd_counter_forward.15} parent=0 // pred_fallthru
    _
  %v14 = vld [vmem:[%s0] sm:$0xff]
  %v15 = vld [vmem:[%s0 + $0x8] sm:$0xff]
  %v16 = vld [vmem:[%s0 + $0x10] sm:$0xff]
  %v17 = vld [vmem:[%s0 + $0x18] sm:$0xff]
  %v18 = vld [vmem:[%s0 + $0x20] sm:$0xff]
  %v19 = vld [vmem:[%s0 + $0x28] sm:$0xff]
  %v20 = vld [vmem:[%s0 + $0x30] sm:$0xff]
  %v21 = vld [vmem:[%s1] sm:$0xf]
  %v22 = vld [vmem:[%s1 + $0x4] sm:$0xf]
  %v23 = vld [vmem:[%s1 + $0x8] sm:$0xf]
  %v24 = vld [vmem:[%s1 + $0xc] sm:$0xf]
  %v25 = vld [vmem:[%s1 + $0x10] sm:$0xf]
  %v26 = vld [vmem:[%s1 + $0x14] sm:$0xf]
  %v27 = vld [vmem:[%s1 + $0x18] sm:$0xf]
  %v28 = vld [vmem:[%s1 + $0x1c] sm:$0xf]
  %v29 = vld [vmem:[%s1 + $0x20] sm:$0xf]
  %v30 = vld [vmem:[%s1 + $0x24] sm:$0xf]
  %v31 = vld [vmem:[%s1 + $0x28] sm:$0xf]
  %v32 = vld [vmem:[%s1 + $0x2c] sm:$0xf]
  %v33 = vld [vmem:[%s1 + $0x30] sm:$0xf]
  %v34 = vld [vmem:[%s1 + $0x34] sm:$0xf]
  %v35 = vld [vmem:[%s1 + $0x38] sm:$0xf]
  %v36 = vld [vmem:[%s1 + $0x3c] sm:$0xf]
  %v37 = vld [vmem:[%s1 + $0x40] sm:$0xf]
  %v38 = vld [vmem:[%s1 + $0x44] sm:$0xf]
  %v39 = vld [vmem:[%s1 + $0x48] sm:$0xf]
  %v40 = vld [vmem:[%s1 + $0x4c] sm:$0xf]
  %v41 = vld [vmem:[%s1 + $0x50] sm:$0xf]
  %v42 = vld [vmem:[%s1 + $0x54] sm:$0xf]
  %v43 = vld [vmem:[%s1 + $0x58] sm:$0xf]
  %v44 = vld [vmem:[%s1 + $0x5c] sm:$0xf]
  %v45 = vld [vmem:[%s1 + $0x60] sm:$0xf]
  %v46 = vld [vmem:[%s1 + $0x64] sm:$0xf]
  %v47 = vld [vmem:[%s1 + $0x68] sm:$0xf]
  %v48 = vld [vmem:[%s1 + $0x6c] sm:$0xf]
  %v49 = vld [vmem:[%s1 + $0x70] sm:$0xf]
  %v50 = vld [vmem:[%s1 + $0x74] sm:$0xf]
  %v51 = vld [vmem:[%s1 + $0x78] sm:$0xf]
  %v52 = vld [vmem:[%s1 + $0x7c] sm:$0xf]
  %v53 = vld [vmem:[%s1 + $0x80] sm:$0xf]
  %v54 = vld [vmem:[%s1 + $0x84] sm:$0xf]
  %v55 = vld [vmem:[%s1 + $0x88] sm:$0xf]
  %v56 = vld [vmem:[%s1 + $0x8c] sm:$0xf]
  %v57 = vld [vmem:[%s1 + $0x90] sm:$0xf]
  %v58 = vld [vmem:[%s1 + $0x94] sm:$0xf]
  %v59 = vld [vmem:[%s1 + $0x98] sm:$0xf]
  %v60 = vld [vmem:[%s1 + $0x9c] sm:$0xf]
  %v61 = vld [vmem:[%s1 + $0xa0] sm:$0xf]
  %v62 = vld [vmem:[%s1 + $0xa4] sm:$0xf]
  %v63 = vld [vmem:[%s1 + $0xa8] sm:$0xf]
  %v64 = vld [vmem:[%s1 + $0xac] sm:$0xf]
  %v65 = vld [vmem:[%s1 + $0xb0] sm:$0xf]
  %v66 = vld [vmem:[%s1 + $0xb4] sm:$0xf]
  %v67 = vld [vmem:[%s1 + $0xb8] sm:$0xf]
  %v68 = vld [vmem:[%s1 + $0xbc] sm:$0xf]
  %v69 = vld [vmem:[%s1 + $0xc0] sm:$0xf]
  %v70 = vld [vmem:[%s1 + $0xc4] sm:$0xf]
  %v71 = vld [vmem:[%s1 + $0xc8] sm:$0xf]
  %v72 = vld [vmem:[%s1 + $0xcc] sm:$0xf]
  %v73 = vld [vmem:[%s1 + $0xd0] sm:$0xf]
  %v74 = vld [vmem:[%s1 + $0xd4] sm:$0xf]
  %v75 = vld [vmem:[%s1 + $0xd8] sm:$0xf]
  %v76 = vld [vmem:[%s1 + $0xdc] sm:$0xf]
  %v77 = vld [vmem:[%s1 + $0xe0] sm:$0xf]
  %v78 = vld [vmem:[%s1 + $0xe4] sm:$0xf]
  %v79 = vld [vmem:[%s1 + $0xe8] sm:$0xf]
  %v80 = vld [vmem:[%s1 + $0xec] sm:$0xf]
  %v81 = vld [vmem:[%s1 + $0xf0] sm:$0xf]
  %v82 = vld [vmem:[%s1 + $0xf4] sm:$0xf]
  %v83 = vld [vmem:[%s1 + $0xf8] sm:$0xf]
  %v84 = vld [vmem:[%s1 + $0xfc] sm:$0xf]
  %v85 = vld [vmem:[%s1 + $0x100] sm:$0xf]
  %v86 = vld [vmem:[%s1 + $0x104] sm:$0xf]
  %v87 = vld [vmem:[%s1 + $0x108] sm:$0xf]
  %v88 = vld [vmem:[%s1 + $0x10c] sm:$0xf]
  %v89 = vld [vmem:[%s1 + $0x110] sm:$0xf]
  %v90 = vld [vmem:[%s1 + $0x114] sm:$0xf]
  %v91 = vld [vmem:[%s1 + $0x118] sm:$0xf]
  %v92 = vld [vmem:[%s1 + $0x11c] sm:$0xf]
  %v93 = vld [vmem:[%s1 + $0x120] sm:$0xf]
  %v94 = vld [vmem:[%s1 + $0x124] sm:$0xf]
  %v95 = vld [vmem:[%s1 + $0x128] sm:$0xf]
  %v96 = vld [vmem:[%s1 + $0x12c] sm:$0xf]
  %v97 = vld [vmem:[%s1 + $0x130] sm:$0xf]
  %v98 = vld [vmem:[%s1 + $0x134] sm:$0xf]
  %v99 = vld [vmem:[%s1 + $0x138] sm:$0xf]
  %v100 = vld [vmem:[%s1 + $0x13c] sm:$0xf]
  %v101 = vld [vmem:[%s1 + $0x140] sm:$0xf]
  %v102 = vld [vmem:[%s1 + $0x144] sm:$0xf]
  %v103 = vld [vmem:[%s1 + $0x148] sm:$0xf]
  %v104 = vld [vmem:[%s1 + $0x14c] sm:$0xf]
  %v105 = vld [vmem:[%s1 + $0x150] sm:$0xf]
  %v106 = vld [vmem:[%s1 + $0x154] sm:$0xf]
  %v107 = vld [vmem:[%s1 + $0x158] sm:$0xf]
  %v108 = vld [vmem:[%s1 + $0x15c] sm:$0xf]
  %v109 = vld [vmem:[%s1 + $0x160] sm:$0xf]
  %v110 = vld [vmem:[%s1 + $0x164] sm:$0xf]
  %v111 = vld [vmem:[%s1 + $0x168] sm:$0xf]
  %v112 = vld [vmem:[%s1 + $0x16c] sm:$0xf]
  %v113 = vld [vmem:[%s1 + $0x170] sm:$0xf]
  %v114 = vld [vmem:[%s1 + $0x174] sm:$0xf]
  %v115 = vld [vmem:[%s1 + $0x178] sm:$0xf]
  %v116 = vld [vmem:[%s1 + $0x17c] sm:$0xf]
  %v117 = vld [vmem:[%s1 + $0x180] sm:$0xf]
  %v118 = vld [vmem:[%s1 + $0x184] sm:$0xf]
  %v119 = vunpack.c.l.bf16 %v21
  %v120 = vunpack.c.l.bf16 %v22
  %v121 = vunpack.c.l.bf16 %v23
  %v122 = vunpack.c.l.bf16 %v24
  %v123 = vunpack.c.l.bf16 %v25
  %v124 = vunpack.c.l.bf16 %v26
  %v125 = vunpack.c.l.bf16 %v27
  %v126 = vunpack.c.l.bf16 %v28
  %v127 = vunpack.c.l.bf16 %v29
  %v128 = vunpack.c.l.bf16 %v30
  %v129 = vunpack.c.l.bf16 %v31
  %v130 = vunpack.c.l.bf16 %v32
  %v131 = vunpack.c.l.bf16 %v33
  %v132 = vunpack.c.l.bf16 %v34
  %v133 = vunpack.c.l.bf16 %v35
  %v134 = vunpack.c.l.bf16 %v36
  %v135 = vunpack.c.l.bf16 %v37
  %v136 = vunpack.c.l.bf16 %v38
  %v137 = vunpack.c.l.bf16 %v39
  %v138 = vunpack.c.l.bf16 %v40
  %v139 = vunpack.c.l.bf16 %v41
  %v140 = vunpack.c.l.bf16 %v42
  %v141 = vunpack.c.l.bf16 %v43
  %v142 = vunpack.c.l.bf16 %v44
  %v143 = vunpack.c.l.bf16 %v45
  %v144 = vunpack.c.l.bf16 %v46
  %v145 = vunpack.c.l.bf16 %v47
  %v146 = vunpack.c.l.bf16 %v48
  %v147 = vunpack.c.l.bf16 %v49
  %v148 = vunpack.c.l.bf16 %v50
  %v149 = vunpack.c.l.bf16 %v51
  %v150 = vunpack.c.l.bf16 %v52
  %v151 = vunpack.c.l.bf16 %v53
  %v152 = vunpack.c.l.bf16 %v54
  %v153 = vunpack.c.l.bf16 %v55
  %v154 = vunpack.c.l.bf16 %v56
  %v155 = vunpack.c.l.bf16 %v57
  %v156 = vunpack.c.l.bf16 %v58
  %v157 = vunpack.c.l.bf16 %v59
  %v158 = vunpack.c.l.bf16 %v60
  %v159 = vunpack.c.l.bf16 %v61
  %v160 = vunpack.c.l.bf16 %v62
  %v161 = vunpack.c.l.bf16 %v63
  %v162 = vunpack.c.l.bf16 %v64
  %v163 = vunpack.c.l.bf16 %v65
  %v164 = vunpack.c.l.bf16 %v66
  %v165 = vunpack.c.l.bf16 %v67
  %v166 = vunpack.c.l.bf16 %v68
  %v167 = vunpack.c.l.bf16 %v69
  %v168 = vunpack.c.l.bf16 %v70
  %v169 = vunpack.c.l.bf16 %v71
  %v170 = vunpack.c.l.bf16 %v72
  %v171 = vunpack.c.l.bf16 %v73
  %v172 = vunpack.c.l.bf16 %v74
  %v173 = vunpack.c.l.bf16 %v75
  %v174 = vunpack.c.l.bf16 %v76
  %v175 = vunpack.c.l.bf16 %v77
  %v176 = vunpack.c.l.bf16 %v78
  %v177 = vunpack.c.l.bf16 %v79
  %v178 = vunpack.c.l.bf16 %v80
  %v179 = vunpack.c.l.bf16 %v81
  %v180 = vunpack.c.l.bf16 %v82
  %v181 = vunpack.c.l.bf16 %v83
  %v182 = vunpack.c.l.bf16 %v84
  %v183 = vunpack.c.l.bf16 %v85
  %v184 = vunpack.c.l.bf16 %v86
  %v185 = vunpack.c.l.bf16 %v87
  %v186 = vunpack.c.l.bf16 %v88
  %v187 = vunpack.c.l.bf16 %v89
  %v188 = vunpack.c.l.bf16 %v90
  %v189 = vunpack.c.l.bf16 %v91
  %v190 = vunpack.c.l.bf16 %v92
  %v191 = vunpack.c.l.bf16 %v93
  %v192 = vunpack.c.l.bf16 %v94
  %v193 = vunpack.c.l.bf16 %v95
  %v194 = vunpack.c.l.bf16 %v96
  %v195 = vunpack.c.l.bf16 %v97
  %v196 = vunpack.c.l.bf16 %v98
  %v197 = vunpack.c.l.bf16 %v99
  %v198 = vunpack.c.l.bf16 %v100
  %v199 = vunpack.c.l.bf16 %v101
  %v200 = vunpack.c.l.bf16 %v102
  %v201 = vunpack.c.l.bf16 %v103
  %v202 = vunpack.c.l.bf16 %v104
  %v203 = vunpack.c.l.bf16 %v105
  %v204 = vunpack.c.l.bf16 %v106
  %v205 = vunpack.c.l.bf16 %v107
  %v206 = vunpack.c.l.bf16 %v108
  %v207 = vunpack.c.l.bf16 %v109
  %v208 = vunpack.c.l.bf16 %v110
  %v209 = vunpack.c.l.bf16 %v111
  %v210 = vunpack.c.l.bf16 %v112
  %v211 = vunpack.c.l.bf16 %v113
  %v212 = vunpack.c.l.bf16 %v114
  %v213 = vunpack.c.l.bf16 %v115
  %v214 = vunpack.c.l.bf16 %v116
  %v215 = vunpack.c.l.bf16 %v117
  %v216 = vunpack.c.l.bf16 %v118
  %v217 = vld [vmem:[%s2] sm:$0xff]
  %219 = vset.pattern.permute.xlu0 0
  %220 = vperm.xlu0 %219, %v217
  %v221 = vpop.permute.xlu0 %220
  %vm223 = vcmask 130048
  %v225 = vsel %vm223, %v20, 0
  %227 = vmatpush.msra.mxu0 %v134
  %228 = vmatpush.msra.mxu0 %v133
  %229 = vmatpush.msra.mxu0 %v132
  %230 = vmatpush.msra.mxu0 %v131
  %231 = vmatpush.msra.mxu0 %v130
  %232 = vmatpush.msra.mxu0 %v129
  %233 = vmatpush.msra.mxu0 %v128
  %234 = vmatpush.msra.mxu0 %v127
  %235 = vmatpush.msra.mxu0 %v126
  %236 = vmatpush.msra.mxu0 %v125
  %237 = vmatpush.msra.mxu0 %v124
  %238 = vmatpush.msra.mxu0 %v123
  %239 = vmatpush.msra.mxu0 %v122
  %240 = vmatpush.msra.mxu0 %v121
  %241 = vmatpush.msra.mxu0 %v120
  %242 = vmatpush.msra.mxu0 %v119
  %243 = vmatmul.f32.gmra.mxu0 %v14
  %v244 = vpop.f32.mrf.mxu0
  %v245 = vadd.f32 %v221, %v244
  %246 = vdwg.mxu0
  %247 = vmatpush.msra.mxu0 %v150
  %248 = vmatpush.msra.mxu0 %v149
  %249 = vmatpush.msra.mxu0 %v148
  %250 = vmatpush.msra.mxu0 %v147
  %251 = vmatpush.msra.mxu0 %v146
  %252 = vmatpush.msra.mxu0 %v145
  %253 = vmatpush.msra.mxu0 %v144
  %254 = vmatpush.msra.mxu0 %v143
  %255 = vmatpush.msra.mxu0 %v142
  %256 = vmatpush.msra.mxu0 %v141
  %257 = vmatpush.msra.mxu0 %v140
  %258 = vmatpush.msra.mxu0 %v139
  %259 = vmatpush.msra.mxu0 %v138
  %260 = vmatpush.msra.mxu0 %v137
  %261 = vmatpush.msra.mxu0 %v136
  %262 = vmatpush.msra.mxu0 %v135
  %263 = vmatmul.f32.gmra.mxu0 %v15
  %v264 = vpop.f32.mrf.mxu0
  %v265 = vadd.f32 %v245, %v264
  %266 = vdwg.mxu0
  %267 = vmatpush.msra.mxu0 %v166
  %268 = vmatpush.msra.mxu0 %v165
  %269 = vmatpush.msra.mxu0 %v164
  %270 = vmatpush.msra.mxu0 %v163
  %271 = vmatpush.msra.mxu0 %v162
  %272 = vmatpush.msra.mxu0 %v161
  %273 = vmatpush.msra.mxu0 %v160
  %274 = vmatpush.msra.mxu0 %v159
  %275 = vmatpush.msra.mxu0 %v158
  %276 = vmatpush.msra.mxu0 %v157
  %277 = vmatpush.msra.mxu0 %v156
  %278 = vmatpush.msra.mxu0 %v155
  %279 = vmatpush.msra.mxu0 %v154
  %280 = vmatpush.msra.mxu0 %v153
  %281 = vmatpush.msra.mxu0 %v152
  %282 = vmatpush.msra.mxu0 %v151
  %283 = vmatmul.f32.gmra.mxu0 %v16
  %v284 = vpop.f32.mrf.mxu0
  %v285 = vadd.f32 %v265, %v284
  %286 = vdwg.mxu0
  %287 = vmatpush.msra.mxu0 %v182
  %288 = vmatpush.msra.mxu0 %v181
  %289 = vmatpush.msra.mxu0 %v180
  %290 = vmatpush.msra.mxu0 %v179
  %291 = vmatpush.msra.mxu0 %v178
  %292 = vmatpush.msra.mxu0 %v177
  %293 = vmatpush.msra.mxu0 %v176
  %294 = vmatpush.msra.mxu0 %v175
  %295 = vmatpush.msra.mxu0 %v174
  %296 = vmatpush.msra.mxu0 %v173
  %297 = vmatpush.msra.mxu0 %v172
  %298 = vmatpush.msra.mxu0 %v171
  %299 = vmatpush.msra.mxu0 %v170
  %300 = vmatpush.msra.mxu0 %v169
  %301 = vmatpush.msra.mxu0 %v168
  %302 = vmatpush.msra.mxu0 %v167
  %303 = vmatmul.f32.gmra.mxu0 %v17
  %v304 = vpop.f32.mrf.mxu0
  %v305 = vadd.f32 %v285, %v304
  %306 = vdwg.mxu0
  %307 = vmatpush.msra.mxu0 %v198
  %308 = vmatpush.msra.mxu0 %v197
  %309 = vmatpush.msra.mxu0 %v196
  %310 = vmatpush.msra.mxu0 %v195
  %311 = vmatpush.msra.mxu0 %v194
  %312 = vmatpush.msra.mxu0 %v193
  %313 = vmatpush.msra.mxu0 %v192
  %314 = vmatpush.msra.mxu0 %v191
  %315 = vmatpush.msra.mxu0 %v190
  %316 = vmatpush.msra.mxu0 %v189
  %317 = vmatpush.msra.mxu0 %v188
  %318 = vmatpush.msra.mxu0 %v187
  %319 = vmatpush.msra.mxu0 %v186
  %320 = vmatpush.msra.mxu0 %v185
  %321 = vmatpush.msra.mxu0 %v184
  %322 = vmatpush.msra.mxu0 %v183
  %323 = vmatmul.f32.gmra.mxu0 %v18
  %v324 = vpop.f32.mrf.mxu0
  %v325 = vadd.f32 %v305, %v324
  %326 = vdwg.mxu0
  %327 = vmatpush.msra.mxu0 %v214
  %328 = vmatpush.msra.mxu0 %v213
  %329 = vmatpush.msra.mxu0 %v212
  %330 = vmatpush.msra.mxu0 %v211
  %331 = vmatpush.msra.mxu0 %v210
  %332 = vmatpush.msra.mxu0 %v209
  %333 = vmatpush.msra.mxu0 %v208
  %334 = vmatpush.msra.mxu0 %v207
  %335 = vmatpush.msra.mxu0 %v206
  %336 = vmatpush.msra.mxu0 %v205
  %337 = vmatpush.msra.mxu0 %v204
  %338 = vmatpush.msra.mxu0 %v203
  %339 = vmatpush.msra.mxu0 %v202
  %340 = vmatpush.msra.mxu0 %v201
  %341 = vmatpush.msra.mxu0 %v200
  %342 = vmatpush.msra.mxu0 %v199
  %343 = vmatmul.f32.gmra.mxu0 %v19
  %v344 = vpop.f32.mrf.mxu0
  %v345 = vadd.f32 %v325, %v344
  %346 = vdwg.mxu0
  %347 = vmatpush.msra.mxu0 0.0
  %348 = vmatpush.msra.mxu0 0.0
  %349 = vmatpush.msra.mxu0 0.0
  %350 = vmatpush.msra.mxu0 0.0
  %351 = vmatpush.msra.mxu0 0.0
  %352 = vmatpush.msra.mxu0 0.0
  %353 = vmatpush.msra.mxu0 0.0
  %354 = vmatpush.msra.mxu0 0.0
  %355 = vmatpush.msra.mxu0 0.0
  %356 = vmatpush.msra.mxu0 0.0
  %357 = vmatpush.msra.mxu0 0.0
  %358 = vmatpush.msra.mxu0 0.0
  %359 = vmatpush.msra.mxu0 0.0
  %360 = vmatpush.msra.mxu0 0.0
  %361 = vmatpush.msra.mxu0 %v216
  %362 = vmatpush.msra.mxu0 %v215
  %363 = vmatmul.f32.gmra.mxu0 %v225
  %v364 = vpop.f32.mrf.mxu0
  %v365 = vadd.f32 %v345, %v364
  %366 = vdwg.mxu0
  %v367 = vmax.f32 %v365, 0.0
  %368 = vst [vmem:[%s3] sm:$0xff] %v367
  // Predicated region
  $region14: #{crowd_counter_forward.15} parent=0 // pred_check
    _
  $region15: #{crowd_counter_forward.15} parent=0 // pred_check_branch
    %370 = sbr.rel (0) target = $region17
  $region16: #{crowd_counter_forward.15} parent=0 // pred_region
    _
  $region17: #{crowd_counter_forward.15} parent=0 // pred_fallthru
    _
  // Predicated region
  $region18: #{crowd_counter_forward.15} parent=0 // pred_check
    _
  $region19: #{crowd_counter_forward.15} parent=0 // pred_check_branch
    %372 = sbr.rel (0) target = $region21
  $region20: #{crowd_counter_forward.15} parent=0 // pred_region
    _
  $region21: #{crowd_counter_forward.15} parent=0 // pred_fallthru
    _

// kernel: crowd_counter_forward.16
$region0: #{crowd_counter_forward.16}
  #allocation0 [shape = 'u32[]', space=smem, size = 0x4, offset = 0x4, fixed_abs, tag = 'smem constant byte address 0x4 - core index']
  #allocation1 [shape = 'u32[72,128]{1,0:T(1,128)}', space=vmem, size = 0x9000, scoped, tag = 'internal scratch']
  %s0 = inlined_call_operand.vmem [shape: f32[40,500], index: 0, kind: input, shape index: {}]
  %s1 = inlined_call_operand.vmem [shape: bf16[500,128], index: 1, kind: input, shape index: {}]
  %s2 = inlined_call_operand.vmem [shape: f32[40,1], index: 2, kind: input, shape index: {}]
  %s3 = inlined_call_operand.vmem [shape: bf16[40,128], index: 3, kind: output, shape index: {}]
  %s4 = sld [smem:[#allocation0]]
  $region22: #{crowd_counter_forward.16} parent=0
    _
  %s6 = ssub.s32 1, %s4
  %s7 = scalar_select 0, %s6, %s4
  // Predicated region
  $region2: #{crowd_counter_forward.16} parent=0 // pred_check
    _
  $region3: #{crowd_counter_forward.16} parent=0 // pred_check_branch
    %9 = sbr.rel (0) target = $region5
  $region4: #{crowd_counter_forward.16} parent=0 // pred_region
    _
  $region5: #{crowd_counter_forward.16} parent=0 // pred_fallthru
    _
  // Predicated region
  $region6: #{crowd_counter_forward.16} parent=0 // pred_check
    _
  $region7: #{crowd_counter_forward.16} parent=0 // pred_check_branch
    %11 = sbr.rel (0) target = $region9
  $region8: #{crowd_counter_forward.16} parent=0 // pred_region
    _
  $region9: #{crowd_counter_forward.16} parent=0 // pred_fallthru
    _
  // Predicated region
  $region10: #{crowd_counter_forward.16} parent=0 // pred_check
    _
  $region11: #{crowd_counter_forward.16} parent=0 // pred_check_branch
    %13 = sbr.rel (0) target = $region13
  $region12: #{crowd_counter_forward.16} parent=0 // pred_region
    _
  $region13: #{crowd_counter_forward.16} parent=0 // pred_fallthru
    _
  %v14 = vld [vmem:[%s0] sm:$0xff]
  %v15 = vld [vmem:[%s0 + $0x8] sm:$0xff]
  %v16 = vld [vmem:[%s0 + $0x10] sm:$0xff]
  %v17 = vld [vmem:[%s0 + $0x18] sm:$0xff]
  %v18 = vld [vmem:[%s0 + $0x20] sm:$0xff]
  %v19 = vld [vmem:[%s0 + $0x28] sm:$0xff]
  %v20 = vld [vmem:[%s0 + $0x30] sm:$0xff]
  %v21 = vld [vmem:[%s0 + $0x38] sm:$0xff]
  %v22 = vld [vmem:[%s0 + $0x40] sm:$0xff]
  %v23 = vld [vmem:[%s0 + $0x48] sm:$0xff]
  %v24 = vld [vmem:[%s0 + $0x50] sm:$0xff]
  %v25 = vld [vmem:[%s0 + $0x58] sm:$0xff]
  %v26 = vld [vmem:[%s0 + $0x60] sm:$0xff]
  %v27 = vld [vmem:[%s0 + $0x68] sm:$0xff]
  %v28 = vld [vmem:[%s0 + $0x70] sm:$0xff]
  %v29 = vld [vmem:[%s0 + $0x78] sm:$0xff]
  %v30 = vld [vmem:[%s0 + $0x80] sm:$0xff]
  %v31 = vld [vmem:[%s0 + $0x88] sm:$0xff]
  %v32 = vld [vmem:[%s0 + $0x90] sm:$0xff]
  %v33 = vld [vmem:[%s0 + $0x98] sm:$0xff]
  %v34 = vld [vmem:[%s1] sm:$0xf]
  %v35 = vld [vmem:[%s1 + $0x4] sm:$0xf]
  %v36 = vld [vmem:[%s1 + $0x8] sm:$0xf]
  %v37 = vld [vmem:[%s1 + $0xc] sm:$0xf]
  %v38 = vld [vmem:[%s1 + $0x10] sm:$0xf]
  %v39 = vld [vmem:[%s1 + $0x14] sm:$0xf]
  %v40 = vld [vmem:[%s1 + $0x18] sm:$0xf]
  %v41 = vld [vmem:[%s1 + $0x1c] sm:$0xf]
  %v42 = vld [vmem:[%s1 + $0x20] sm:$0xf]
  %v43 = vld [vmem:[%s1 + $0x24] sm:$0xf]
  %v44 = vld [vmem:[%s1 + $0x28] sm:$0xf]
  %v45 = vld [vmem:[%s1 + $0x2c] sm:$0xf]
  %v46 = vld [vmem:[%s1 + $0x30] sm:$0xf]
  %v47 = vld [vmem:[%s1 + $0x34] sm:$0xf]
  %v48 = vld [vmem:[%s1 + $0x38] sm:$0xf]
  %v49 = vld [vmem:[%s1 + $0x3c] sm:$0xf]
  %v50 = vld [vmem:[%s1 + $0x40] sm:$0xf]
  %v51 = vld [vmem:[%s1 + $0x44] sm:$0xf]
  %v52 = vld [vmem:[%s1 + $0x48] sm:$0xf]
  %v53 = vld [vmem:[%s1 + $0x4c] sm:$0xf]
  %v54 = vld [vmem:[%s1 + $0x50] sm:$0xf]
  %v55 = vld [vmem:[%s1 + $0x54] sm:$0xf]
  %v56 = vld [vmem:[%s1 + $0x58] sm:$0xf]
  %v57 = vld [vmem:[%s1 + $0x5c] sm:$0xf]
  %v58 = vld [vmem:[%s1 + $0x60] sm:$0xf]
  %v59 = vld [vmem:[%s1 + $0x64] sm:$0xf]
  %v60 = vld [vmem:[%s1 + $0x68] sm:$0xf]
  %v61 = vld [vmem:[%s1 + $0x6c] sm:$0xf]
  %v62 = vld [vmem:[%s1 + $0x70] sm:$0xf]
  %v63 = vld [vmem:[%s1 + $0x74] sm:$0xf]
  %v64 = vld [vmem:[%s1 + $0x78] sm:$0xf]
  %v65 = vld [vmem:[%s1 + $0x7c] sm:$0xf]
  %v66 = vld [vmem:[%s1 + $0x80] sm:$0xf]
  %v67 = vld [vmem:[%s1 + $0x84] sm:$0xf]
  %v68 = vld [vmem:[%s1 + $0x88] sm:$0xf]
  %v69 = vld [vmem:[%s1 + $0x8c] sm:$0xf]
  %v70 = vld [vmem:[%s1 + $0x90] sm:$0xf]
  %v71 = vld [vmem:[%s1 + $0x94] sm:$0xf]
  %v72 = vld [vmem:[%s1 + $0x98] sm:$0xf]
  %v73 = vld [vmem:[%s1 + $0x9c] sm:$0xf]
  %v74 = vld [vmem:[%s1 + $0xa0] sm:$0xf]
  %v75 = vld [vmem:[%s1 + $0xa4] sm:$0xf]
  %v76 = vld [vmem:[%s1 + $0xa8] sm:$0xf]
  %v77 = vld [vmem:[%s1 + $0xac] sm:$0xf]
  %v78 = vld [vmem:[%s1 + $0xb0] sm:$0xf]
  %v79 = vld [vmem:[%s1 + $0xb4] sm:$0xf]
  %v80 = vld [vmem:[%s1 + $0xb8] sm:$0xf]
  %v81 = vld [vmem:[%s1 + $0xbc] sm:$0xf]
  %v82 = vld [vmem:[%s1 + $0xc0] sm:$0xf]
  %v83 = vld [vmem:[%s1 + $0xc4] sm:$0xf]
  %v84 = vld [vmem:[%s1 + $0xc8] sm:$0xf]
  %v85 = vld [vmem:[%s1 + $0xcc] sm:$0xf]
  %v86 = vld [vmem:[%s1 + $0xd0] sm:$0xf]
  %v87 = vld [vmem:[%s1 + $0xd4] sm:$0xf]
  %v88 = vld [vmem:[%s1 + $0xd8] sm:$0xf]
  %v89 = vld [vmem:[%s1 + $0xdc] sm:$0xf]
  %v90 = vld [vmem:[%s1 + $0xe0] sm:$0xf]
  %v91 = vld [vmem:[%s1 + $0xe4] sm:$0xf]
  %v92 = vld [vmem:[%s1 + $0xe8] sm:$0xf]
  %v93 = vld [vmem:[%s1 + $0xec] sm:$0xf]
  %v94 = vld [vmem:[%s1 + $0xf0] sm:$0xf]
  %v95 = vld [vmem:[%s1 + $0xf4] sm:$0xf]
  %v96 = vld [vmem:[%s1 + $0xf8] sm:$0x3]
  %v97 = vunpack.c.l.bf16 %v34
  %v98 = vunpack.c.l.bf16 %v35
  %v99 = vunpack.c.l.bf16 %v36
  %v100 = vunpack.c.l.bf16 %v37
  %v101 = vunpack.c.l.bf16 %v38
  %v102 = vunpack.c.l.bf16 %v39
  %v103 = vunpack.c.l.bf16 %v40
  %v104 = vunpack.c.l.bf16 %v41
  %v105 = vunpack.c.l.bf16 %v42
  %v106 = vunpack.c.l.bf16 %v43
  %v107 = vunpack.c.l.bf16 %v44
  %v108 = vunpack.c.l.bf16 %v45
  %v109 = vunpack.c.l.bf16 %v46
  %v110 = vunpack.c.l.bf16 %v47
  %v111 = vunpack.c.l.bf16 %v48
  %v112 = vunpack.c.l.bf16 %v49
  %v113 = vunpack.c.l.bf16 %v50
  %v114 = vunpack.c.l.bf16 %v51
  %v115 = vunpack.c.l.bf16 %v52
  %v116 = vunpack.c.l.bf16 %v53
  %v117 = vunpack.c.l.bf16 %v54
  %v118 = vunpack.c.l.bf16 %v55
  %v119 = vunpack.c.l.bf16 %v56
  %v120 = vunpack.c.l.bf16 %v57
  %v121 = vunpack.c.l.bf16 %v58
  %v122 = vunpack.c.l.bf16 %v59
  %v123 = vunpack.c.l.bf16 %v60
  %v124 = vunpack.c.l.bf16 %v61
  %v125 = vunpack.c.l.bf16 %v62
  %v126 = vunpack.c.l.bf16 %v63
  %v127 = vunpack.c.l.bf16 %v64
  %v128 = vunpack.c.l.bf16 %v65
  %v129 = vunpack.c.l.bf16 %v66
  %v130 = vunpack.c.l.bf16 %v67
  %v131 = vunpack.c.l.bf16 %v68
  %v132 = vunpack.c.l.bf16 %v69
  %v133 = vunpack.c.l.bf16 %v70
  %v134 = vunpack.c.l.bf16 %v71
  %v135 = vunpack.c.l.bf16 %v72
  %v136 = vunpack.c.l.bf16 %v73
  %v137 = vunpack.c.l.bf16 %v74
  %v138 = vunpack.c.l.bf16 %v75
  %v139 = vunpack.c.l.bf16 %v76
  %v140 = vunpack.c.l.bf16 %v77
  %v141 = vunpack.c.l.bf16 %v78
  %v142 = vunpack.c.l.bf16 %v79
  %v143 = vunpack.c.l.bf16 %v80
  %v144 = vunpack.c.l.bf16 %v81
  %v145 = vunpack.c.l.bf16 %v82
  %v146 = vunpack.c.l.bf16 %v83
  %v147 = vunpack.c.l.bf16 %v84
  %v148 = vunpack.c.l.bf16 %v85
  %v149 = vunpack.c.l.bf16 %v86
  %v150 = vunpack.c.l.bf16 %v87
  %v151 = vunpack.c.l.bf16 %v88
  %v152 = vunpack.c.l.bf16 %v89
  %v153 = vunpack.c.l.bf16 %v90
  %v154 = vunpack.c.l.bf16 %v91
  %v155 = vunpack.c.l.bf16 %v92
  %v156 = vunpack.c.l.bf16 %v93
  %v157 = vunpack.c.l.bf16 %v94
  %v158 = vunpack.c.l.bf16 %v95
  %v159 = vunpack.c.l.bf16 %v96
  %v160 = vld [vmem:[%s2] sm:$0xff]
  %v161 = vld [vmem:[%s2 + $0x8] sm:$0xff]
  %v162 = vld [vmem:[%s2 + $0x10] sm:$0xff]
  %v163 = vld [vmem:[%s2 + $0x18] sm:$0xff]
  %v164 = vld [vmem:[%s2 + $0x20] sm:$0xff]
  %166 = vset.pattern.permute.xlu0 0
  %167 = vperm.xlu0 %166, %v160
  %v168 = vpop.permute.xlu0 %167
  %171 = vset.pattern.permute.xlu0 0
  %172 = vperm.xlu0 %171, %v161
  %v173 = vpop.permute.xlu0 %172
  %176 = vset.pattern.permute.xlu0 0
  %177 = vperm.xlu0 %176, %v162
  %v178 = vpop.permute.xlu0 %177
  %181 = vset.pattern.permute.xlu0 0
  %182 = vperm.xlu0 %181, %v163
  %v183 = vpop.permute.xlu0 %182
  %186 = vset.pattern.permute.xlu0 0
  %187 = vperm.xlu0 %186, %v164
  %v188 = vpop.permute.xlu0 %187
  %vm190 = vcmask 949248
  %v192 = vsel %vm190, %v17, 0
  %v195 = vsel %vm190, %v21, 0
  %v198 = vsel %vm190, %v25, 0
  %v201 = vsel %vm190, %v29, 0
  %v204 = vsel %vm190, %v33, 0
  %vm206 = vcmask 1043456
  %v208 = vsel %vm206, %v159, 0
  %210 = vmatpush.msra.mxu0 %v112
  %211 = vmatpush.msra.mxu0 %v111
  %212 = vmatpush.msra.mxu0 %v110
  %213 = vmatpush.msra.mxu0 %v109
  %214 = vmatpush.msra.mxu0 %v108
  %215 = vmatpush.msra.mxu0 %v107
  %216 = vmatpush.msra.mxu0 %v106
  %217 = vmatpush.msra.mxu0 %v105
  %218 = vmatpush.msra.mxu0 %v104
  %219 = vmatpush.msra.mxu0 %v103
  %220 = vmatpush.msra.mxu0 %v102
  %221 = vmatpush.msra.mxu0 %v101
  %222 = vmatpush.msra.mxu0 %v100
  %223 = vmatpush.msra.mxu0 %v99
  %224 = vmatpush.msra.mxu0 %v98
  %225 = vmatpush.msra.mxu0 %v97
  %226 = vmatmul.f32.gmra.mxu0 %v14
  %v227 = vpop.f32.mrf.mxu0
  %v228 = vadd.f32 %v168, %v227
  %229 = vmatmul.f32.gmra.mxu0 %v18
  %v230 = vpop.f32.mrf.mxu0
  %v231 = vadd.f32 %v173, %v230
  %232 = vmatmul.f32.gmra.mxu0 %v22
  %v233 = vpop.f32.mrf.mxu0
  %v234 = vadd.f32 %v178, %v233
  %235 = vmatmul.f32.gmra.mxu0 %v26
  %v236 = vpop.f32.mrf.mxu0
  %v237 = vadd.f32 %v183, %v236
  %238 = vmatmul.f32.gmra.mxu0 %v30
  %v239 = vpop.f32.mrf.mxu0
  %v240 = vadd.f32 %v188, %v239
  %241 = vdwg.mxu0
  %242 = vmatpush.msra.mxu0 %v128
  %243 = vmatpush.msra.mxu0 %v127
  %244 = vmatpush.msra.mxu0 %v126
  %245 = vmatpush.msra.mxu0 %v125
  %246 = vmatpush.msra.mxu0 %v124
  %247 = vmatpush.msra.mxu0 %v123
  %248 = vmatpush.msra.mxu0 %v122
  %249 = vmatpush.msra.mxu0 %v121
  %250 = vmatpush.msra.mxu0 %v120
  %251 = vmatpush.msra.mxu0 %v119
  %252 = vmatpush.msra.mxu0 %v118
  %253 = vmatpush.msra.mxu0 %v117
  %254 = vmatpush.msra.mxu0 %v116
  %255 = vmatpush.msra.mxu0 %v115
  %256 = vmatpush.msra.mxu0 %v114
  %257 = vmatpush.msra.mxu0 %v113
  %258 = vmatmul.f32.gmra.mxu0 %v15
  %v259 = vpop.f32.mrf.mxu0
  %v260 = vadd.f32 %v228, %v259
  %261 = vmatmul.f32.gmra.mxu0 %v19
  %v262 = vpop.f32.mrf.mxu0
  %v263 = vadd.f32 %v231, %v262
  %264 = vmatmul.f32.gmra.mxu0 %v23
  %v265 = vpop.f32.mrf.mxu0
  %v266 = vadd.f32 %v234, %v265
  %267 = vmatmul.f32.gmra.mxu0 %v27
  %v268 = vpop.f32.mrf.mxu0
  %v269 = vadd.f32 %v237, %v268
  %270 = vmatmul.f32.gmra.mxu0 %v31
  %v271 = vpop.f32.mrf.mxu0
  %v272 = vadd.f32 %v240, %v271
  %273 = vdwg.mxu0
  %274 = vmatpush.msra.mxu0 %v144
  %275 = vmatpush.msra.mxu0 %v143
  %276 = vmatpush.msra.mxu0 %v142
  %277 = vmatpush.msra.mxu0 %v141
  %278 = vmatpush.msra.mxu0 %v140
  %279 = vmatpush.msra.mxu0 %v139
  %280 = vmatpush.msra.mxu0 %v138
  %281 = vmatpush.msra.mxu0 %v137
  %282 = vmatpush.msra.mxu0 %v136
  %283 = vmatpush.msra.mxu0 %v135
  %284 = vmatpush.msra.mxu0 %v134
  %285 = vmatpush.msra.mxu0 %v133
  %286 = vmatpush.msra.mxu0 %v132
  %287 = vmatpush.msra.mxu0 %v131
  %288 = vmatpush.msra.mxu0 %v130
  %289 = vmatpush.msra.mxu0 %v129
  %290 = vmatmul.f32.gmra.mxu0 %v16
  %v291 = vpop.f32.mrf.mxu0
  %v292 = vadd.f32 %v260, %v291
  %293 = vmatmul.f32.gmra.mxu0 %v20
  %v294 = vpop.f32.mrf.mxu0
  %v295 = vadd.f32 %v263, %v294
  %296 = vmatmul.f32.gmra.mxu0 %v24
  %v297 = vpop.f32.mrf.mxu0
  %v298 = vadd.f32 %v266, %v297
  %299 = vmatmul.f32.gmra.mxu0 %v28
  %v300 = vpop.f32.mrf.mxu0
  %v301 = vadd.f32 %v269, %v300
  %302 = vmatmul.f32.gmra.mxu0 %v32
  %v303 = vpop.f32.mrf.mxu0
  %v304 = vadd.f32 %v272, %v303
  %305 = vdwg.mxu0
  %306 = vmatpush.msra.mxu0 0.0
  %307 = vmatpush.msra.mxu0 %v208
  %308 = vmatpush.msra.mxu0 %v158
  %309 = vmatpush.msra.mxu0 %v157
  %310 = vmatpush.msra.mxu0 %v156
  %311 = vmatpush.msra.mxu0 %v155
  %312 = vmatpush.msra.mxu0 %v154
  %313 = vmatpush.msra.mxu0 %v153
  %314 = vmatpush.msra.mxu0 %v152
  %315 = vmatpush.msra.mxu0 %v151
  %316 = vmatpush.msra.mxu0 %v150
  %317 = vmatpush.msra.mxu0 %v149
  %318 = vmatpush.msra.mxu0 %v148
  %319 = vmatpush.msra.mxu0 %v147
  %320 = vmatpush.msra.mxu0 %v146
  %321 = vmatpush.msra.mxu0 %v145
  %322 = vmatmul.f32.gmra.mxu0 %v192
  %v323 = vpop.f32.mrf.mxu0
  %v324 = vadd.f32 %v292, %v323
  %325 = vmatmul.f32.gmra.mxu0 %v195
  %v326 = vpop.f32.mrf.mxu0
  %v327 = vadd.f32 %v295, %v326
  %328 = vmatmul.f32.gmra.mxu0 %v198
  %v329 = vpop.f32.mrf.mxu0
  %v330 = vadd.f32 %v298, %v329
  %331 = vmatmul.f32.gmra.mxu0 %v201
  %v332 = vpop.f32.mrf.mxu0
  %v333 = vadd.f32 %v301, %v332
  %334 = vmatmul.f32.gmra.mxu0 %v204
  %v335 = vpop.f32.mrf.mxu0
  %v336 = vadd.f32 %v304, %v335
  %337 = vdwg.mxu0
  %v338 = vmax.f32 %v324, 0.0
  %v339 = vmax.f32 %v327, 0.0
  %v340 = vmax.f32 %v330, 0.0
  %v341 = vmax.f32 %v333, 0.0
  %v342 = vmax.f32 %v336, 0.0
  %v343 = vpack.c.bf16 %v338, %v338
  %v344 = vpack.c.bf16 %v339, %v339
  %v345 = vpack.c.bf16 %v340, %v340
  %v346 = vpack.c.bf16 %v341, %v341
  %v347 = vpack.c.bf16 %v342, %v342
  %348 = vst [vmem:[%s3] sm:$0xf] %v343
  %349 = vst [vmem:[%s3 + $0x4] sm:$0xf] %v344
  %350 = vst [vmem:[%s3 + $0x8] sm:$0xf] %v345
  %351 = vst [vmem:[%s3 + $0xc] sm:$0xf] %v346
  %352 = vst [vmem:[%s3 + $0x10] sm:$0xf] %v347
  // Predicated region
  $region14: #{crowd_counter_forward.16} parent=0 // pred_check
    _
  $region15: #{crowd_counter_forward.16} parent=0 // pred_check_branch
    %354 = sbr.rel (0) target = $region17
  $region16: #{crowd_counter_forward.16} parent=0 // pred_region
    _
  $region17: #{crowd_counter_forward.16} parent=0 // pred_fallthru
    _
  // Predicated region
  $region18: #{crowd_counter_forward.16} parent=0 // pred_check
    _
  $region19: #{crowd_counter_forward.16} parent=0 // pred_check_branch
    %356 = sbr.rel (0) target = $region21
  $region20: #{crowd_counter_forward.16} parent=0 // pred_region
    _
  $region21: #{crowd_counter_forward.16} parent=0 // pred_fallthru
    _

// kernel: crowd_counter_forward.17
$region0: #{crowd_counter_forward.17}
  #allocation0 [shape = 'u32[]', space=smem, size = 0x4, offset = 0x4, fixed_abs, tag = 'smem constant byte address 0x4 - core index']
  #allocation1 [shape = 'u32[72,128]{1,0:T(1,128)}', space=vmem, size = 0x9000, scoped, tag = 'internal scratch']
  %s0 = inlined_call_operand.vmem [shape: f32[20,1000], index: 0, kind: input, shape index: {}]
  %s1 = inlined_call_operand.vmem [shape: bf16[1000,128], index: 1, kind: input, shape index: {}]
  %s2 = inlined_call_operand.vmem [shape: f32[20,1], index: 2, kind: input, shape index: {}]
  %s3 = inlined_call_operand.vmem [shape: bf16[20,128], index: 3, kind: output, shape index: {}]
  %s4 = sld [smem:[#allocation0]]
  $region22: #{crowd_counter_forward.17} parent=0
    _
  %s6 = ssub.s32 1, %s4
  %s7 = scalar_select 0, %s6, %s4
  // Predicated region
  $region2: #{crowd_counter_forward.17} parent=0 // pred_check
    _
  $region3: #{crowd_counter_forward.17} parent=0 // pred_check_branch
    %9 = sbr.rel (0) target = $region5
  $region4: #{crowd_counter_forward.17} parent=0 // pred_region
    _
  $region5: #{crowd_counter_forward.17} parent=0 // pred_fallthru
    _
  // Predicated region
  $region6: #{crowd_counter_forward.17} parent=0 // pred_check
    _
  $region7: #{crowd_counter_forward.17} parent=0 // pred_check_branch
    %11 = sbr.rel (0) target = $region9
  $region8: #{crowd_counter_forward.17} parent=0 // pred_region
    _
  $region9: #{crowd_counter_forward.17} parent=0 // pred_fallthru
    _
  // Predicated region
  $region10: #{crowd_counter_forward.17} parent=0 // pred_check
    _
  $region11: #{crowd_counter_forward.17} parent=0 // pred_check_branch
    %13 = sbr.rel (0) target = $region13
  $region12: #{crowd_counter_forward.17} parent=0 // pred_region
    _
  $region13: #{crowd_counter_forward.17} parent=0 // pred_fallthru
    _
  %v14 = vld [vmem:[%s0] sm:$0xff]
  %v15 = vld [vmem:[%s0 + $0x8] sm:$0xff]
  %v16 = vld [vmem:[%s0 + $0x10] sm:$0xff]
  %v17 = vld [vmem:[%s0 + $0x18] sm:$0xff]
  %v18 = vld [vmem:[%s0 + $0x20] sm:$0xff]
  %v19 = vld [vmem:[%s0 + $0x28] sm:$0xff]
  %v20 = vld [vmem:[%s0 + $0x30] sm:$0xff]
  %v21 = vld [vmem:[%s0 + $0x38] sm:$0xff]
  %v22 = vld [vmem:[%s0 + $0x40] sm:$0xff]
  %v23 = vld [vmem:[%s0 + $0x48] sm:$0xff]
  %v24 = vld [vmem:[%s0 + $0x50] sm:$0xff]
  %v25 = vld [vmem:[%s0 + $0x58] sm:$0xff]
  %v26 = vld [vmem:[%s0 + $0x60] sm:$0xff]
  %v27 = vld [vmem:[%s0 + $0x68] sm:$0xff]
  %v28 = vld [vmem:[%s0 + $0x70] sm:$0xff]
  %v29 = vld [vmem:[%s0 + $0x78] sm:$0xff]
  %v30 = vld [vmem:[%s0 + $0x80] sm:$0xf]
  %v31 = vld [vmem:[%s0 + $0x88] sm:$0xf]
  %v32 = vld [vmem:[%s0 + $0x90] sm:$0xf]
  %v33 = vld [vmem:[%s0 + $0x98] sm:$0xf]
  %v34 = vld [vmem:[%s0 + $0xa0] sm:$0xf]
  %v35 = vld [vmem:[%s0 + $0xa8] sm:$0xf]
  %v36 = vld [vmem:[%s0 + $0xb0] sm:$0xf]
  %v37 = vld [vmem:[%s0 + $0xb8] sm:$0xf]
  %v38 = vld [vmem:[%s1] sm:$0xf]
  %v39 = vld [vmem:[%s1 + $0x4] sm:$0xf]
  %v40 = vld [vmem:[%s1 + $0x8] sm:$0xf]
  %v41 = vld [vmem:[%s1 + $0xc] sm:$0xf]
  %v42 = vld [vmem:[%s1 + $0x10] sm:$0xf]
  %v43 = vld [vmem:[%s1 + $0x14] sm:$0xf]
  %v44 = vld [vmem:[%s1 + $0x18] sm:$0xf]
  %v45 = vld [vmem:[%s1 + $0x1c] sm:$0xf]
  %v46 = vld [vmem:[%s1 + $0x20] sm:$0xf]
  %v47 = vld [vmem:[%s1 + $0x24] sm:$0xf]
  %v48 = vld [vmem:[%s1 + $0x28] sm:$0xf]
  %v49 = vld [vmem:[%s1 + $0x2c] sm:$0xf]
  %v50 = vld [vmem:[%s1 + $0x30] sm:$0xf]
  %v51 = vld [vmem:[%s1 + $0x34] sm:$0xf]
  %v52 = vld [vmem:[%s1 + $0x38] sm:$0xf]
  %v53 = vld [vmem:[%s1 + $0x3c] sm:$0xf]
  %v54 = vld [vmem:[%s1 + $0x40] sm:$0xf]
  %v55 = vld [vmem:[%s1 + $0x44] sm:$0xf]
  %v56 = vld [vmem:[%s1 + $0x48] sm:$0xf]
  %v57 = vld [vmem:[%s1 + $0x4c] sm:$0xf]
  %v58 = vld [vmem:[%s1 + $0x50] sm:$0xf]
  %v59 = vld [vmem:[%s1 + $0x54] sm:$0xf]
  %v60 = vld [vmem:[%s1 + $0x58] sm:$0xf]
  %v61 = vld [vmem:[%s1 + $0x5c] sm:$0xf]
  %v62 = vld [vmem:[%s1 + $0x60] sm:$0xf]
  %v63 = vld [vmem:[%s1 + $0x64] sm:$0xf]
  %v64 = vld [vmem:[%s1 + $0x68] sm:$0xf]
  %v65 = vld [vmem:[%s1 + $0x6c] sm:$0xf]
  %v66 = vld [vmem:[%s1 + $0x70] sm:$0xf]
  %v67 = vld [vmem:[%s1 + $0x74] sm:$0xf]
  %v68 = vld [vmem:[%s1 + $0x78] sm:$0xf]
  %v69 = vld [vmem:[%s1 + $0x7c] sm:$0xf]
  %v70 = vld [vmem:[%s1 + $0x80] sm:$0xf]
  %v71 = vld [vmem:[%s1 + $0x84] sm:$0xf]
  %v72 = vld [vmem:[%s1 + $0x88] sm:$0xf]
  %v73 = vld [vmem:[%s1 + $0x8c] sm:$0xf]
  %v74 = vld [vmem:[%s1 + $0x90] sm:$0xf]
  %v75 = vld [vmem:[%s1 + $0x94] sm:$0xf]
  %v76 = vld [vmem:[%s1 + $0x98] sm:$0xf]
  %v77 = vld [vmem:[%s1 + $0x9c] sm:$0xf]
  %v78 = vld [vmem:[%s1 + $0xa0] sm:$0xf]
  %v79 = vld [vmem:[%s1 + $0xa4] sm:$0xf]
  %v80 = vld [vmem:[%s1 + $0xa8] sm:$0xf]
  %v81 = vld [vmem:[%s1 + $0xac] sm:$0xf]
  %v82 = vld [vmem:[%s1 + $0xb0] sm:$0xf]
  %v83 = vld [vmem:[%s1 + $0xb4] sm:$0xf]
  %v84 = vld [vmem:[%s1 + $0xb8] sm:$0xf]
  %v85 = vld [vmem:[%s1 + $0xbc] sm:$0xf]
  %v86 = vld [vmem:[%s1 + $0xc0] sm:$0xf]
  %v87 = vld [vmem:[%s1 + $0xc4] sm:$0xf]
  %v88 = vld [vmem:[%s1 + $0xc8] sm:$0xf]
  %v89 = vld [vmem:[%s1 + $0xcc] sm:$0xf]
  %v90 = vld [vmem:[%s1 + $0xd0] sm:$0xf]
  %v91 = vld [vmem:[%s1 + $0xd4] sm:$0xf]
  %v92 = vld [vmem:[%s1 + $0xd8] sm:$0xf]
  %v93 = vld [vmem:[%s1 + $0xdc] sm:$0xf]
  %v94 = vld [vmem:[%s1 + $0xe0] sm:$0xf]
  %v95 = vld [vmem:[%s1 + $0xe4] sm:$0xf]
  %v96 = vld [vmem:[%s1 + $0xe8] sm:$0xf]
  %v97 = vld [vmem:[%s1 + $0xec] sm:$0xf]
  %v98 = vld [vmem:[%s1 + $0xf0] sm:$0xf]
  %v99 = vld [vmem:[%s1 + $0xf4] sm:$0xf]
  %v100 = vld [vmem:[%s1 + $0xf8] sm:$0xf]
  %v101 = vld [vmem:[%s1 + $0xfc] sm:$0xf]
  %v102 = vld [vmem:[%s1 + $0x100] sm:$0xf]
  %v103 = vld [vmem:[%s1 + $0x104] sm:$0xf]
  %v104 = vld [vmem:[%s1 + $0x108] sm:$0xf]
  %v105 = vld [vmem:[%s1 + $0x10c] sm:$0xf]
  %v106 = vld [vmem:[%s1 + $0x110] sm:$0xf]
  %v107 = vld [vmem:[%s1 + $0x114] sm:$0xf]
  %v108 = vld [vmem:[%s1 + $0x118] sm:$0xf]
  %v109 = vld [vmem:[%s1 + $0x11c] sm:$0xf]
  %v110 = vld [vmem:[%s1 + $0x120] sm:$0xf]
  %v111 = vld [vmem:[%s1 + $0x124] sm:$0xf]
  %v112 = vld [vmem:[%s1 + $0x128] sm:$0xf]
  %v113 = vld [vmem:[%s1 + $0x12c] sm:$0xf]
  %v114 = vld [vmem:[%s1 + $0x130] sm:$0xf]
  %v115 = vld [vmem:[%s1 + $0x134] sm:$0xf]
  %v116 = vld [vmem:[%s1 + $0x138] sm:$0xf]
  %v117 = vld [vmem:[%s1 + $0x13c] sm:$0xf]
  %v118 = vld [vmem:[%s1 + $0x140] sm:$0xf]
  %v119 = vld [vmem:[%s1 + $0x144] sm:$0xf]
  %v120 = vld [vmem:[%s1 + $0x148] sm:$0xf]
  %v121 = vld [vmem:[%s1 + $0x14c] sm:$0xf]
  %v122 = vld [vmem:[%s1 + $0x150] sm:$0xf]
  %v123 = vld [vmem:[%s1 + $0x154] sm:$0xf]
  %v124 = vld [vmem:[%s1 + $0x158] sm:$0xf]
  %v125 = vld [vmem:[%s1 + $0x15c] sm:$0xf]
  %v126 = vld [vmem:[%s1 + $0x160] sm:$0xf]
  %v127 = vld [vmem:[%s1 + $0x164] sm:$0xf]
  %v128 = vld [vmem:[%s1 + $0x168] sm:$0xf]
  %v129 = vld [vmem:[%s1 + $0x16c] sm:$0xf]
  %v130 = vld [vmem:[%s1 + $0x170] sm:$0xf]
  %v131 = vld [vmem:[%s1 + $0x174] sm:$0xf]
  %v132 = vld [vmem:[%s1 + $0x178] sm:$0xf]
  %v133 = vld [vmem:[%s1 + $0x17c] sm:$0xf]
  %v134 = vld [vmem:[%s1 + $0x180] sm:$0xf]
  %v135 = vld [vmem:[%s1 + $0x184] sm:$0xf]
  %v136 = vld [vmem:[%s1 + $0x188] sm:$0xf]
  %v137 = vld [vmem:[%s1 + $0x18c] sm:$0xf]
  %v138 = vld [vmem:[%s1 + $0x190] sm:$0xf]
  %v139 = vld [vmem:[%s1 + $0x194] sm:$0xf]
  %v140 = vld [vmem:[%s1 + $0x198] sm:$0xf]
  %v141 = vld [vmem:[%s1 + $0x19c] sm:$0xf]
  %v142 = vld [vmem:[%s1 + $0x1a0] sm:$0xf]
  %v143 = vld [vmem:[%s1 + $0x1a4] sm:$0xf]
  %v144 = vld [vmem:[%s1 + $0x1a8] sm:$0xf]
  %v145 = vld [vmem:[%s1 + $0x1ac] sm:$0xf]
  %v146 = vld [vmem:[%s1 + $0x1b0] sm:$0xf]
  %v147 = vld [vmem:[%s1 + $0x1b4] sm:$0xf]
  %v148 = vld [vmem:[%s1 + $0x1b8] sm:$0xf]
  %v149 = vld [vmem:[%s1 + $0x1bc] sm:$0xf]
  %v150 = vld [vmem:[%s1 + $0x1c0] sm:$0xf]
  %v151 = vld [vmem:[%s1 + $0x1c4] sm:$0xf]
  %v152 = vld [vmem:[%s1 + $0x1c8] sm:$0xf]
  %v153 = vld [vmem:[%s1 + $0x1cc] sm:$0xf]
  %v154 = vld [vmem:[%s1 + $0x1d0] sm:$0xf]
  %v155 = vld [vmem:[%s1 + $0x1d4] sm:$0xf]
  %v156 = vld [vmem:[%s1 + $0x1d8] sm:$0xf]
  %v157 = vld [vmem:[%s1 + $0x1dc] sm:$0xf]
  %v158 = vld [vmem:[%s1 + $0x1e0] sm:$0xf]
  %v159 = vld [vmem:[%s1 + $0x1e4] sm:$0xf]
  %v160 = vld [vmem:[%s1 + $0x1e8] sm:$0xf]
  %v161 = vld [vmem:[%s1 + $0x1ec] sm:$0xf]
  %v162 = vld [vmem:[%s1 + $0x1f0] sm:$0xf]
  %v163 = vunpack.c.l.bf16 %v38
  %v164 = vunpack.c.l.bf16 %v39
  %v165 = vunpack.c.l.bf16 %v40
  %v166 = vunpack.c.l.bf16 %v41
  %v167 = vunpack.c.l.bf16 %v42
  %v168 = vunpack.c.l.bf16 %v43
  %v169 = vunpack.c.l.bf16 %v44
  %v170 = vunpack.c.l.bf16 %v45
  %v171 = vunpack.c.l.bf16 %v46
  %v172 = vunpack.c.l.bf16 %v47
  %v173 = vunpack.c.l.bf16 %v48
  %v174 = vunpack.c.l.bf16 %v49
  %v175 = vunpack.c.l.bf16 %v50
  %v176 = vunpack.c.l.bf16 %v51
  %v177 = vunpack.c.l.bf16 %v52
  %v178 = vunpack.c.l.bf16 %v53
  %v179 = vunpack.c.l.bf16 %v54
  %v180 = vunpack.c.l.bf16 %v55
  %v181 = vunpack.c.l.bf16 %v56
  %v182 = vunpack.c.l.bf16 %v57
  %v183 = vunpack.c.l.bf16 %v58
  %v184 = vunpack.c.l.bf16 %v59
  %v185 = vunpack.c.l.bf16 %v60
  %v186 = vunpack.c.l.bf16 %v61
  %v187 = vunpack.c.l.bf16 %v62
  %v188 = vunpack.c.l.bf16 %v63
  %v189 = vunpack.c.l.bf16 %v64
  %v190 = vunpack.c.l.bf16 %v65
  %v191 = vunpack.c.l.bf16 %v66
  %v192 = vunpack.c.l.bf16 %v67
  %v193 = vunpack.c.l.bf16 %v68
  %v194 = vunpack.c.l.bf16 %v69
  %v195 = vunpack.c.l.bf16 %v70
  %v196 = vunpack.c.l.bf16 %v71
  %v197 = vunpack.c.l.bf16 %v72
  %v198 = vunpack.c.l.bf16 %v73
  %v199 = vunpack.c.l.bf16 %v74
  %v200 = vunpack.c.l.bf16 %v75
  %v201 = vunpack.c.l.bf16 %v76
  %v202 = vunpack.c.l.bf16 %v77
  %v203 = vunpack.c.l.bf16 %v78
  %v204 = vunpack.c.l.bf16 %v79
  %v205 = vunpack.c.l.bf16 %v80
  %v206 = vunpack.c.l.bf16 %v81
  %v207 = vunpack.c.l.bf16 %v82
  %v208 = vunpack.c.l.bf16 %v83
  %v209 = vunpack.c.l.bf16 %v84
  %v210 = vunpack.c.l.bf16 %v85
  %v211 = vunpack.c.l.bf16 %v86
  %v212 = vunpack.c.l.bf16 %v87
  %v213 = vunpack.c.l.bf16 %v88
  %v214 = vunpack.c.l.bf16 %v89
  %v215 = vunpack.c.l.bf16 %v90
  %v216 = vunpack.c.l.bf16 %v91
  %v217 = vunpack.c.l.bf16 %v92
  %v218 = vunpack.c.l.bf16 %v93
  %v219 = vunpack.c.l.bf16 %v94
  %v220 = vunpack.c.l.bf16 %v95
  %v221 = vunpack.c.l.bf16 %v96
  %v222 = vunpack.c.l.bf16 %v97
  %v223 = vunpack.c.l.bf16 %v98
  %v224 = vunpack.c.l.bf16 %v99
  %v225 = vunpack.c.l.bf16 %v100
  %v226 = vunpack.c.l.bf16 %v101
  %v227 = vunpack.c.l.bf16 %v102
  %v228 = vunpack.c.l.bf16 %v103
  %v229 = vunpack.c.l.bf16 %v104
  %v230 = vunpack.c.l.bf16 %v105
  %v231 = vunpack.c.l.bf16 %v106
  %v232 = vunpack.c.l.bf16 %v107
  %v233 = vunpack.c.l.bf16 %v108
  %v234 = vunpack.c.l.bf16 %v109
  %v235 = vunpack.c.l.bf16 %v110
  %v236 = vunpack.c.l.bf16 %v111
  %v237 = vunpack.c.l.bf16 %v112
  %v238 = vunpack.c.l.bf16 %v113
  %v239 = vunpack.c.l.bf16 %v114
  %v240 = vunpack.c.l.bf16 %v115
  %v241 = vunpack.c.l.bf16 %v116
  %v242 = vunpack.c.l.bf16 %v117
  %v243 = vunpack.c.l.bf16 %v118
  %v244 = vunpack.c.l.bf16 %v119
  %v245 = vunpack.c.l.bf16 %v120
  %v246 = vunpack.c.l.bf16 %v121
  %v247 = vunpack.c.l.bf16 %v122
  %v248 = vunpack.c.l.bf16 %v123
  %v249 = vunpack.c.l.bf16 %v124
  %v250 = vunpack.c.l.bf16 %v125
  %v251 = vunpack.c.l.bf16 %v126
  %v252 = vunpack.c.l.bf16 %v127
  %v253 = vunpack.c.l.bf16 %v128
  %v254 = vunpack.c.l.bf16 %v129
  %v255 = vunpack.c.l.bf16 %v130
  %v256 = vunpack.c.l.bf16 %v131
  %v257 = vunpack.c.l.bf16 %v132
  %v258 = vunpack.c.l.bf16 %v133
  %v259 = vunpack.c.l.bf16 %v134
  %v260 = vunpack.c.l.bf16 %v135
  %v261 = vunpack.c.l.bf16 %v136
  %v262 = vunpack.c.l.bf16 %v137
  %v263 = vunpack.c.l.bf16 %v138
  %v264 = vunpack.c.l.bf16 %v139
  %v265 = vunpack.c.l.bf16 %v140
  %v266 = vunpack.c.l.bf16 %v141
  %v267 = vunpack.c.l.bf16 %v142
  %v268 = vunpack.c.l.bf16 %v143
  %v269 = vunpack.c.l.bf16 %v144
  %v270 = vunpack.c.l.bf16 %v145
  %v271 = vunpack.c.l.bf16 %v146
  %v272 = vunpack.c.l.bf16 %v147
  %v273 = vunpack.c.l.bf16 %v148
  %v274 = vunpack.c.l.bf16 %v149
  %v275 = vunpack.c.l.bf16 %v150
  %v276 = vunpack.c.l.bf16 %v151
  %v277 = vunpack.c.l.bf16 %v152
  %v278 = vunpack.c.l.bf16 %v153
  %v279 = vunpack.c.l.bf16 %v154
  %v280 = vunpack.c.l.bf16 %v155
  %v281 = vunpack.c.l.bf16 %v156
  %v282 = vunpack.c.l.bf16 %v157
  %v283 = vunpack.c.l.bf16 %v158
  %v284 = vunpack.c.l.bf16 %v159
  %v285 = vunpack.c.l.bf16 %v160
  %v286 = vunpack.c.l.bf16 %v161
  %v287 = vunpack.c.l.bf16 %v162
  %v288 = vld [vmem:[%s2] sm:$0xff]
  %v289 = vld [vmem:[%s2 + $0x8] sm:$0xff]
  %v290 = vld [vmem:[%s2 + $0x10] sm:$0xf]
  %292 = vset.pattern.permute.xlu0 0
  %293 = vperm.xlu0 %292, %v288
  %v294 = vpop.permute.xlu0 %293
  %297 = vset.pattern.permute.xlu0 0
  %298 = vperm.xlu0 %297, %v289
  %v299 = vpop.permute.xlu0 %298
  %302 = vset.pattern.permute.xlu0 0
  %303 = vperm.xlu0 %302, %v290
  %v304 = vpop.permute.xlu0 %303
  %vm306 = vcmask 850944
  %v308 = vsel %vm306, %v21, 0
  %v311 = vsel %vm306, %v29, 0
  %v314 = vsel %vm306, %v37, 0
  %316 = vmatpush.msra.mxu0 %v178
  %317 = vmatpush.msra.mxu0 %v177
  %318 = vmatpush.msra.mxu0 %v176
  %319 = vmatpush.msra.mxu0 %v175
  %320 = vmatpush.msra.mxu0 %v174
  %321 = vmatpush.msra.mxu0 %v173
  %322 = vmatpush.msra.mxu0 %v172
  %323 = vmatpush.msra.mxu0 %v171
  %324 = vmatpush.msra.mxu0 %v170
  %325 = vmatpush.msra.mxu0 %v169
  %326 = vmatpush.msra.mxu0 %v168
  %327 = vmatpush.msra.mxu0 %v167
  %328 = vmatpush.msra.mxu0 %v166
  %329 = vmatpush.msra.mxu0 %v165
  %330 = vmatpush.msra.mxu0 %v164
  %331 = vmatpush.msra.mxu0 %v163
  %332 = vmatmul.f32.gmra.mxu0 %v14
  %v333 = vpop.f32.mrf.mxu0
  %v334 = vadd.f32 %v294, %v333
  %335 = vmatmul.f32.gmra.mxu0 %v22
  %v336 = vpop.f32.mrf.mxu0
  %v337 = vadd.f32 %v299, %v336
  %338 = vmatmul.f32.gmra.mxu0 %v30
  %v339 = vpop.f32.mrf.mxu0
  %v340 = vadd.f32 %v304, %v339
  %341 = vdwg.mxu0
  %342 = vmatpush.msra.mxu0 %v194
  %343 = vmatpush.msra.mxu0 %v193
  %344 = vmatpush.msra.mxu0 %v192
  %345 = vmatpush.msra.mxu0 %v191
  %346 = vmatpush.msra.mxu0 %v190
  %347 = vmatpush.msra.mxu0 %v189
  %348 = vmatpush.msra.mxu0 %v188
  %349 = vmatpush.msra.mxu0 %v187
  %350 = vmatpush.msra.mxu0 %v186
  %351 = vmatpush.msra.mxu0 %v185
  %352 = vmatpush.msra.mxu0 %v184
  %353 = vmatpush.msra.mxu0 %v183
  %354 = vmatpush.msra.mxu0 %v182
  %355 = vmatpush.msra.mxu0 %v181
  %356 = vmatpush.msra.mxu0 %v180
  %357 = vmatpush.msra.mxu0 %v179
  %358 = vmatmul.f32.gmra.mxu0 %v15
  %v359 = vpop.f32.mrf.mxu0
  %v360 = vadd.f32 %v334, %v359
  %361 = vmatmul.f32.gmra.mxu0 %v23
  %v362 = vpop.f32.mrf.mxu0
  %v363 = vadd.f32 %v337, %v362
  %364 = vmatmul.f32.gmra.mxu0 %v31
  %v365 = vpop.f32.mrf.mxu0
  %v366 = vadd.f32 %v340, %v365
  %367 = vdwg.mxu0
  %368 = vmatpush.msra.mxu0 %v210
  %369 = vmatpush.msra.mxu0 %v209
  %370 = vmatpush.msra.mxu0 %v208
  %371 = vmatpush.msra.mxu0 %v207
  %372 = vmatpush.msra.mxu0 %v206
  %373 = vmatpush.msra.mxu0 %v205
  %374 = vmatpush.msra.mxu0 %v204
  %375 = vmatpush.msra.mxu0 %v203
  %376 = vmatpush.msra.mxu0 %v202
  %377 = vmatpush.msra.mxu0 %v201
  %378 = vmatpush.msra.mxu0 %v200
  %379 = vmatpush.msra.mxu0 %v199
  %380 = vmatpush.msra.mxu0 %v198
  %381 = vmatpush.msra.mxu0 %v197
  %382 = vmatpush.msra.mxu0 %v196
  %383 = vmatpush.msra.mxu0 %v195
  %384 = vmatmul.f32.gmra.mxu0 %v16
  %v385 = vpop.f32.mrf.mxu0
  %v386 = vadd.f32 %v360, %v385
  %387 = vmatmul.f32.gmra.mxu0 %v24
  %v388 = vpop.f32.mrf.mxu0
  %v389 = vadd.f32 %v363, %v388
  %390 = vmatmul.f32.gmra.mxu0 %v32
  %v391 = vpop.f32.mrf.mxu0
  %v392 = vadd.f32 %v366, %v391
  %393 = vdwg.mxu0
  %394 = vmatpush.msra.mxu0 %v226
  %395 = vmatpush.msra.mxu0 %v225
  %396 = vmatpush.msra.mxu0 %v224
  %397 = vmatpush.msra.mxu0 %v223
  %398 = vmatpush.msra.mxu0 %v222
  %399 = vmatpush.msra.mxu0 %v221
  %400 = vmatpush.msra.mxu0 %v220
  %401 = vmatpush.msra.mxu0 %v219
  %402 = vmatpush.msra.mxu0 %v218
  %403 = vmatpush.msra.mxu0 %v217
  %404 = vmatpush.msra.mxu0 %v216
  %405 = vmatpush.msra.mxu0 %v215
  %406 = vmatpush.msra.mxu0 %v214
  %407 = vmatpush.msra.mxu0 %v213
  %408 = vmatpush.msra.mxu0 %v212
  %409 = vmatpush.msra.mxu0 %v211
  %410 = vmatmul.f32.gmra.mxu0 %v17
  %v411 = vpop.f32.mrf.mxu0
  %v412 = vadd.f32 %v386, %v411
  %413 = vmatmul.f32.gmra.mxu0 %v25
  %v414 = vpop.f32.mrf.mxu0
  %v415 = vadd.f32 %v389, %v414
  %416 = vmatmul.f32.gmra.mxu0 %v33
  %v417 = vpop.f32.mrf.mxu0
  %v418 = vadd.f32 %v392, %v417
  %419 = vdwg.mxu0
  %420 = vmatpush.msra.mxu0 %v242
  %421 = vmatpush.msra.mxu0 %v241
  %422 = vmatpush.msra.mxu0 %v240
  %423 = vmatpush.msra.mxu0 %v239
  %424 = vmatpush.msra.mxu0 %v238
  %425 = vmatpush.msra.mxu0 %v237
  %426 = vmatpush.msra.mxu0 %v236
  %427 = vmatpush.msra.mxu0 %v235
  %428 = vmatpush.msra.mxu0 %v234
  %429 = vmatpush.msra.mxu0 %v233
  %430 = vmatpush.msra.mxu0 %v232
  %431 = vmatpush.msra.mxu0 %v231
  %432 = vmatpush.msra.mxu0 %v230
  %433 = vmatpush.msra.mxu0 %v229
  %434 = vmatpush.msra.mxu0 %v228
  %435 = vmatpush.msra.mxu0 %v227
  %436 = vmatmul.f32.gmra.mxu0 %v18
  %v437 = vpop.f32.mrf.mxu0
  %v438 = vadd.f32 %v412, %v437
  %439 = vmatmul.f32.gmra.mxu0 %v26
  %v440 = vpop.f32.mrf.mxu0
  %v441 = vadd.f32 %v415, %v440
  %442 = vmatmul.f32.gmra.mxu0 %v34
  %v443 = vpop.f32.mrf.mxu0
  %v444 = vadd.f32 %v418, %v443
  %445 = vdwg.mxu0
  %446 = vmatpush.msra.mxu0 %v258
  %447 = vmatpush.msra.mxu0 %v257
  %448 = vmatpush.msra.mxu0 %v256
  %449 = vmatpush.msra.mxu0 %v255
  %450 = vmatpush.msra.mxu0 %v254
  %451 = vmatpush.msra.mxu0 %v253
  %452 = vmatpush.msra.mxu0 %v252
  %453 = vmatpush.msra.mxu0 %v251
  %454 = vmatpush.msra.mxu0 %v250
  %455 = vmatpush.msra.mxu0 %v249
  %456 = vmatpush.msra.mxu0 %v248
  %457 = vmatpush.msra.mxu0 %v247
  %458 = vmatpush.msra.mxu0 %v246
  %459 = vmatpush.msra.mxu0 %v245
  %460 = vmatpush.msra.mxu0 %v244
  %461 = vmatpush.msra.mxu0 %v243
  %462 = vmatmul.f32.gmra.mxu0 %v19
  %v463 = vpop.f32.mrf.mxu0
  %v464 = vadd.f32 %v438, %v463
  %465 = vmatmul.f32.gmra.mxu0 %v27
  %v466 = vpop.f32.mrf.mxu0
  %v467 = vadd.f32 %v441, %v466
  %468 = vmatmul.f32.gmra.mxu0 %v35
  %v469 = vpop.f32.mrf.mxu0
  %v470 = vadd.f32 %v444, %v469
  %471 = vdwg.mxu0
  %472 = vmatpush.msra.mxu0 %v274
  %473 = vmatpush.msra.mxu0 %v273
  %474 = vmatpush.msra.mxu0 %v272
  %475 = vmatpush.msra.mxu0 %v271
  %476 = vmatpush.msra.mxu0 %v270
  %477 = vmatpush.msra.mxu0 %v269
  %478 = vmatpush.msra.mxu0 %v268
  %479 = vmatpush.msra.mxu0 %v267
  %480 = vmatpush.msra.mxu0 %v266
  %481 = vmatpush.msra.mxu0 %v265
  %482 = vmatpush.msra.mxu0 %v264
  %483 = vmatpush.msra.mxu0 %v263
  %484 = vmatpush.msra.mxu0 %v262
  %485 = vmatpush.msra.mxu0 %v261
  %486 = vmatpush.msra.mxu0 %v260
  %487 = vmatpush.msra.mxu0 %v259
  %488 = vmatmul.f32.gmra.mxu0 %v20
  %v489 = vpop.f32.mrf.mxu0
  %v490 = vadd.f32 %v464, %v489
  %491 = vmatmul.f32.gmra.mxu0 %v28
  %v492 = vpop.f32.mrf.mxu0
  %v493 = vadd.f32 %v467, %v492
  %494 = vmatmul.f32.gmra.mxu0 %v36
  %v495 = vpop.f32.mrf.mxu0
  %v496 = vadd.f32 %v470, %v495
  %497 = vdwg.mxu0
  %498 = vmatpush.msra.mxu0 0.0
  %499 = vmatpush.msra.mxu0 0.0
  %500 = vmatpush.msra.mxu0 0.0
  %501 = vmatpush.msra.mxu0 %v287
  %502 = vmatpush.msra.mxu0 %v286
  %503 = vmatpush.msra.mxu0 %v285
  %504 = vmatpush.msra.mxu0 %v284
  %505 = vmatpush.msra.mxu0 %v283
  %506 = vmatpush.msra.mxu0 %v282
  %507 = vmatpush.msra.mxu0 %v281
  %508 = vmatpush.msra.mxu0 %v280
  %509 = vmatpush.msra.mxu0 %v279
  %510 = vmatpush.msra.mxu0 %v278
  %511 = vmatpush.msra.mxu0 %v277
  %512 = vmatpush.msra.mxu0 %v276
  %513 = vmatpush.msra.mxu0 %v275
  %514 = vmatmul.f32.gmra.mxu0 %v308
  %v515 = vpop.f32.mrf.mxu0
  %v516 = vadd.f32 %v490, %v515
  %517 = vmatmul.f32.gmra.mxu0 %v311
  %v518 = vpop.f32.mrf.mxu0
  %v519 = vadd.f32 %v493, %v518
  %520 = vmatmul.f32.gmra.mxu0 %v314
  %v521 = vpop.f32.mrf.mxu0
  %v522 = vadd.f32 %v496, %v521
  %523 = vdwg.mxu0
  %v524 = vmax.f32 %v516, 0.0
  %v525 = vmax.f32 %v519, 0.0
  %v526 = vmax.f32 %v522, 0.0
  %v527 = vpack.c.bf16 %v524, %v524
  %v528 = vpack.c.bf16 %v525, %v525
  %v529 = vpack.c.bf16 %v526, %v526
  %530 = vst [vmem:[%s3] sm:$0xf] %v527
  %531 = vst [vmem:[%s3 + $0x4] sm:$0xf] %v528
  %532 = vst [vmem:[%s3 + $0x8] sm:$0x3] %v529
  // Predicated region
  $region14: #{crowd_counter_forward.17} parent=0 // pred_check
    _
  $region15: #{crowd_counter_forward.17} parent=0 // pred_check_branch
    %534 = sbr.rel (0) target = $region17
  $region16: #{crowd_counter_forward.17} parent=0 // pred_region
    _
  $region17: #{crowd_counter_forward.17} parent=0 // pred_fallthru
    _
  // Predicated region
  $region18: #{crowd_counter_forward.17} parent=0 // pred_check
    _
  $region19: #{crowd_counter_forward.17} parent=0 // pred_check_branch
    %536 = sbr.rel (0) target = $region21
  $region20: #{crowd_counter_forward.17} parent=0 // pred_region
    _
  $region21: #{crowd_counter_forward.17} parent=0 // pred_fallthru
    _

// kernel: crowd_counter_forward.18
$region0: #{crowd_counter_forward.18}
  #allocation0 [shape = 'u32[]', space=smem, size = 0x4, offset = 0x4, fixed_abs, tag = 'smem constant byte address 0x4 - core index']
  #allocation1 [shape = 'u32[72,128]{1,0:T(1,128)}', space=vmem, size = 0x9000, scoped, tag = 'internal scratch']
  %s0 = inlined_call_operand.vmem [shape: f32[10,500], index: 0, kind: input, shape index: {}]
  %s1 = inlined_call_operand.vmem [shape: bf16[500,128], index: 1, kind: input, shape index: {}]
  %s2 = inlined_call_operand.vmem [shape: f32[10,1], index: 2, kind: input, shape index: {}]
  %s3 = inlined_call_operand.vmem [shape: f32[10,128], index: 3, kind: output, shape index: {}]
  %s4 = sld [smem:[#allocation0]]
  $region22: #{crowd_counter_forward.18} parent=0
    _
  %s6 = ssub.s32 1, %s4
  %s7 = scalar_select 0, %s6, %s4
  // Predicated region
  $region2: #{crowd_counter_forward.18} parent=0 // pred_check
    _
  $region3: #{crowd_counter_forward.18} parent=0 // pred_check_branch
    %9 = sbr.rel (0) target = $region5
  $region4: #{crowd_counter_forward.18} parent=0 // pred_region
    _
  $region5: #{crowd_counter_forward.18} parent=0 // pred_fallthru
    _
  // Predicated region
  $region6: #{crowd_counter_forward.18} parent=0 // pred_check
    _
  $region7: #{crowd_counter_forward.18} parent=0 // pred_check_branch
    %11 = sbr.rel (0) target = $region9
  $region8: #{crowd_counter_forward.18} parent=0 // pred_region
    _
  $region9: #{crowd_counter_forward.18} parent=0 // pred_fallthru
    _
  // Predicated region
  $region10: #{crowd_counter_forward.18} parent=0 // pred_check
    _
  $region11: #{crowd_counter_forward.18} parent=0 // pred_check_branch
    %13 = sbr.rel (0) target = $region13
  $region12: #{crowd_counter_forward.18} parent=0 // pred_region
    _
  $region13: #{crowd_counter_forward.18} parent=0 // pred_fallthru
    _
  %v14 = vld [vmem:[%s0] sm:$0xff]
  %v15 = vld [vmem:[%s0 + $0x8] sm:$0xff]
  %v16 = vld [vmem:[%s0 + $0x10] sm:$0xff]
  %v17 = vld [vmem:[%s0 + $0x18] sm:$0xff]
  %v18 = vld [vmem:[%s0 + $0x20] sm:$0x3]
  %v19 = vld [vmem:[%s0 + $0x28] sm:$0x3]
  %v20 = vld [vmem:[%s0 + $0x30] sm:$0x3]
  %v21 = vld [vmem:[%s0 + $0x38] sm:$0x3]
  %v22 = vld [vmem:[%s1] sm:$0xf]
  %v23 = vld [vmem:[%s1 + $0x4] sm:$0xf]
  %v24 = vld [vmem:[%s1 + $0x8] sm:$0xf]
  %v25 = vld [vmem:[%s1 + $0xc] sm:$0xf]
  %v26 = vld [vmem:[%s1 + $0x10] sm:$0xf]
  %v27 = vld [vmem:[%s1 + $0x14] sm:$0xf]
  %v28 = vld [vmem:[%s1 + $0x18] sm:$0xf]
  %v29 = vld [vmem:[%s1 + $0x1c] sm:$0xf]
  %v30 = vld [vmem:[%s1 + $0x20] sm:$0xf]
  %v31 = vld [vmem:[%s1 + $0x24] sm:$0xf]
  %v32 = vld [vmem:[%s1 + $0x28] sm:$0xf]
  %v33 = vld [vmem:[%s1 + $0x2c] sm:$0xf]
  %v34 = vld [vmem:[%s1 + $0x30] sm:$0xf]
  %v35 = vld [vmem:[%s1 + $0x34] sm:$0xf]
  %v36 = vld [vmem:[%s1 + $0x38] sm:$0xf]
  %v37 = vld [vmem:[%s1 + $0x3c] sm:$0xf]
  %v38 = vld [vmem:[%s1 + $0x40] sm:$0xf]
  %v39 = vld [vmem:[%s1 + $0x44] sm:$0xf]
  %v40 = vld [vmem:[%s1 + $0x48] sm:$0xf]
  %v41 = vld [vmem:[%s1 + $0x4c] sm:$0xf]
  %v42 = vld [vmem:[%s1 + $0x50] sm:$0xf]
  %v43 = vld [vmem:[%s1 + $0x54] sm:$0xf]
  %v44 = vld [vmem:[%s1 + $0x58] sm:$0xf]
  %v45 = vld [vmem:[%s1 + $0x5c] sm:$0xf]
  %v46 = vld [vmem:[%s1 + $0x60] sm:$0xf]
  %v47 = vld [vmem:[%s1 + $0x64] sm:$0xf]
  %v48 = vld [vmem:[%s1 + $0x68] sm:$0xf]
  %v49 = vld [vmem:[%s1 + $0x6c] sm:$0xf]
  %v50 = vld [vmem:[%s1 + $0x70] sm:$0xf]
  %v51 = vld [vmem:[%s1 + $0x74] sm:$0xf]
  %v52 = vld [vmem:[%s1 + $0x78] sm:$0xf]
  %v53 = vld [vmem:[%s1 + $0x7c] sm:$0xf]
  %v54 = vld [vmem:[%s1 + $0x80] sm:$0xf]
  %v55 = vld [vmem:[%s1 + $0x84] sm:$0xf]
  %v56 = vld [vmem:[%s1 + $0x88] sm:$0xf]
  %v57 = vld [vmem:[%s1 + $0x8c] sm:$0xf]
  %v58 = vld [vmem:[%s1 + $0x90] sm:$0xf]
  %v59 = vld [vmem:[%s1 + $0x94] sm:$0xf]
  %v60 = vld [vmem:[%s1 + $0x98] sm:$0xf]
  %v61 = vld [vmem:[%s1 + $0x9c] sm:$0xf]
  %v62 = vld [vmem:[%s1 + $0xa0] sm:$0xf]
  %v63 = vld [vmem:[%s1 + $0xa4] sm:$0xf]
  %v64 = vld [vmem:[%s1 + $0xa8] sm:$0xf]
  %v65 = vld [vmem:[%s1 + $0xac] sm:$0xf]
  %v66 = vld [vmem:[%s1 + $0xb0] sm:$0xf]
  %v67 = vld [vmem:[%s1 + $0xb4] sm:$0xf]
  %v68 = vld [vmem:[%s1 + $0xb8] sm:$0xf]
  %v69 = vld [vmem:[%s1 + $0xbc] sm:$0xf]
  %v70 = vld [vmem:[%s1 + $0xc0] sm:$0xf]
  %v71 = vld [vmem:[%s1 + $0xc4] sm:$0xf]
  %v72 = vld [vmem:[%s1 + $0xc8] sm:$0xf]
  %v73 = vld [vmem:[%s1 + $0xcc] sm:$0xf]
  %v74 = vld [vmem:[%s1 + $0xd0] sm:$0xf]
  %v75 = vld [vmem:[%s1 + $0xd4] sm:$0xf]
  %v76 = vld [vmem:[%s1 + $0xd8] sm:$0xf]
  %v77 = vld [vmem:[%s1 + $0xdc] sm:$0xf]
  %v78 = vld [vmem:[%s1 + $0xe0] sm:$0xf]
  %v79 = vld [vmem:[%s1 + $0xe4] sm:$0xf]
  %v80 = vld [vmem:[%s1 + $0xe8] sm:$0xf]
  %v81 = vld [vmem:[%s1 + $0xec] sm:$0xf]
  %v82 = vld [vmem:[%s1 + $0xf0] sm:$0xf]
  %v83 = vld [vmem:[%s1 + $0xf4] sm:$0xf]
  %v84 = vld [vmem:[%s1 + $0xf8] sm:$0x3]
  %v85 = vunpack.c.l.bf16 %v22
  %v86 = vunpack.c.l.bf16 %v23
  %v87 = vunpack.c.l.bf16 %v24
  %v88 = vunpack.c.l.bf16 %v25
  %v89 = vunpack.c.l.bf16 %v26
  %v90 = vunpack.c.l.bf16 %v27
  %v91 = vunpack.c.l.bf16 %v28
  %v92 = vunpack.c.l.bf16 %v29
  %v93 = vunpack.c.l.bf16 %v30
  %v94 = vunpack.c.l.bf16 %v31
  %v95 = vunpack.c.l.bf16 %v32
  %v96 = vunpack.c.l.bf16 %v33
  %v97 = vunpack.c.l.bf16 %v34
  %v98 = vunpack.c.l.bf16 %v35
  %v99 = vunpack.c.l.bf16 %v36
  %v100 = vunpack.c.l.bf16 %v37
  %v101 = vunpack.c.l.bf16 %v38
  %v102 = vunpack.c.l.bf16 %v39
  %v103 = vunpack.c.l.bf16 %v40
  %v104 = vunpack.c.l.bf16 %v41
  %v105 = vunpack.c.l.bf16 %v42
  %v106 = vunpack.c.l.bf16 %v43
  %v107 = vunpack.c.l.bf16 %v44
  %v108 = vunpack.c.l.bf16 %v45
  %v109 = vunpack.c.l.bf16 %v46
  %v110 = vunpack.c.l.bf16 %v47
  %v111 = vunpack.c.l.bf16 %v48
  %v112 = vunpack.c.l.bf16 %v49
  %v113 = vunpack.c.l.bf16 %v50
  %v114 = vunpack.c.l.bf16 %v51
  %v115 = vunpack.c.l.bf16 %v52
  %v116 = vunpack.c.l.bf16 %v53
  %v117 = vunpack.c.l.bf16 %v54
  %v118 = vunpack.c.l.bf16 %v55
  %v119 = vunpack.c.l.bf16 %v56
  %v120 = vunpack.c.l.bf16 %v57
  %v121 = vunpack.c.l.bf16 %v58
  %v122 = vunpack.c.l.bf16 %v59
  %v123 = vunpack.c.l.bf16 %v60
  %v124 = vunpack.c.l.bf16 %v61
  %v125 = vunpack.c.l.bf16 %v62
  %v126 = vunpack.c.l.bf16 %v63
  %v127 = vunpack.c.l.bf16 %v64
  %v128 = vunpack.c.l.bf16 %v65
  %v129 = vunpack.c.l.bf16 %v66
  %v130 = vunpack.c.l.bf16 %v67
  %v131 = vunpack.c.l.bf16 %v68
  %v132 = vunpack.c.l.bf16 %v69
  %v133 = vunpack.c.l.bf16 %v70
  %v134 = vunpack.c.l.bf16 %v71
  %v135 = vunpack.c.l.bf16 %v72
  %v136 = vunpack.c.l.bf16 %v73
  %v137 = vunpack.c.l.bf16 %v74
  %v138 = vunpack.c.l.bf16 %v75
  %v139 = vunpack.c.l.bf16 %v76
  %v140 = vunpack.c.l.bf16 %v77
  %v141 = vunpack.c.l.bf16 %v78
  %v142 = vunpack.c.l.bf16 %v79
  %v143 = vunpack.c.l.bf16 %v80
  %v144 = vunpack.c.l.bf16 %v81
  %v145 = vunpack.c.l.bf16 %v82
  %v146 = vunpack.c.l.bf16 %v83
  %v147 = vunpack.c.l.bf16 %v84
  %v148 = vld [vmem:[%s2] sm:$0xff]
  %v149 = vld [vmem:[%s2 + $0x8] sm:$0x3]
  %151 = vset.pattern.permute.xlu0 0
  %152 = vperm.xlu0 %151, %v148
  %v153 = vpop.permute.xlu0 %152
  %156 = vset.pattern.permute.xlu0 0
  %157 = vperm.xlu0 %156, %v149
  %v158 = vpop.permute.xlu0 %157
  %vm160 = vcmask 949248
  %v162 = vsel %vm160, %v17, 0
  %v165 = vsel %vm160, %v21, 0
  %vm167 = vcmask 1043456
  %v169 = vsel %vm167, %v147, 0
  %171 = vmatpush.msra.mxu0 %v100
  %172 = vmatpush.msra.mxu0 %v99
  %173 = vmatpush.msra.mxu0 %v98
  %174 = vmatpush.msra.mxu0 %v97
  %175 = vmatpush.msra.mxu0 %v96
  %176 = vmatpush.msra.mxu0 %v95
  %177 = vmatpush.msra.mxu0 %v94
  %178 = vmatpush.msra.mxu0 %v93
  %179 = vmatpush.msra.mxu0 %v92
  %180 = vmatpush.msra.mxu0 %v91
  %181 = vmatpush.msra.mxu0 %v90
  %182 = vmatpush.msra.mxu0 %v89
  %183 = vmatpush.msra.mxu0 %v88
  %184 = vmatpush.msra.mxu0 %v87
  %185 = vmatpush.msra.mxu0 %v86
  %186 = vmatpush.msra.mxu0 %v85
  %187 = vmatmul.f32.gmra.mxu0 %v14
  %v188 = vpop.f32.mrf.mxu0
  %v189 = vadd.f32 %v153, %v188
  %190 = vmatmul.f32.gmra.mxu0 %v18
  %v191 = vpop.f32.mrf.mxu0
  %v192 = vadd.f32 %v158, %v191
  %193 = vdwg.mxu0
  %194 = vmatpush.msra.mxu0 %v116
  %195 = vmatpush.msra.mxu0 %v115
  %196 = vmatpush.msra.mxu0 %v114
  %197 = vmatpush.msra.mxu0 %v113
  %198 = vmatpush.msra.mxu0 %v112
  %199 = vmatpush.msra.mxu0 %v111
  %200 = vmatpush.msra.mxu0 %v110
  %201 = vmatpush.msra.mxu0 %v109
  %202 = vmatpush.msra.mxu0 %v108
  %203 = vmatpush.msra.mxu0 %v107
  %204 = vmatpush.msra.mxu0 %v106
  %205 = vmatpush.msra.mxu0 %v105
  %206 = vmatpush.msra.mxu0 %v104
  %207 = vmatpush.msra.mxu0 %v103
  %208 = vmatpush.msra.mxu0 %v102
  %209 = vmatpush.msra.mxu0 %v101
  %210 = vmatmul.f32.gmra.mxu0 %v15
  %v211 = vpop.f32.mrf.mxu0
  %v212 = vadd.f32 %v189, %v211
  %213 = vmatmul.f32.gmra.mxu0 %v19
  %v214 = vpop.f32.mrf.mxu0
  %v215 = vadd.f32 %v192, %v214
  %216 = vdwg.mxu0
  %217 = vmatpush.msra.mxu0 %v132
  %218 = vmatpush.msra.mxu0 %v131
  %219 = vmatpush.msra.mxu0 %v130
  %220 = vmatpush.msra.mxu0 %v129
  %221 = vmatpush.msra.mxu0 %v128
  %222 = vmatpush.msra.mxu0 %v127
  %223 = vmatpush.msra.mxu0 %v126
  %224 = vmatpush.msra.mxu0 %v125
  %225 = vmatpush.msra.mxu0 %v124
  %226 = vmatpush.msra.mxu0 %v123
  %227 = vmatpush.msra.mxu0 %v122
  %228 = vmatpush.msra.mxu0 %v121
  %229 = vmatpush.msra.mxu0 %v120
  %230 = vmatpush.msra.mxu0 %v119
  %231 = vmatpush.msra.mxu0 %v118
  %232 = vmatpush.msra.mxu0 %v117
  %233 = vmatmul.f32.gmra.mxu0 %v16
  %v234 = vpop.f32.mrf.mxu0
  %v235 = vadd.f32 %v212, %v234
  %236 = vmatmul.f32.gmra.mxu0 %v20
  %v237 = vpop.f32.mrf.mxu0
  %v238 = vadd.f32 %v215, %v237
  %239 = vdwg.mxu0
  %240 = vmatpush.msra.mxu0 0.0
  %241 = vmatpush.msra.mxu0 %v169
  %242 = vmatpush.msra.mxu0 %v146
  %243 = vmatpush.msra.mxu0 %v145
  %244 = vmatpush.msra.mxu0 %v144
  %245 = vmatpush.msra.mxu0 %v143
  %246 = vmatpush.msra.mxu0 %v142
  %247 = vmatpush.msra.mxu0 %v141
  %248 = vmatpush.msra.mxu0 %v140
  %249 = vmatpush.msra.mxu0 %v139
  %250 = vmatpush.msra.mxu0 %v138
  %251 = vmatpush.msra.mxu0 %v137
  %252 = vmatpush.msra.mxu0 %v136
  %253 = vmatpush.msra.mxu0 %v135
  %254 = vmatpush.msra.mxu0 %v134
  %255 = vmatpush.msra.mxu0 %v133
  %256 = vmatmul.f32.gmra.mxu0 %v162
  %v257 = vpop.f32.mrf.mxu0
  %v258 = vadd.f32 %v235, %v257
  %259 = vmatmul.f32.gmra.mxu0 %v165
  %v260 = vpop.f32.mrf.mxu0
  %v261 = vadd.f32 %v238, %v260
  %262 = vdwg.mxu0
  %v263 = vmax.f32 %v258, 0.0
  %v264 = vmax.f32 %v261, 0.0
  %265 = vst [vmem:[%s3] sm:$0xff] %v263
  %266 = vst [vmem:[%s3 + $0x8] sm:$0x3] %v264
  // Predicated region
  $region14: #{crowd_counter_forward.18} parent=0 // pred_check
    _
  $region15: #{crowd_counter_forward.18} parent=0 // pred_check_branch
    %268 = sbr.rel (0) target = $region17
  $region16: #{crowd_counter_forward.18} parent=0 // pred_region
    _
  $region17: #{crowd_counter_forward.18} parent=0 // pred_fallthru
    _
  // Predicated region
  $region18: #{crowd_counter_forward.18} parent=0 // pred_check
    _
  $region19: #{crowd_counter_forward.18} parent=0 // pred_check_branch
    %270 = sbr.rel (0) target = $region21
  $region20: #{crowd_counter_forward.18} parent=0 // pred_region
    _
  $region21: #{crowd_counter_forward.18} parent=0 // pred_fallthru
    _

// kernel: crowd_counter_forward.19
$region0: #{crowd_counter_forward.19}
  #allocation0 [shape = 'u32[]', space=smem, size = 0x4, offset = 0x4, fixed_abs, tag = 'smem constant byte address 0x4 - core index']
  #allocation1 [shape = 'u32[72,128]{1,0:T(1,128)}', space=vmem, size = 0x9000, scoped, tag = 'internal scratch']
  %s0 = inlined_call_operand.vmem [shape: f32[48,216], index: 0, kind: input, shape index: {}]
  %s1 = inlined_call_operand.vmem [shape: bf16[216,128], index: 1, kind: input, shape index: {}]
  %s2 = inlined_call_operand.vmem [shape: f32[48,1], index: 2, kind: input, shape index: {}]
  %s3 = inlined_call_operand.vmem [shape: bf16[48,128], index: 3, kind: output, shape index: {}]
  %s4 = sld [smem:[#allocation0]]
  $region22: #{crowd_counter_forward.19} parent=0
    _
  %s6 = ssub.s32 1, %s4
  %s7 = scalar_select 0, %s6, %s4
  // Predicated region
  $region2: #{crowd_counter_forward.19} parent=0 // pred_check
    _
  $region3: #{crowd_counter_forward.19} parent=0 // pred_check_branch
    %9 = sbr.rel (0) target = $region5
  $region4: #{crowd_counter_forward.19} parent=0 // pred_region
    _
  $region5: #{crowd_counter_forward.19} parent=0 // pred_fallthru
    _
  // Predicated region
  $region6: #{crowd_counter_forward.19} parent=0 // pred_check
    _
  $region7: #{crowd_counter_forward.19} parent=0 // pred_check_branch
    %11 = sbr.rel (0) target = $region9
  $region8: #{crowd_counter_forward.19} parent=0 // pred_region
    _
  $region9: #{crowd_counter_forward.19} parent=0 // pred_fallthru
    _
  // Predicated region
  $region10: #{crowd_counter_forward.19} parent=0 // pred_check
    _
  $region11: #{crowd_counter_forward.19} parent=0 // pred_check_branch
    %13 = sbr.rel (0) target = $region13
  $region12: #{crowd_counter_forward.19} parent=0 // pred_region
    _
  $region13: #{crowd_counter_forward.19} parent=0 // pred_fallthru
    _
  %v14 = vld [vmem:[%s0] sm:$0xff]
  %v15 = vld [vmem:[%s0 + $0x8] sm:$0xff]
  %v16 = vld [vmem:[%s0 + $0x10] sm:$0xff]
  %v17 = vld [vmem:[%s0 + $0x18] sm:$0xff]
  %v18 = vld [vmem:[%s0 + $0x20] sm:$0xff]
  %v19 = vld [vmem:[%s0 + $0x28] sm:$0xff]
  %v20 = vld [vmem:[%s0 + $0x30] sm:$0xff]
  %v21 = vld [vmem:[%s0 + $0x38] sm:$0xff]
  %v22 = vld [vmem:[%s0 + $0x40] sm:$0xff]
  %v23 = vld [vmem:[%s0 + $0x48] sm:$0xff]
  %v24 = vld [vmem:[%s0 + $0x50] sm:$0xff]
  %v25 = vld [vmem:[%s0 + $0x58] sm:$0xff]
  %v26 = vld [vmem:[%s1] sm:$0xf]
  %v27 = vld [vmem:[%s1 + $0x4] sm:$0xf]
  %v28 = vld [vmem:[%s1 + $0x8] sm:$0xf]
  %v29 = vld [vmem:[%s1 + $0xc] sm:$0xf]
  %v30 = vld [vmem:[%s1 + $0x10] sm:$0xf]
  %v31 = vld [vmem:[%s1 + $0x14] sm:$0xf]
  %v32 = vld [vmem:[%s1 + $0x18] sm:$0xf]
  %v33 = vld [vmem:[%s1 + $0x1c] sm:$0xf]
  %v34 = vld [vmem:[%s1 + $0x20] sm:$0xf]
  %v35 = vld [vmem:[%s1 + $0x24] sm:$0xf]
  %v36 = vld [vmem:[%s1 + $0x28] sm:$0xf]
  %v37 = vld [vmem:[%s1 + $0x2c] sm:$0xf]
  %v38 = vld [vmem:[%s1 + $0x30] sm:$0xf]
  %v39 = vld [vmem:[%s1 + $0x34] sm:$0xf]
  %v40 = vld [vmem:[%s1 + $0x38] sm:$0xf]
  %v41 = vld [vmem:[%s1 + $0x3c] sm:$0xf]
  %v42 = vld [vmem:[%s1 + $0x40] sm:$0xf]
  %v43 = vld [vmem:[%s1 + $0x44] sm:$0xf]
  %v44 = vld [vmem:[%s1 + $0x48] sm:$0xf]
  %v45 = vld [vmem:[%s1 + $0x4c] sm:$0xf]
  %v46 = vld [vmem:[%s1 + $0x50] sm:$0xf]
  %v47 = vld [vmem:[%s1 + $0x54] sm:$0xf]
  %v48 = vld [vmem:[%s1 + $0x58] sm:$0xf]
  %v49 = vld [vmem:[%s1 + $0x5c] sm:$0xf]
  %v50 = vld [vmem:[%s1 + $0x60] sm:$0xf]
  %v51 = vld [vmem:[%s1 + $0x64] sm:$0xf]
  %v52 = vld [vmem:[%s1 + $0x68] sm:$0xf]
  %v53 = vunpack.c.l.bf16 %v26
  %v54 = vunpack.c.l.bf16 %v27
  %v55 = vunpack.c.l.bf16 %v28
  %v56 = vunpack.c.l.bf16 %v29
  %v57 = vunpack.c.l.bf16 %v30
  %v58 = vunpack.c.l.bf16 %v31
  %v59 = vunpack.c.l.bf16 %v32
  %v60 = vunpack.c.l.bf16 %v33
  %v61 = vunpack.c.l.bf16 %v34
  %v62 = vunpack.c.l.bf16 %v35
  %v63 = vunpack.c.l.bf16 %v36
  %v64 = vunpack.c.l.bf16 %v37
  %v65 = vunpack.c.l.bf16 %v38
  %v66 = vunpack.c.l.bf16 %v39
  %v67 = vunpack.c.l.bf16 %v40
  %v68 = vunpack.c.l.bf16 %v41
  %v69 = vunpack.c.l.bf16 %v42
  %v70 = vunpack.c.l.bf16 %v43
  %v71 = vunpack.c.l.bf16 %v44
  %v72 = vunpack.c.l.bf16 %v45
  %v73 = vunpack.c.l.bf16 %v46
  %v74 = vunpack.c.l.bf16 %v47
  %v75 = vunpack.c.l.bf16 %v48
  %v76 = vunpack.c.l.bf16 %v49
  %v77 = vunpack.c.l.bf16 %v50
  %v78 = vunpack.c.l.bf16 %v51
  %v79 = vunpack.c.l.bf16 %v52
  %v80 = vld [vmem:[%s2] sm:$0xff]
  %v81 = vld [vmem:[%s2 + $0x8] sm:$0xff]
  %v82 = vld [vmem:[%s2 + $0x10] sm:$0xff]
  %v83 = vld [vmem:[%s2 + $0x18] sm:$0xff]
  %v84 = vld [vmem:[%s2 + $0x20] sm:$0xff]
  %v85 = vld [vmem:[%s2 + $0x28] sm:$0xff]
  %87 = vset.pattern.permute.xlu0 0
  %88 = vperm.xlu0 %87, %v80
  %v89 = vpop.permute.xlu0 %88
  %92 = vset.pattern.permute.xlu0 0
  %93 = vperm.xlu0 %92, %v81
  %v94 = vpop.permute.xlu0 %93
  %97 = vset.pattern.permute.xlu0 0
  %98 = vperm.xlu0 %97, %v82
  %v99 = vpop.permute.xlu0 %98
  %102 = vset.pattern.permute.xlu0 0
  %103 = vperm.xlu0 %102, %v83
  %v104 = vpop.permute.xlu0 %103
  %107 = vset.pattern.permute.xlu0 0
  %108 = vperm.xlu0 %107, %v84
  %v109 = vpop.permute.xlu0 %108
  %112 = vset.pattern.permute.xlu0 0
  %113 = vperm.xlu0 %112, %v85
  %v114 = vpop.permute.xlu0 %113
  %vm116 = vcmask 719872
  %v118 = vsel %vm116, %v15, 0
  %v121 = vsel %vm116, %v17, 0
  %v124 = vsel %vm116, %v19, 0
  %v127 = vsel %vm116, %v21, 0
  %v130 = vsel %vm116, %v23, 0
  %v133 = vsel %vm116, %v25, 0
  %135 = vmatpush.msra.mxu0 %v68
  %136 = vmatpush.msra.mxu0 %v67
  %137 = vmatpush.msra.mxu0 %v66
  %138 = vmatpush.msra.mxu0 %v65
  %139 = vmatpush.msra.mxu0 %v64
  %140 = vmatpush.msra.mxu0 %v63
  %141 = vmatpush.msra.mxu0 %v62
  %142 = vmatpush.msra.mxu0 %v61
  %143 = vmatpush.msra.mxu0 %v60
  %144 = vmatpush.msra.mxu0 %v59
  %145 = vmatpush.msra.mxu0 %v58
  %146 = vmatpush.msra.mxu0 %v57
  %147 = vmatpush.msra.mxu0 %v56
  %148 = vmatpush.msra.mxu0 %v55
  %149 = vmatpush.msra.mxu0 %v54
  %150 = vmatpush.msra.mxu0 %v53
  %151 = vmatmul.f32.gmra.mxu0 %v14
  %v152 = vpop.f32.mrf.mxu0
  %v153 = vadd.f32 %v89, %v152
  %154 = vmatmul.f32.gmra.mxu0 %v16
  %v155 = vpop.f32.mrf.mxu0
  %v156 = vadd.f32 %v94, %v155
  %157 = vmatmul.f32.gmra.mxu0 %v18
  %v158 = vpop.f32.mrf.mxu0
  %v159 = vadd.f32 %v99, %v158
  %160 = vmatmul.f32.gmra.mxu0 %v20
  %v161 = vpop.f32.mrf.mxu0
  %v162 = vadd.f32 %v104, %v161
  %163 = vmatmul.f32.gmra.mxu0 %v22
  %v164 = vpop.f32.mrf.mxu0
  %v165 = vadd.f32 %v109, %v164
  %166 = vmatmul.f32.gmra.mxu0 %v24
  %v167 = vpop.f32.mrf.mxu0
  %v168 = vadd.f32 %v114, %v167
  %169 = vdwg.mxu0
  %170 = vmatpush.msra.mxu0 0.0
  %171 = vmatpush.msra.mxu0 0.0
  %172 = vmatpush.msra.mxu0 0.0
  %173 = vmatpush.msra.mxu0 0.0
  %174 = vmatpush.msra.mxu0 0.0
  %175 = vmatpush.msra.mxu0 %v79
  %176 = vmatpush.msra.mxu0 %v78
  %177 = vmatpush.msra.mxu0 %v77
  %178 = vmatpush.msra.mxu0 %v76
  %179 = vmatpush.msra.mxu0 %v75
  %180 = vmatpush.msra.mxu0 %v74
  %181 = vmatpush.msra.mxu0 %v73
  %182 = vmatpush.msra.mxu0 %v72
  %183 = vmatpush.msra.mxu0 %v71
  %184 = vmatpush.msra.mxu0 %v70
  %185 = vmatpush.msra.mxu0 %v69
  %186 = vmatmul.f32.gmra.mxu0 %v118
  %v187 = vpop.f32.mrf.mxu0
  %v188 = vadd.f32 %v153, %v187
  %189 = vmatmul.f32.gmra.mxu0 %v121
  %v190 = vpop.f32.mrf.mxu0
  %v191 = vadd.f32 %v156, %v190
  %192 = vmatmul.f32.gmra.mxu0 %v124
  %v193 = vpop.f32.mrf.mxu0
  %v194 = vadd.f32 %v159, %v193
  %195 = vmatmul.f32.gmra.mxu0 %v127
  %v196 = vpop.f32.mrf.mxu0
  %v197 = vadd.f32 %v162, %v196
  %198 = vmatmul.f32.gmra.mxu0 %v130
  %v199 = vpop.f32.mrf.mxu0
  %v200 = vadd.f32 %v165, %v199
  %201 = vmatmul.f32.gmra.mxu0 %v133
  %v202 = vpop.f32.mrf.mxu0
  %v203 = vadd.f32 %v168, %v202
  %204 = vdwg.mxu0
  %v205 = vmax.f32 %v188, 0.0
  %v206 = vmax.f32 %v191, 0.0
  %v207 = vmax.f32 %v194, 0.0
  %v208 = vmax.f32 %v197, 0.0
  %v209 = vmax.f32 %v200, 0.0
  %v210 = vmax.f32 %v203, 0.0
  %v211 = vpack.c.bf16 %v205, %v205
  %v212 = vpack.c.bf16 %v206, %v206
  %v213 = vpack.c.bf16 %v207, %v207
  %v214 = vpack.c.bf16 %v208, %v208
  %v215 = vpack.c.bf16 %v209, %v209
  %v216 = vpack.c.bf16 %v210, %v210
  %217 = vst [vmem:[%s3] sm:$0xf] %v211
  %218 = vst [vmem:[%s3 + $0x4] sm:$0xf] %v212
  %219 = vst [vmem:[%s3 + $0x8] sm:$0xf] %v213
  %220 = vst [vmem:[%s3 + $0xc] sm:$0xf] %v214
  %221 = vst [vmem:[%s3 + $0x10] sm:$0xf] %v215
  %222 = vst [vmem:[%s3 + $0x14] sm:$0xf] %v216
  // Predicated region
  $region14: #{crowd_counter_forward.19} parent=0 // pred_check
    _
  $region15: #{crowd_counter_forward.19} parent=0 // pred_check_branch
    %224 = sbr.rel (0) target = $region17
  $region16: #{crowd_counter_forward.19} parent=0 // pred_region
    _
  $region17: #{crowd_counter_forward.19} parent=0 // pred_fallthru
    _
  // Predicated region
  $region18: #{crowd_counter_forward.19} parent=0 // pred_check
    _
  $region19: #{crowd_counter_forward.19} parent=0 // pred_check_branch
    %226 = sbr.rel (0) target = $region21
  $region20: #{crowd_counter_forward.19} parent=0 // pred_region
    _
  $region21: #{crowd_counter_forward.19} parent=0 // pred_fallthru
    _

// kernel: crowd_counter_forward.20
$region0: #{crowd_counter_forward.20}
  #allocation0 [shape = 'u32[]', space=smem, size = 0x4, offset = 0x4, fixed_abs, tag = 'smem constant byte address 0x4 - core index']
  #allocation1 [shape = 'u32[72,128]{1,0:T(1,128)}', space=vmem, size = 0x9000, scoped, tag = 'internal scratch']
  %s0 = inlined_call_operand.vmem [shape: f32[24,432], index: 0, kind: input, shape index: {}]
  %s1 = inlined_call_operand.vmem [shape: bf16[432,128], index: 1, kind: input, shape index: {}]
  %s2 = inlined_call_operand.vmem [shape: f32[24,1], index: 2, kind: input, shape index: {}]
  %s3 = inlined_call_operand.vmem [shape: bf16[24,128], index: 3, kind: output, shape index: {}]
  %s4 = sld [smem:[#allocation0]]
  $region22: #{crowd_counter_forward.20} parent=0
    _
  %s6 = ssub.s32 1, %s4
  %s7 = scalar_select 0, %s6, %s4
  // Predicated region
  $region2: #{crowd_counter_forward.20} parent=0 // pred_check
    _
  $region3: #{crowd_counter_forward.20} parent=0 // pred_check_branch
    %9 = sbr.rel (0) target = $region5
  $region4: #{crowd_counter_forward.20} parent=0 // pred_region
    _
  $region5: #{crowd_counter_forward.20} parent=0 // pred_fallthru
    _
  // Predicated region
  $region6: #{crowd_counter_forward.20} parent=0 // pred_check
    _
  $region7: #{crowd_counter_forward.20} parent=0 // pred_check_branch
    %11 = sbr.rel (0) target = $region9
  $region8: #{crowd_counter_forward.20} parent=0 // pred_region
    _
  $region9: #{crowd_counter_forward.20} parent=0 // pred_fallthru
    _
  // Predicated region
  $region10: #{crowd_counter_forward.20} parent=0 // pred_check
    _
  $region11: #{crowd_counter_forward.20} parent=0 // pred_check_branch
    %13 = sbr.rel (0) target = $region13
  $region12: #{crowd_counter_forward.20} parent=0 // pred_region
    _
  $region13: #{crowd_counter_forward.20} parent=0 // pred_fallthru
    _
  %v14 = vld [vmem:[%s0] sm:$0xff]
  %v15 = vld [vmem:[%s0 + $0x8] sm:$0xff]
  %v16 = vld [vmem:[%s0 + $0x10] sm:$0xff]
  %v17 = vld [vmem:[%s0 + $0x18] sm:$0xff]
  %v18 = vld [vmem:[%s0 + $0x20] sm:$0xff]
  %v19 = vld [vmem:[%s0 + $0x28] sm:$0xff]
  %v20 = vld [vmem:[%s0 + $0x30] sm:$0xff]
  %v21 = vld [vmem:[%s0 + $0x38] sm:$0xff]
  %v22 = vld [vmem:[%s0 + $0x40] sm:$0xff]
  %v23 = vld [vmem:[%s0 + $0x48] sm:$0xff]
  %v24 = vld [vmem:[%s0 + $0x50] sm:$0xff]
  %v25 = vld [vmem:[%s0 + $0x58] sm:$0xff]
  %v26 = vld [vmem:[%s1] sm:$0xf]
  %v27 = vld [vmem:[%s1 + $0x4] sm:$0xf]
  %v28 = vld [vmem:[%s1 + $0x8] sm:$0xf]
  %v29 = vld [vmem:[%s1 + $0xc] sm:$0xf]
  %v30 = vld [vmem:[%s1 + $0x10] sm:$0xf]
  %v31 = vld [vmem:[%s1 + $0x14] sm:$0xf]
  %v32 = vld [vmem:[%s1 + $0x18] sm:$0xf]
  %v33 = vld [vmem:[%s1 + $0x1c] sm:$0xf]
  %v34 = vld [vmem:[%s1 + $0x20] sm:$0xf]
  %v35 = vld [vmem:[%s1 + $0x24] sm:$0xf]
  %v36 = vld [vmem:[%s1 + $0x28] sm:$0xf]
  %v37 = vld [vmem:[%s1 + $0x2c] sm:$0xf]
  %v38 = vld [vmem:[%s1 + $0x30] sm:$0xf]
  %v39 = vld [vmem:[%s1 + $0x34] sm:$0xf]
  %v40 = vld [vmem:[%s1 + $0x38] sm:$0xf]
  %v41 = vld [vmem:[%s1 + $0x3c] sm:$0xf]
  %v42 = vld [vmem:[%s1 + $0x40] sm:$0xf]
  %v43 = vld [vmem:[%s1 + $0x44] sm:$0xf]
  %v44 = vld [vmem:[%s1 + $0x48] sm:$0xf]
  %v45 = vld [vmem:[%s1 + $0x4c] sm:$0xf]
  %v46 = vld [vmem:[%s1 + $0x50] sm:$0xf]
  %v47 = vld [vmem:[%s1 + $0x54] sm:$0xf]
  %v48 = vld [vmem:[%s1 + $0x58] sm:$0xf]
  %v49 = vld [vmem:[%s1 + $0x5c] sm:$0xf]
  %v50 = vld [vmem:[%s1 + $0x60] sm:$0xf]
  %v51 = vld [vmem:[%s1 + $0x64] sm:$0xf]
  %v52 = vld [vmem:[%s1 + $0x68] sm:$0xf]
  %v53 = vld [vmem:[%s1 + $0x6c] sm:$0xf]
  %v54 = vld [vmem:[%s1 + $0x70] sm:$0xf]
  %v55 = vld [vmem:[%s1 + $0x74] sm:$0xf]
  %v56 = vld [vmem:[%s1 + $0x78] sm:$0xf]
  %v57 = vld [vmem:[%s1 + $0x7c] sm:$0xf]
  %v58 = vld [vmem:[%s1 + $0x80] sm:$0xf]
  %v59 = vld [vmem:[%s1 + $0x84] sm:$0xf]
  %v60 = vld [vmem:[%s1 + $0x88] sm:$0xf]
  %v61 = vld [vmem:[%s1 + $0x8c] sm:$0xf]
  %v62 = vld [vmem:[%s1 + $0x90] sm:$0xf]
  %v63 = vld [vmem:[%s1 + $0x94] sm:$0xf]
  %v64 = vld [vmem:[%s1 + $0x98] sm:$0xf]
  %v65 = vld [vmem:[%s1 + $0x9c] sm:$0xf]
  %v66 = vld [vmem:[%s1 + $0xa0] sm:$0xf]
  %v67 = vld [vmem:[%s1 + $0xa4] sm:$0xf]
  %v68 = vld [vmem:[%s1 + $0xa8] sm:$0xf]
  %v69 = vld [vmem:[%s1 + $0xac] sm:$0xf]
  %v70 = vld [vmem:[%s1 + $0xb0] sm:$0xf]
  %v71 = vld [vmem:[%s1 + $0xb4] sm:$0xf]
  %v72 = vld [vmem:[%s1 + $0xb8] sm:$0xf]
  %v73 = vld [vmem:[%s1 + $0xbc] sm:$0xf]
  %v74 = vld [vmem:[%s1 + $0xc0] sm:$0xf]
  %v75 = vld [vmem:[%s1 + $0xc4] sm:$0xf]
  %v76 = vld [vmem:[%s1 + $0xc8] sm:$0xf]
  %v77 = vld [vmem:[%s1 + $0xcc] sm:$0xf]
  %v78 = vld [vmem:[%s1 + $0xd0] sm:$0xf]
  %v79 = vld [vmem:[%s1 + $0xd4] sm:$0xf]
  %v80 = vunpack.c.l.bf16 %v26
  %v81 = vunpack.c.l.bf16 %v27
  %v82 = vunpack.c.l.bf16 %v28
  %v83 = vunpack.c.l.bf16 %v29
  %v84 = vunpack.c.l.bf16 %v30
  %v85 = vunpack.c.l.bf16 %v31
  %v86 = vunpack.c.l.bf16 %v32
  %v87 = vunpack.c.l.bf16 %v33
  %v88 = vunpack.c.l.bf16 %v34
  %v89 = vunpack.c.l.bf16 %v35
  %v90 = vunpack.c.l.bf16 %v36
  %v91 = vunpack.c.l.bf16 %v37
  %v92 = vunpack.c.l.bf16 %v38
  %v93 = vunpack.c.l.bf16 %v39
  %v94 = vunpack.c.l.bf16 %v40
  %v95 = vunpack.c.l.bf16 %v41
  %v96 = vunpack.c.l.bf16 %v42
  %v97 = vunpack.c.l.bf16 %v43
  %v98 = vunpack.c.l.bf16 %v44
  %v99 = vunpack.c.l.bf16 %v45
  %v100 = vunpack.c.l.bf16 %v46
  %v101 = vunpack.c.l.bf16 %v47
  %v102 = vunpack.c.l.bf16 %v48
  %v103 = vunpack.c.l.bf16 %v49
  %v104 = vunpack.c.l.bf16 %v50
  %v105 = vunpack.c.l.bf16 %v51
  %v106 = vunpack.c.l.bf16 %v52
  %v107 = vunpack.c.l.bf16 %v53
  %v108 = vunpack.c.l.bf16 %v54
  %v109 = vunpack.c.l.bf16 %v55
  %v110 = vunpack.c.l.bf16 %v56
  %v111 = vunpack.c.l.bf16 %v57
  %v112 = vunpack.c.l.bf16 %v58
  %v113 = vunpack.c.l.bf16 %v59
  %v114 = vunpack.c.l.bf16 %v60
  %v115 = vunpack.c.l.bf16 %v61
  %v116 = vunpack.c.l.bf16 %v62
  %v117 = vunpack.c.l.bf16 %v63
  %v118 = vunpack.c.l.bf16 %v64
  %v119 = vunpack.c.l.bf16 %v65
  %v120 = vunpack.c.l.bf16 %v66
  %v121 = vunpack.c.l.bf16 %v67
  %v122 = vunpack.c.l.bf16 %v68
  %v123 = vunpack.c.l.bf16 %v69
  %v124 = vunpack.c.l.bf16 %v70
  %v125 = vunpack.c.l.bf16 %v71
  %v126 = vunpack.c.l.bf16 %v72
  %v127 = vunpack.c.l.bf16 %v73
  %v128 = vunpack.c.l.bf16 %v74
  %v129 = vunpack.c.l.bf16 %v75
  %v130 = vunpack.c.l.bf16 %v76
  %v131 = vunpack.c.l.bf16 %v77
  %v132 = vunpack.c.l.bf16 %v78
  %v133 = vunpack.c.l.bf16 %v79
  %v134 = vld [vmem:[%s2] sm:$0xff]
  %v135 = vld [vmem:[%s2 + $0x8] sm:$0xff]
  %v136 = vld [vmem:[%s2 + $0x10] sm:$0xff]
  %138 = vset.pattern.permute.xlu0 0
  %139 = vperm.xlu0 %138, %v134
  %v140 = vpop.permute.xlu0 %139
  %143 = vset.pattern.permute.xlu0 0
  %144 = vperm.xlu0 %143, %v135
  %v145 = vpop.permute.xlu0 %144
  %148 = vset.pattern.permute.xlu0 0
  %149 = vperm.xlu0 %148, %v136
  %v150 = vpop.permute.xlu0 %149
  %vm152 = vcmask 392192
  %v154 = vsel %vm152, %v17, 0
  %v157 = vsel %vm152, %v21, 0
  %v160 = vsel %vm152, %v25, 0
  %162 = vmatpush.msra.mxu0 %v95
  %163 = vmatpush.msra.mxu0 %v94
  %164 = vmatpush.msra.mxu0 %v93
  %165 = vmatpush.msra.mxu0 %v92
  %166 = vmatpush.msra.mxu0 %v91
  %167 = vmatpush.msra.mxu0 %v90
  %168 = vmatpush.msra.mxu0 %v89
  %169 = vmatpush.msra.mxu0 %v88
  %170 = vmatpush.msra.mxu0 %v87
  %171 = vmatpush.msra.mxu0 %v86
  %172 = vmatpush.msra.mxu0 %v85
  %173 = vmatpush.msra.mxu0 %v84
  %174 = vmatpush.msra.mxu0 %v83
  %175 = vmatpush.msra.mxu0 %v82
  %176 = vmatpush.msra.mxu0 %v81
  %177 = vmatpush.msra.mxu0 %v80
  %178 = vmatmul.f32.gmra.mxu0 %v14
  %v179 = vpop.f32.mrf.mxu0
  %v180 = vadd.f32 %v140, %v179
  %181 = vmatmul.f32.gmra.mxu0 %v18
  %v182 = vpop.f32.mrf.mxu0
  %v183 = vadd.f32 %v145, %v182
  %184 = vmatmul.f32.gmra.mxu0 %v22
  %v185 = vpop.f32.mrf.mxu0
  %v186 = vadd.f32 %v150, %v185
  %187 = vdwg.mxu0
  %188 = vmatpush.msra.mxu0 %v111
  %189 = vmatpush.msra.mxu0 %v110
  %190 = vmatpush.msra.mxu0 %v109
  %191 = vmatpush.msra.mxu0 %v108
  %192 = vmatpush.msra.mxu0 %v107
  %193 = vmatpush.msra.mxu0 %v106
  %194 = vmatpush.msra.mxu0 %v105
  %195 = vmatpush.msra.mxu0 %v104
  %196 = vmatpush.msra.mxu0 %v103
  %197 = vmatpush.msra.mxu0 %v102
  %198 = vmatpush.msra.mxu0 %v101
  %199 = vmatpush.msra.mxu0 %v100
  %200 = vmatpush.msra.mxu0 %v99
  %201 = vmatpush.msra.mxu0 %v98
  %202 = vmatpush.msra.mxu0 %v97
  %203 = vmatpush.msra.mxu0 %v96
  %204 = vmatmul.f32.gmra.mxu0 %v15
  %v205 = vpop.f32.mrf.mxu0
  %v206 = vadd.f32 %v180, %v205
  %207 = vmatmul.f32.gmra.mxu0 %v19
  %v208 = vpop.f32.mrf.mxu0
  %v209 = vadd.f32 %v183, %v208
  %210 = vmatmul.f32.gmra.mxu0 %v23
  %v211 = vpop.f32.mrf.mxu0
  %v212 = vadd.f32 %v186, %v211
  %213 = vdwg.mxu0
  %214 = vmatpush.msra.mxu0 %v127
  %215 = vmatpush.msra.mxu0 %v126
  %216 = vmatpush.msra.mxu0 %v125
  %217 = vmatpush.msra.mxu0 %v124
  %218 = vmatpush.msra.mxu0 %v123
  %219 = vmatpush.msra.mxu0 %v122
  %220 = vmatpush.msra.mxu0 %v121
  %221 = vmatpush.msra.mxu0 %v120
  %222 = vmatpush.msra.mxu0 %v119
  %223 = vmatpush.msra.mxu0 %v118
  %224 = vmatpush.msra.mxu0 %v117
  %225 = vmatpush.msra.mxu0 %v116
  %226 = vmatpush.msra.mxu0 %v115
  %227 = vmatpush.msra.mxu0 %v114
  %228 = vmatpush.msra.mxu0 %v113
  %229 = vmatpush.msra.mxu0 %v112
  %230 = vmatmul.f32.gmra.mxu0 %v16
  %v231 = vpop.f32.mrf.mxu0
  %v232 = vadd.f32 %v206, %v231
  %233 = vmatmul.f32.gmra.mxu0 %v20
  %v234 = vpop.f32.mrf.mxu0
  %v235 = vadd.f32 %v209, %v234
  %236 = vmatmul.f32.gmra.mxu0 %v24
  %v237 = vpop.f32.mrf.mxu0
  %v238 = vadd.f32 %v212, %v237
  %239 = vdwg.mxu0
  %240 = vmatpush.msra.mxu0 0.0
  %241 = vmatpush.msra.mxu0 0.0
  %242 = vmatpush.msra.mxu0 0.0
  %243 = vmatpush.msra.mxu0 0.0
  %244 = vmatpush.msra.mxu0 0.0
  %245 = vmatpush.msra.mxu0 0.0
  %246 = vmatpush.msra.mxu0 0.0
  %247 = vmatpush.msra.mxu0 0.0
  %248 = vmatpush.msra.mxu0 0.0
  %249 = vmatpush.msra.mxu0 0.0
  %250 = vmatpush.msra.mxu0 %v133
  %251 = vmatpush.msra.mxu0 %v132
  %252 = vmatpush.msra.mxu0 %v131
  %253 = vmatpush.msra.mxu0 %v130
  %254 = vmatpush.msra.mxu0 %v129
  %255 = vmatpush.msra.mxu0 %v128
  %256 = vmatmul.f32.gmra.mxu0 %v154
  %v257 = vpop.f32.mrf.mxu0
  %v258 = vadd.f32 %v232, %v257
  %259 = vmatmul.f32.gmra.mxu0 %v157
  %v260 = vpop.f32.mrf.mxu0
  %v261 = vadd.f32 %v235, %v260
  %262 = vmatmul.f32.gmra.mxu0 %v160
  %v263 = vpop.f32.mrf.mxu0
  %v264 = vadd.f32 %v238, %v263
  %265 = vdwg.mxu0
  %v266 = vmax.f32 %v258, 0.0
  %v267 = vmax.f32 %v261, 0.0
  %v268 = vmax.f32 %v264, 0.0
  %v269 = vpack.c.bf16 %v266, %v266
  %v270 = vpack.c.bf16 %v267, %v267
  %v271 = vpack.c.bf16 %v268, %v268
  %272 = vst [vmem:[%s3] sm:$0xf] %v269
  %273 = vst [vmem:[%s3 + $0x4] sm:$0xf] %v270
  %274 = vst [vmem:[%s3 + $0x8] sm:$0xf] %v271
  // Predicated region
  $region14: #{crowd_counter_forward.20} parent=0 // pred_check
    _
  $region15: #{crowd_counter_forward.20} parent=0 // pred_check_branch
    %276 = sbr.rel (0) target = $region17
  $region16: #{crowd_counter_forward.20} parent=0 // pred_region
    _
  $region17: #{crowd_counter_forward.20} parent=0 // pred_fallthru
    _
  // Predicated region
  $region18: #{crowd_counter_forward.20} parent=0 // pred_check
    _
  $region19: #{crowd_counter_forward.20} parent=0 // pred_check_branch
    %278 = sbr.rel (0) target = $region21
  $region20: #{crowd_counter_forward.20} parent=0 // pred_region
    _
  $region21: #{crowd_counter_forward.20} parent=0 // pred_fallthru
    _

// kernel: crowd_counter_forward.21
$region0: #{crowd_counter_forward.21}
  #allocation0 [shape = 'u32[]', space=smem, size = 0x4, offset = 0x4, fixed_abs, tag = 'smem constant byte address 0x4 - core index']
  #allocation1 [shape = 'u32[72,128]{1,0:T(1,128)}', space=vmem, size = 0x9000, scoped, tag = 'internal scratch']
  %s0 = inlined_call_operand.vmem [shape: f32[12,216], index: 0, kind: input, shape index: {}]
  %s1 = inlined_call_operand.vmem [shape: bf16[216,128], index: 1, kind: input, shape index: {}]
  %s2 = inlined_call_operand.vmem [shape: f32[12,1], index: 2, kind: input, shape index: {}]
  %s3 = inlined_call_operand.vmem [shape: f32[12,128], index: 3, kind: output, shape index: {}]
  %s4 = sld [smem:[#allocation0]]
  $region22: #{crowd_counter_forward.21} parent=0
    _
  %s6 = ssub.s32 1, %s4
  %s7 = scalar_select 0, %s6, %s4
  // Predicated region
  $region2: #{crowd_counter_forward.21} parent=0 // pred_check
    _
  $region3: #{crowd_counter_forward.21} parent=0 // pred_check_branch
    %9 = sbr.rel (0) target = $region5
  $region4: #{crowd_counter_forward.21} parent=0 // pred_region
    _
  $region5: #{crowd_counter_forward.21} parent=0 // pred_fallthru
    _
  // Predicated region
  $region6: #{crowd_counter_forward.21} parent=0 // pred_check
    _
  $region7: #{crowd_counter_forward.21} parent=0 // pred_check_branch
    %11 = sbr.rel (0) target = $region9
  $region8: #{crowd_counter_forward.21} parent=0 // pred_region
    _
  $region9: #{crowd_counter_forward.21} parent=0 // pred_fallthru
    _
  // Predicated region
  $region10: #{crowd_counter_forward.21} parent=0 // pred_check
    _
  $region11: #{crowd_counter_forward.21} parent=0 // pred_check_branch
    %13 = sbr.rel (0) target = $region13
  $region12: #{crowd_counter_forward.21} parent=0 // pred_region
    _
  $region13: #{crowd_counter_forward.21} parent=0 // pred_fallthru
    _
  %v14 = vld [vmem:[%s0] sm:$0xff]
  %v15 = vld [vmem:[%s0 + $0x8] sm:$0xff]
  %v16 = vld [vmem:[%s0 + $0x10] sm:$0xf]
  %v17 = vld [vmem:[%s0 + $0x18] sm:$0xf]
  %v18 = vld [vmem:[%s1] sm:$0xf]
  %v19 = vld [vmem:[%s1 + $0x4] sm:$0xf]
  %v20 = vld [vmem:[%s1 + $0x8] sm:$0xf]
  %v21 = vld [vmem:[%s1 + $0xc] sm:$0xf]
  %v22 = vld [vmem:[%s1 + $0x10] sm:$0xf]
  %v23 = vld [vmem:[%s1 + $0x14] sm:$0xf]
  %v24 = vld [vmem:[%s1 + $0x18] sm:$0xf]
  %v25 = vld [vmem:[%s1 + $0x1c] sm:$0xf]
  %v26 = vld [vmem:[%s1 + $0x20] sm:$0xf]
  %v27 = vld [vmem:[%s1 + $0x24] sm:$0xf]
  %v28 = vld [vmem:[%s1 + $0x28] sm:$0xf]
  %v29 = vld [vmem:[%s1 + $0x2c] sm:$0xf]
  %v30 = vld [vmem:[%s1 + $0x30] sm:$0xf]
  %v31 = vld [vmem:[%s1 + $0x34] sm:$0xf]
  %v32 = vld [vmem:[%s1 + $0x38] sm:$0xf]
  %v33 = vld [vmem:[%s1 + $0x3c] sm:$0xf]
  %v34 = vld [vmem:[%s1 + $0x40] sm:$0xf]
  %v35 = vld [vmem:[%s1 + $0x44] sm:$0xf]
  %v36 = vld [vmem:[%s1 + $0x48] sm:$0xf]
  %v37 = vld [vmem:[%s1 + $0x4c] sm:$0xf]
  %v38 = vld [vmem:[%s1 + $0x50] sm:$0xf]
  %v39 = vld [vmem:[%s1 + $0x54] sm:$0xf]
  %v40 = vld [vmem:[%s1 + $0x58] sm:$0xf]
  %v41 = vld [vmem:[%s1 + $0x5c] sm:$0xf]
  %v42 = vld [vmem:[%s1 + $0x60] sm:$0xf]
  %v43 = vld [vmem:[%s1 + $0x64] sm:$0xf]
  %v44 = vld [vmem:[%s1 + $0x68] sm:$0xf]
  %v45 = vunpack.c.l.bf16 %v18
  %v46 = vunpack.c.l.bf16 %v19
  %v47 = vunpack.c.l.bf16 %v20
  %v48 = vunpack.c.l.bf16 %v21
  %v49 = vunpack.c.l.bf16 %v22
  %v50 = vunpack.c.l.bf16 %v23
  %v51 = vunpack.c.l.bf16 %v24
  %v52 = vunpack.c.l.bf16 %v25
  %v53 = vunpack.c.l.bf16 %v26
  %v54 = vunpack.c.l.bf16 %v27
  %v55 = vunpack.c.l.bf16 %v28
  %v56 = vunpack.c.l.bf16 %v29
  %v57 = vunpack.c.l.bf16 %v30
  %v58 = vunpack.c.l.bf16 %v31
  %v59 = vunpack.c.l.bf16 %v32
  %v60 = vunpack.c.l.bf16 %v33
  %v61 = vunpack.c.l.bf16 %v34
  %v62 = vunpack.c.l.bf16 %v35
  %v63 = vunpack.c.l.bf16 %v36
  %v64 = vunpack.c.l.bf16 %v37
  %v65 = vunpack.c.l.bf16 %v38
  %v66 = vunpack.c.l.bf16 %v39
  %v67 = vunpack.c.l.bf16 %v40
  %v68 = vunpack.c.l.bf16 %v41
  %v69 = vunpack.c.l.bf16 %v42
  %v70 = vunpack.c.l.bf16 %v43
  %v71 = vunpack.c.l.bf16 %v44
  %v72 = vld [vmem:[%s2] sm:$0xff]
  %v73 = vld [vmem:[%s2 + $0x8] sm:$0xf]
  %75 = vset.pattern.permute.xlu0 0
  %76 = vperm.xlu0 %75, %v72
  %v77 = vpop.permute.xlu0 %76
  %80 = vset.pattern.permute.xlu0 0
  %81 = vperm.xlu0 %80, %v73
  %v82 = vpop.permute.xlu0 %81
  %vm84 = vcmask 719872
  %v86 = vsel %vm84, %v15, 0
  %v89 = vsel %vm84, %v17, 0
  %91 = vmatpush.msra.mxu0 %v60
  %92 = vmatpush.msra.mxu0 %v59
  %93 = vmatpush.msra.mxu0 %v58
  %94 = vmatpush.msra.mxu0 %v57
  %95 = vmatpush.msra.mxu0 %v56
  %96 = vmatpush.msra.mxu0 %v55
  %97 = vmatpush.msra.mxu0 %v54
  %98 = vmatpush.msra.mxu0 %v53
  %99 = vmatpush.msra.mxu0 %v52
  %100 = vmatpush.msra.mxu0 %v51
  %101 = vmatpush.msra.mxu0 %v50
  %102 = vmatpush.msra.mxu0 %v49
  %103 = vmatpush.msra.mxu0 %v48
  %104 = vmatpush.msra.mxu0 %v47
  %105 = vmatpush.msra.mxu0 %v46
  %106 = vmatpush.msra.mxu0 %v45
  %107 = vmatmul.f32.gmra.mxu0 %v14
  %v108 = vpop.f32.mrf.mxu0
  %v109 = vadd.f32 %v77, %v108
  %110 = vmatmul.f32.gmra.mxu0 %v16
  %v111 = vpop.f32.mrf.mxu0
  %v112 = vadd.f32 %v82, %v111
  %113 = vdwg.mxu0
  %114 = vmatpush.msra.mxu0 0.0
  %115 = vmatpush.msra.mxu0 0.0
  %116 = vmatpush.msra.mxu0 0.0
  %117 = vmatpush.msra.mxu0 0.0
  %118 = vmatpush.msra.mxu0 0.0
  %119 = vmatpush.msra.mxu0 %v71
  %120 = vmatpush.msra.mxu0 %v70
  %121 = vmatpush.msra.mxu0 %v69
  %122 = vmatpush.msra.mxu0 %v68
  %123 = vmatpush.msra.mxu0 %v67
  %124 = vmatpush.msra.mxu0 %v66
  %125 = vmatpush.msra.mxu0 %v65
  %126 = vmatpush.msra.mxu0 %v64
  %127 = vmatpush.msra.mxu0 %v63
  %128 = vmatpush.msra.mxu0 %v62
  %129 = vmatpush.msra.mxu0 %v61
  %130 = vmatmul.f32.gmra.mxu0 %v86
  %v131 = vpop.f32.mrf.mxu0
  %v132 = vadd.f32 %v109, %v131
  %133 = vmatmul.f32.gmra.mxu0 %v89
  %v134 = vpop.f32.mrf.mxu0
  %v135 = vadd.f32 %v112, %v134
  %136 = vdwg.mxu0
  %v137 = vmax.f32 %v132, 0.0
  %v138 = vmax.f32 %v135, 0.0
  %139 = vst [vmem:[%s3] sm:$0xff] %v137
  %140 = vst [vmem:[%s3 + $0x8] sm:$0xf] %v138
  // Predicated region
  $region14: #{crowd_counter_forward.21} parent=0 // pred_check
    _
  $region15: #{crowd_counter_forward.21} parent=0 // pred_check_branch
    %142 = sbr.rel (0) target = $region17
  $region16: #{crowd_counter_forward.21} parent=0 // pred_region
    _
  $region17: #{crowd_counter_forward.21} parent=0 // pred_fallthru
    _
  // Predicated region
  $region18: #{crowd_counter_forward.21} parent=0 // pred_check
    _
  $region19: #{crowd_counter_forward.21} parent=0 // pred_check_branch
    %144 = sbr.rel (0) target = $region21
  $region20: #{crowd_counter_forward.21} parent=0 // pred_region
    _
  $region21: #{crowd_counter_forward.21} parent=0 // pred_fallthru
    _

// kernel: crowd_counter_forward.22
$region0: #{crowd_counter_forward.22}
  #allocation0 [shape = 'u32[]', space=smem, size = 0x4, offset = 0x4, fixed_abs, tag = 'smem constant byte address 0x4 - core index']
  #allocation1 [shape = 'u32[72,128]{1,0:T(1,128)}', space=vmem, size = 0x9000, scoped, tag = 'internal scratch']
  #allocation2 [shape = 'f32[1,1]{1,0:T(1,128)S(1)}', space=vmem, size = 0x200, scoped, tag = 'scoped memory for crowd_counter_forward.22']
  %s0 = inlined_call_operand.vmem [shape: f32[30,128], index: 0, kind: input, shape index: {}]
  %s1 = inlined_call_operand.vmem [shape: f32[30,1], index: 1, kind: input, shape index: {}]
  %s2 = inlined_call_operand.<no memory space> [shape: f32[1,1], index: 2, kind: input, shape index: {}]
  %s3 = inlined_call_operand.vmem [shape: f32[1,128], index: 3, kind: output, shape index: {}]
  %s4 = sld [smem:[#allocation0]]
  $region22: #{crowd_counter_forward.22} parent=0
    _
  %s6 = ssub.s32 1, %s4
  %s7 = scalar_select 0, %s6, %s4
  %v8 = vstv %s2
  %9 = vst [vmem:[#allocation2] sm:$0x1] %v8
  // Predicated region
  $region2: #{crowd_counter_forward.22} parent=0 // pred_check
    _
  $region3: #{crowd_counter_forward.22} parent=0 // pred_check_branch
    %11 = sbr.rel (0) target = $region5
  $region4: #{crowd_counter_forward.22} parent=0 // pred_region
    _
  $region5: #{crowd_counter_forward.22} parent=0 // pred_fallthru
    _
  // Predicated region
  $region6: #{crowd_counter_forward.22} parent=0 // pred_check
    _
  $region7: #{crowd_counter_forward.22} parent=0 // pred_check_branch
    %13 = sbr.rel (0) target = $region9
  $region8: #{crowd_counter_forward.22} parent=0 // pred_region
    _
  $region9: #{crowd_counter_forward.22} parent=0 // pred_fallthru
    _
  // Predicated region
  $region10: #{crowd_counter_forward.22} parent=0 // pred_check
    _
  $region11: #{crowd_counter_forward.22} parent=0 // pred_check_branch
    %15 = sbr.rel (0) target = $region13
  $region12: #{crowd_counter_forward.22} parent=0 // pred_region
    _
  $region13: #{crowd_counter_forward.22} parent=0 // pred_fallthru
    _
  %v16 = vld [vmem:[%s0] sm:$0xff]
  %v17 = vld [vmem:[%s0 + $0x8] sm:$0xff]
  %v18 = vld [vmem:[%s0 + $0x10] sm:$0xff]
  %v19 = vld [vmem:[%s0 + $0x18] sm:$0x3f]
  %v20 = vld [vmem:[%s1] sm:$0xff]
  %v21 = vld [vmem:[%s1 + $0x8] sm:$0xff]
  %v22 = vld [vmem:[%s1 + $0x10] sm:$0xff]
  %v23 = vld [vmem:[%s1 + $0x18] sm:$0x3f]
  %25 = vset.pattern.permute.xlu0 0
  %26 = vperm.xlu0 %25, %v20
  %v27 = vpop.permute.xlu0 %26
  %30 = vset.pattern.permute.xlu0 0
  %31 = vperm.xlu0 %30, %v21
  %v32 = vpop.permute.xlu0 %31
  %35 = vset.pattern.permute.xlu0 0
  %36 = vperm.xlu0 %35, %v22
  %v37 = vpop.permute.xlu0 %36
  %40 = vset.pattern.permute.xlu0 0
  %41 = vperm.xlu0 %40, %v23
  %v42 = vpop.permute.xlu0 %41
  %v44 = vmul.f32 %v16, %v27
  %v45 = vmul.f32 %v17, %v32
  %v46 = vmul.f32 %v18, %v37
  %v47 = vmul.f32 %v19, %v42
  %v48 = vadd.f32 %v44, %v45
  %v49 = vadd.f32 %v48, %v46
  %vm50 = vcmask 1045504
  %v51 = vsel %vm50, %v47, 0.0
  %v52 = vadd.f32 %v49, %v51
  %v53 = vrot.slane %v52, 4
  %v54 = vadd.f32 %v52, %v53
  %v55 = vrot.slane %v54, 2
  %v56 = vadd.f32 %v54, %v55
  %v57 = vrot.slane %v56, 1
  %v58 = vadd.f32 %v56, %v57
  %v59 = vld [vmem:[#allocation2] sm:$0x1]
  %61 = vset.pattern.permute.xlu0 0
  %62 = vperm.xlu0 %61, %v59
  %v63 = vpop.permute.xlu0 %62
  %v65 = vperm.slane %v63, 0
  %v66 = vadd.f32 %v58, %v65
  %v67 = vmax.f32 %v66, 0.0
  %68 = vst [vmem:[%s3] sm:$0x1] %v67
  // Predicated region
  $region14: #{crowd_counter_forward.22} parent=0 // pred_check
    _
  $region15: #{crowd_counter_forward.22} parent=0 // pred_check_branch
    %70 = sbr.rel (0) target = $region17
  $region16: #{crowd_counter_forward.22} parent=0 // pred_region
    _
  $region17: #{crowd_counter_forward.22} parent=0 // pred_fallthru
    _
  // Predicated region
  $region18: #{crowd_counter_forward.22} parent=0 // pred_check
    _
  $region19: #{crowd_counter_forward.22} parent=0 // pred_check_branch
    %72 = sbr.rel (0) target = $region21
  $region20: #{crowd_counter_forward.22} parent=0 // pred_region
    _
  $region21: #{crowd_counter_forward.22} parent=0 // pred_fallthru
    _

// kernel: crowd_counter_forward.23
$region0: #{crowd_counter_forward.23}
  #allocation0 [shape = 'u32[]', space=smem, size = 0x4, offset = 0x4, fixed_abs, tag = 'smem constant byte address 0x4 - core index']
  #allocation1 [shape = 'u32[72,128]{1,0:T(1,128)}', space=vmem, size = 0x9000, scoped, tag = 'internal scratch']
  #allocation2 [shape = 'f32[1,1]{1,0:T(1,128)}', space=vmem, size = 0x200, scoped, tag = 'scratch operand']
  %s0 = inlined_call_operand.vmem [shape: f32[1,128], index: 0, kind: input, shape index: {}]
  %s1 = inlined_call_operand.vmem [shape: f32[1,128], index: 1, kind: input, shape index: {}]
  %s2 = inlined_call_operand.hbm [shape: f32[1,1], index: 2, kind: output, shape index: {}]
  %s3 = sld [smem:[#allocation0]]
  $region26: #{crowd_counter_forward.23} parent=0
    _
  %s5 = ssub.s32 1, %s3
  %s6 = scalar_select 0, %s5, %s3
  $region1: #{crowd_counter_forward.23} parent=0
    #allocation3 [shape = 'u8[512]{0}', space=vmem, size = 0x400, scoped, tag = 'output window, operand 0, single buffered']
    #allocation4 [shape = 's32[1]{0}', space=sflag, size = 0x4, scoped, tag = 'scoped memory for crowd_counter_forward.23']
    %7 = vsyncpa [#allocation4], 0
    // Predicated region
    $region2: #{crowd_counter_forward.23} parent=1 // pred_check
      _
    $region3: #{crowd_counter_forward.23} parent=1 // pred_check_branch
      %9 = sbr.rel (0) target = $region5
    $region4: #{crowd_counter_forward.23} parent=1 // pred_region
      _
    $region5: #{crowd_counter_forward.23} parent=1 // pred_fallthru
      _
    // Predicated region
    $region6: #{crowd_counter_forward.23} parent=1 // pred_check
      _
    $region7: #{crowd_counter_forward.23} parent=1 // pred_check_branch
      %11 = sbr.rel (0) target = $region9
    $region8: #{crowd_counter_forward.23} parent=1 // pred_region
      _
    $region9: #{crowd_counter_forward.23} parent=1 // pred_fallthru
      _
    %p12 = scmp.eq.s32.totalorder 0, 0
    // Predicated region
    $region10: #{crowd_counter_forward.23} parent=1 // pred_check
      %p13 = pneg %p12
    $region11: #{crowd_counter_forward.23} parent=1 // pred_check_branch
      %15 = sbr.rel (%p13) target = $region13
    $region12: #{crowd_counter_forward.23} parent=1 // pred_region
      %vm16 = vcmask 0
      %17 = vst.msk [vmem:[#allocation2] sm:$0x1] %vm16, 0.0
    $region13: #{crowd_counter_forward.23} parent=1 // pred_fallthru
      _
    %v18 = vld [vmem:[%s0] sm:$0x1]
    %v19 = vld [vmem:[%s1] sm:$0x1]
    %v20 = vsub.f32 %v18, %v19
    %v21 = vld [vmem:[#allocation2] sm:$0x1]
    %v22 = vmul.f32 %v20, %v20
    %vm23 = vcmask 1040384
    %v24 = vsel %vm23, %v22, 0.0
    %25 = vadd.xlane.f32.xlu0 %v24
    %v26 = vpop.xlane.xlu0 %25
    %v27 = vrot.slane %v26, 4
    %v28 = vadd.f32 %v26, %v27
    %v29 = vrot.slane %v28, 2
    %v30 = vadd.f32 %v28, %v29
    %v31 = vrot.slane %v30, 1
    %v32 = vadd.f32 %v30, %v31
    %s33 = vtos %v32
    %v34 = vstv %s33
    %v35 = vadd.f32 %v21, %v34
    %vm36 = vcmask 0
    %37 = vst.msk [vmem:[#allocation2] sm:$0x1] %vm36, %v35
    // Predicated region
    $region14: #{crowd_counter_forward.23} parent=1 // pred_check
      %p38 = pneg %p12
    $region15: #{crowd_counter_forward.23} parent=1 // pred_check_branch
      %40 = sbr.rel (%p38) target = $region17
    $region16: #{crowd_counter_forward.23} parent=1 // pred_region
      %v41 = vld [vmem:[#allocation2] sm:$0x1]
      %v42 = vmul.f32 %v41, 0.03125
      %43 = vst.msk [vmem:[#allocation3] sm:$0x1] %vm36, %v42
    $region17: #{crowd_counter_forward.23} parent=1 // pred_fallthru
      _
    // Predicated region
    $region18: #{crowd_counter_forward.23} parent=1 // pred_check
      _
    $region19: #{crowd_counter_forward.23} parent=1 // pred_check_branch
      %45 = sbr.rel (0) target = $region21
    $region20: #{crowd_counter_forward.23} parent=1 // pred_region
      %47 = vsyncadd [#allocation4], 0
      %s49 = sshll.u32 [#allocation3], 4
      %s50 = int_to_ptr.vmem [resolvable:$true] %s49
      %s51 = sshll.u32 %s2, 4
      %s52 = int_to_ptr.hbm [resolvable:$true] %s51
      %54 = dma.vmem_to_hbm [thread:$0]  %s50, 16, %s52, [#allocation4]
    $region21: #{crowd_counter_forward.23} parent=1 // pred_fallthru
      _
    // Predicated region
    $region22: #{crowd_counter_forward.23} parent=1 // pred_check
      _
    $region23: #{crowd_counter_forward.23} parent=1 // pred_check_branch
      %56 = sbr.rel (0) target = $region25
    $region24: #{crowd_counter_forward.23} parent=1 // pred_region
      %58 = dma.done [#allocation4], 16
    $region25: #{crowd_counter_forward.23} parent=1 // pred_fallthru
      _
    %59 = vsyncpa [#allocation4], 1

</llo_original>
